<compile_context>
chip_gen: v7x
topology: tpu7x:2x2x1
jax: 0.10.0
libtpu: 0.0.40
codegen_flags: <defaults>
</compile_context>

<pallas_src>
import functools
import math

import jax
import jax.numpy as jnp
from jax.experimental import pallas as pl
from jax.experimental.pallas import tpu as pltpu


# -----------------------------------------------------------------------------
# helpers usable inside Pallas kernels
# -----------------------------------------------------------------------------

def _dot(a, w):
    """MXU matmul: activations cast to bf16 (weights already bf16), f32 accum."""
    return jnp.dot(a.astype(jnp.bfloat16), w, preferred_element_type=jnp.float32)


def _silu(x):
    return x / (1.0 + jnp.exp(-x))          # x * sigmoid(x)


def _layer_norm(x, eps=1e-6):                # LayerNorm(elementwise_affine=False)
    mu = jnp.mean(x, axis=-1, keepdims=True)
    xc = x - mu
    var = jnp.mean(xc * xc, axis=-1, keepdims=True)
    return xc * jax.lax.rsqrt(var + eps)


def _vmem_specs(k):
    return [pl.BlockSpec(memory_space=pltpu.MemorySpace.VMEM) for _ in range(k)]


# =============================================================================
# Kernel 1: GaussianLayer + pos_embedder + sum_j / N  fused with xh_embedder
# =============================================================================

def _embed_kernel(xh_ref, mask_ref, means_ref, stds_ref,
                  pos_w_ref, pos_b_ref, xh_w_ref, xh_b_ref, o_ref,
                  *, bs, n, n_dims):
    K = means_ref.shape[-1]
    xh = xh_ref[...]                                     # (bs*n, D)  f32
    mask = mask_ref[...]                                 # (bs*n, 1)  f32
    means = means_ref[...].reshape(1, 1, K)
    inv_std = 1.0 / (jnp.abs(stds_ref[...]) + 1e-5)      # (1, K)
    inv_std3 = inv_std.reshape(1, 1, K)
    norm3 = (inv_std * (1.0 / math.sqrt(2.0 * math.pi))).reshape(1, 1, K)

    # Per-batch pairwise Gaussian edge embedding summed over neighbours j.
    gsum_parts, invn_parts = [], []
    for b in range(bs):                                  # bs tiny & static
        rows = slice(b * n, (b + 1) * n)
        xb = xh[rows, :n_dims]                           # (n, 3) centered coords
        mb = mask[rows, :]                               # (n, 1)
        diff = xb[:, None, :] - xb[None, :, :]           # (n, n, 3)
        dist = jnp.sqrt(jnp.sum(diff * diff, axis=-1))   # (n, n)  == torch.cdist
        # TODO(synk): pair masking (mask_i*mask_j) of the Gaussian edge features
        # kept from previous version; self-pairs (dist=0) included as in cdist.
        pair = mb * mb.T                                 # (n, n)
        z = (dist[..., None] - means) * inv_std3         # (n, n, K)
        gauss = jnp.exp(-0.5 * z * z) * norm3 * pair[..., None]
        gsum_parts.append(jnp.sum(gauss, axis=1))        # (n, K)  sum over j
        inv_n = pl.reciprocal(jnp.sum(mb, axis=0, keepdims=True), approx=True)
        invn_parts.append(jnp.broadcast_to(inv_n, (n, 1)))
    gsum = jnp.concatenate(gsum_parts, axis=0)           # (bs*n, K)
    inv_n_tok = jnp.concatenate(invn_parts, axis=0)      # (bs*n, 1)

    # Linear(K,Fp) is applied before the j-sum in the reference, so its bias is
    # accumulated n times (all j, masked or not), then divided by N per batch.
    pos_part = (_dot(gsum, pos_w_ref[...]) + jnp.float32(n) * pos_b_ref[...]) * inv_n_tok
    xh_part = _dot(xh, xh_w_ref[...]) + xh_b_ref[...]    # (bs*n, Fx) one matmul
    o_ref[...] = jnp.concatenate([xh_part, pos_part], axis=-1) * mask


def fused_embed(xh2d, mask2d, gauss_p, pos_p, xh_p, *, bs, n, n_dims):
    hidden = xh_p["w"].shape[1] + pos_p["w"].shape[1]
    kern = functools.partial(_embed_kernel, bs=bs, n=n, n_dims=n_dims)
    return pl.pallas_call(
        kern,
        out_shape=jax.ShapeDtypeStruct((bs * n, hidden), jnp.float32),
        in_specs=_vmem_specs(8),
        out_specs=pl.BlockSpec(memory_space=pltpu.MemorySpace.VMEM),
    )(xh2d, mask2d, gauss_p["means"], gauss_p["stds"],
      pos_p["w"], pos_p["b"], xh_p["w"], xh_p["b"])


# =============================================================================
# Kernel 2: timestep-embedder MLP  (Linear -> SiLU -> Linear)
# =============================================================================

def _temb_kernel(emb_ref, w1_ref, b1_ref, w2_ref, b2_ref, o_ref):
    h = _silu(_dot(emb_ref[...], w1_ref[...]) + b1_ref[...])
    o_ref[...] = _dot(h, w2_ref[...]) + b2_ref[...]


def fused_t_embedder(emb, p1, p2):
    bs = emb.shape[0]
    hidden = p2["w"].shape[1]
    return pl.pallas_call(
        _temb_kernel,
        out_shape=jax.ShapeDtypeStruct((bs, hidden), jnp.float32),
        in_specs=_vmem_specs(5),
        out_specs=pl.BlockSpec(memory_space=pltpu.MemorySpace.VMEM),
    )(emb, p1["w"], p1["b"], p2["w"], p2["b"])


# =============================================================================
# Kernel 3: one full DiT block (adaLN + attention + MLP + gated residuals)
# =============================================================================

def _dit_block_kernel(x_ref, c_ref, mask_ref,
                      adaw_ref, adab_ref, qkvw_ref, qkvb_ref,
                      projw_ref, projb_ref, fc1w_ref, fc1b_ref,
                      fc2w_ref, fc2b_ref, o_ref, *, num_heads):
    M, H = x_ref.shape                                    # M = bs * n tokens
    bs, n = mask_ref.shape
    hd = H // num_heads
    scale = 1.0 / math.sqrt(hd)

    x = x_ref[...]                                        # (M, H)
    mask = mask_ref[...]                                  # (bs, n)

    # adaLN modulation for the whole batch in one matmul, broadcast per token.
    mod = _dot(_silu(c_ref[...]), adaw_ref[...]) + adab_ref[...]   # (bs, 6H)
    mod_tok = jnp.concatenate(
        [jnp.broadcast_to(mod[b:b + 1, :], (n, 6 * H)) for b in range(bs)], axis=0)
    sh_a, sc_a, g_a = mod_tok[:, 0:H], mod_tok[:, H:2 * H], mod_tok[:, 2 * H:3 * H]
    sh_m, sc_m, g_m = mod_tok[:, 3 * H:4 * H], mod_tok[:, 4 * H:5 * H], mod_tok[:, 5 * H:6 * H]

    # --- attention branch: big matmuls over all tokens, per-batch scores -----
    hmod = _layer_norm(x) * (1.0 + sc_a) + sh_a           # (M, H)
    qkv = _dot(hmod, qkvw_ref[...]) + qkvb_ref[...]       # (M, 3H)
    batch_outs = []
    for b in range(bs):                                   # static unroll, bs tiny
        rows = slice(b * n, (b + 1) * n)
        key_ok = mask[b:b + 1, :] > 0.5                   # (1, n) key-padding mask
        heads = []
        for hh in range(num_heads):                       # static unroll
            q = qkv[rows, hh * hd:(hh + 1) * hd]
            k = qkv[rows, H + hh * hd:H + (hh + 1) * hd]
            v = qkv[rows, 2 * H + hh * hd:2 * H + (hh + 1) * hd]
            s = jax.lax.dot_general(q, k, (((1,), (1,)), ((), ())),
                                    preferred_element_type=jnp.float32) * scale
            s = jnp.where(key_ok, s, jnp.float32(-1e9))
            s = s - jnp.max(s, axis=-1, keepdims=True)
            p = jnp.exp(s)
            p = p * pl.reciprocal(jnp.sum(p, axis=-1, keepdims=True), approx=True)
            heads.append(jnp.dot(p, v, preferred_element_type=jnp.float32))
        batch_outs.append(jnp.concatenate(heads, axis=-1))           # (n, H)
    attn = jnp.concatenate(batch_outs, axis=0)            # (M, H)
    attn = _dot(attn, projw_ref[...]) + projb_ref[...]
    x1 = x + g_a * attn

    # --- MLP branch (timm Mlp, GELU tanh approx; dropout = identity in eval) --
    hmod = _layer_norm(x1) * (1.0 + sc_m) + sh_m
    hmid = jax.nn.gelu(_dot(hmod, fc1w_ref[...]) + fc1b_ref[...], approximate=True)
    o_ref[...] = x1 + g_m * (_dot(hmid, fc2w_ref[...]) + fc2b_ref[...])


def fused_dit_block(x2d, c, key_mask, blk, num_heads):
    M, H = x2d.shape
    kern = functools.partial(_dit_block_kernel, num_heads=num_heads)
    return pl.pallas_call(
        kern,
        out_shape=jax.ShapeDtypeStruct((M, H), jnp.float32),
        in_specs=_vmem_specs(13),
        out_specs=pl.BlockSpec(memory_space=pltpu.MemorySpace.VMEM),
    )(x2d, c, key_mask,
      blk["adaln"]["w"], blk["adaln"]["b"],
      blk["qkv"]["w"], blk["qkv"]["b"],
      blk["proj"]["w"], blk["proj"]["b"],
      blk["fc1"]["w"], blk["fc1"]["b"],
      blk["fc2"]["w"], blk["fc2"]["b"])


# =============================================================================
# Kernel 4: DiT final layer (adaLN + LN + Linear)
# =============================================================================

def _final_kernel(x_ref, c_ref, adaw_ref, adab_ref, linw_ref, linb_ref, o_ref):
    M, H = x_ref.shape
    bs = c_ref.shape[0]
    n = M // bs
    mod = _dot(_silu(c_ref[...]), adaw_ref[...]) + adab_ref[...]   # (bs, 2H)
    mod_tok = jnp.concatenate(
        [jnp.broadcast_to(mod[b:b + 1, :], (n, 2 * H)) for b in range(bs)], axis=0)
    shift, scl = mod_tok[:, :H], mod_tok[:, H:]
    h = _layer_norm(x_ref[...]) * (1.0 + scl) + shift
    o_ref[...] = _dot(h, linw_ref[...]) + linb_ref[...]


def fused_final_layer(x2d, c, fp):
    M = x2d.shape[0]
    out_ch = fp["linear"]["w"].shape[1]
    return pl.pallas_call(
        _final_kernel,
        out_shape=jax.ShapeDtypeStruct((M, out_ch), jnp.float32),
        in_specs=_vmem_specs(6),
        out_specs=pl.BlockSpec(memory_space=pltpu.MemorySpace.VMEM),
    )(x2d, c, fp["adaln"]["w"], fp["adaln"]["b"],
      fp["linear"]["w"], fp["linear"]["b"])


# =============================================================================
# JAX glue: DiT wrapper + DiTGaussian_dynamics._forward
# =============================================================================

def remove_mean_with_mask(x, node_mask):
    N = jnp.sum(node_mask, axis=1, keepdims=True)
    mean = jnp.sum(x, axis=1, keepdims=True) / N
    return x - mean * node_mask


def timestep_embedding(t, dim=256, max_period=10000.0):
    half = dim // 2
    freqs = jnp.exp(-math.log(max_period) *
                    jnp.arange(half, dtype=jnp.float32) / half)
    args = t.astype(jnp.float32)[:, None] * freqs[None, :]
    return jnp.concatenate([jnp.cos(args), jnp.sin(args)], axis=-1)


def dit_forward(p, x2d, t_flat, key_mask):
    # TODO(synk): x_scale * pos_embed positional term omitted (x_scale=0.0 here).
    c = fused_t_embedder(timestep_embedding(t_flat, 256), p["t_mlp1"], p["t_mlp2"])
    for blk in p["blocks"]:
        x2d = fused_dit_block(x2d, c, key_mask, blk, p["heads"])
    return fused_final_layer(x2d, c, p["final"])


def model_forward(P, t, xh, node_mask, n_dims=3):
    """DiTGaussian_dynamics._forward (molecule=True, com_free=True, context=None,
    eval mode).  edge_mask is unused by the reference body and omitted."""
    bs, n, _ = xh.shape
    key_mask = jnp.squeeze(node_mask, -1)                 # (bs, n)
    t_flat = jnp.squeeze(t, -1)                           # (bs,)
    x = xh[:, :, :n_dims]
    h = xh[:, :, n_dims:]
    x = remove_mean_with_mask(x, node_mask)
    xh_cat = jnp.concatenate([x, h], axis=-1)             # molecule=True branch
    xh2d = xh_cat.reshape(bs * n, -1)                     # token matrix
    mask2d = node_mask.reshape(bs * n, 1)
    tokens = fused_embed(xh2d, mask2d, P["gauss"], P["pos_embedder"],
                         P["xh_embedder"], bs=bs, n=n, n_dims=n_dims)
    out2d = dit_forward(P["dit"], tokens, t_flat, key_mask)
    out = node_mask * out2d.reshape(bs, n, -1)
    x_out = out[:, :, :n_dims]
    h_out = out[:, :, n_dims:]
    x_out = remove_mean_with_mask(x_out, node_mask)        # com_free=True
    return jnp.concatenate([x_out, h_out], axis=-1)


# =============================================================================
# Deterministic parameter initialization (shapes follow the module __init__);
# matmul weights stored bf16 for the MXU, biases / gaussian params f32.
# =============================================================================

def _init_linear(key, din, dout, w_dtype=jnp.bfloat16):
    lim = math.sqrt(6.0 / (din + dout))
    w = jax.random.uniform(key, (din, dout), jnp.float32, -lim, lim)
    return {"w": w.astype(w_dtype), "b": jnp.zeros((1, dout), jnp.float32)}


def _init_gaussian(key, K):
    k1, k2 = jax.random.split(key)
    return {"means": jax.random.uniform(k1, (1, K), jnp.float32, 0.0, 3.0),
            "stds": jax.random.uniform(k2, (1, K), jnp.float32, 0.0, 3.0)}


def _init_dit(key, hidden, depth, heads, mlp_ratio, out_ch):
    keys = jax.random.split(key, depth + 3)
    mlp_hidden = int(hidden * mlp_ratio)
    blocks = []
    for d in range(depth):
        bk = jax.random.split(keys[d], 5)
        blocks.append({
            "adaln": _init_linear(bk[0], hidden, 6 * hidden),
            "qkv": _init_linear(bk[1], hidden, 3 * hidden),
            "proj": _init_linear(bk[2], hidden, hidden),
            "fc1": _init_linear(bk[3], hidden, mlp_hidden),
            "fc2": _init_linear(bk[4], mlp_hidden, hidden),
        })
    fk = jax.random.split(keys[depth], 2)
    return {
        "heads": heads,
        "t_mlp1": _init_linear(keys[depth + 1], 256, hidden),
        "t_mlp2": _init_linear(keys[depth + 2], hidden, hidden),
        "blocks": blocks,
        "final": {"adaln": _init_linear(fk[0], hidden, 2 * hidden),
                  "linear": _init_linear(fk[1], hidden, out_ch)},
    }


def init_params(key, cfg):
    out_ch = cfg["n_dims"] + cfg["in_node_nf"] + cfg["context_nf"]
    keys = jax.random.split(key, 4)
    return {
        "gauss": _init_gaussian(keys[0], cfg["K"]),
        "pos_embedder": _init_linear(keys[1], cfg["K"],
                                     cfg["hidden"] - cfg["xh_hidden"]),
        "xh_embedder": _init_linear(keys[2], out_ch, cfg["xh_hidden"]),
        "dit": _init_dit(keys[3], cfg["hidden"], cfg["depth"], cfg["heads"],
                         cfg["mlp_ratio"], out_ch),
    }


# =============================================================================
# Main
# =============================================================================

if __name__ == "__main__":
    cfg = dict(n_dims=3, in_node_nf=5, context_nf=0, xh_hidden=32, K=16,
               hidden=64, depth=2, heads=4, mlp_ratio=2.0)
    bs, n_nodes = 2, 8

    root = jax.random.PRNGKey(0)
    k_param, k_xh, k_t = jax.random.split(root, 3)
    params = init_params(k_param, cfg)

    node_mask = jnp.ones((bs, n_nodes, 1), jnp.float32)
    node_mask = node_mask.at[1, -2:, 0].set(0.0)          # two padded nodes
    xh = jax.random.normal(
        k_xh, (bs, n_nodes, cfg["n_dims"] + cfg["in_node_nf"]), jnp.float32
    ) * node_mask
    t = jax.random.uniform(k_t, (bs, 1), jnp.float32)

    fwd = jax.jit(lambda t_, xh_, m_: model_forward(params, t_, xh_, m_,
                                                    n_dims=cfg["n_dims"]))
    out = jax.block_until_ready(fwd(t, xh, node_mask))

    assert out.shape == (bs, n_nodes, cfg["n_dims"] + cfg["in_node_nf"])
    assert bool(jnp.all(jnp.isfinite(out)))
    # assert_correctly_masked equivalent
    mask_err = float(jnp.max(jnp.abs(out * (1.0 - node_mask))))
    assert mask_err < 1e-4, f"output not correctly masked: {mask_err}"

    print("KERNEL_OK")
</pallas_src>

<mosaic_0001>
module attributes {stable_mosaic.version = 11 : i64} {
  func.func @_temb_kernel(%arg0: memref<2x256xf32, #tpu.memory_space<vmem>>, %arg1: memref<256x64xbf16, #tpu.memory_space<vmem>>, %arg2: memref<1x64xf32, #tpu.memory_space<vmem>>, %arg3: memref<64x64xbf16, #tpu.memory_space<vmem>>, %arg4: memref<1x64xf32, #tpu.memory_space<vmem>>, %arg5: memref<2x64xf32, #tpu.memory_space<vmem>>) attributes {dimension_semantics = [], scalar_prefetch = 0 : i64, scratch_operands = 0 : i64, tpu.core_type = #tpu.core_type<tc>} {
    %c0 = arith.constant 0 : index
    %c0_0 = arith.constant 0 : index
    %0 = vector.load %arg0[%c0, %c0_0] : memref<2x256xf32, #tpu.memory_space<vmem>>, vector<2x256xf32>
    %c0_1 = arith.constant 0 : index
    %c0_2 = arith.constant 0 : index
    %1 = vector.load %arg1[%c0_1, %c0_2] : memref<256x64xbf16, #tpu.memory_space<vmem>>, vector<256x64xbf16>
    %2 = arith.truncf %0 : vector<2x256xf32> to vector<2x256xbf16>
    %cst = arith.constant dense<0.000000e+00> : vector<2x64xf32>
    %3 = tpu.matmul %2, %1, %cst {dimension_numbers = #tpu.dot_dimension_numbers<[1], [0], [0], [1], [0, 0, 1, 1], [], []>} : vector<2x256xbf16>, vector<256x64xbf16>, vector<2x64xf32> -> vector<2x64xf32>
    %c0_3 = arith.constant 0 : index
    %c0_4 = arith.constant 0 : index
    %4 = vector.load %arg2[%c0_3, %c0_4] : memref<1x64xf32, #tpu.memory_space<vmem>>, vector<1x64xf32>
    %5 = vector.broadcast %4 : vector<1x64xf32> to vector<2x64xf32>
    %6 = arith.addf %3, %5 : vector<2x64xf32>
    %cst_5 = arith.constant 0.000000e+00 : f32
    %7 = vector.broadcast %cst_5 : f32 to vector<2x64xf32>
    %8 = arith.subf %7, %6 : vector<2x64xf32>
    %9 = math.exp %8 : vector<2x64xf32>
    %cst_6 = arith.constant 1.000000e+00 : f32
    %10 = vector.broadcast %cst_6 : f32 to vector<2x64xf32>
    %11 = arith.addf %10, %9 : vector<2x64xf32>
    %12 = arith.divf %6, %11 : vector<2x64xf32>
    %c0_7 = arith.constant 0 : index
    %c0_8 = arith.constant 0 : index
    %13 = vector.load %arg3[%c0_7, %c0_8] : memref<64x64xbf16, #tpu.memory_space<vmem>>, vector<64x64xbf16>
    %14 = arith.truncf %12 : vector<2x64xf32> to vector<2x64xbf16>
    %cst_9 = arith.constant dense<0.000000e+00> : vector<2x64xf32>
    %15 = tpu.matmul %14, %13, %cst_9 {dimension_numbers = #tpu.dot_dimension_numbers<[1], [0], [0], [1], [0, 0, 1, 1], [], []>} : vector<2x64xbf16>, vector<64x64xbf16>, vector<2x64xf32> -> vector<2x64xf32>
    %c0_10 = arith.constant 0 : index
    %c0_11 = arith.constant 0 : index
    %16 = vector.load %arg4[%c0_10, %c0_11] : memref<1x64xf32, #tpu.memory_space<vmem>>, vector<1x64xf32>
    %17 = vector.broadcast %16 : vector<1x64xf32> to vector<2x64xf32>
    %18 = arith.addf %15, %17 : vector<2x64xf32>
    %c0_12 = arith.constant 0 : index
    %c0_13 = arith.constant 0 : index
    %19 = vector.load %arg5[%c0_12, %c0_13] : memref<2x64xf32, #tpu.memory_space<vmem>>, vector<2x64xf32>
    tpu.vector_store %arg5[%c0_12, %c0_13], %18 {strides = array<i32>} : memref<2x64xf32, #tpu.memory_space<vmem>>, vector<2x64xf32>,
    return
  }
}

module attributes {stable_mosaic.version = 11 : i64} {
  func.func @_embed_kernel(%arg0: memref<16x8xf32, #tpu.memory_space<vmem>>, %arg1: memref<16x1xf32, #tpu.memory_space<vmem>>, %arg2: memref<1x16xf32, #tpu.memory_space<vmem>>, %arg3: memref<1x16xf32, #tpu.memory_space<vmem>>, %arg4: memref<16x32xbf16, #tpu.memory_space<vmem>>, %arg5: memref<1x32xf32, #tpu.memory_space<vmem>>, %arg6: memref<8x32xbf16, #tpu.memory_space<vmem>>, %arg7: memref<1x32xf32, #tpu.memory_space<vmem>>, %arg8: memref<16x64xf32, #tpu.memory_space<vmem>>) attributes {dimension_semantics = [], scalar_prefetch = 0 : i64, scratch_operands = 0 : i64, tpu.core_type = #tpu.core_type<tc>} {
    %c0 = arith.constant 0 : index
    %c0_0 = arith.constant 0 : index
    %0 = vector.load %arg0[%c0, %c0_0] : memref<16x8xf32, #tpu.memory_space<vmem>>, vector<16x8xf32>
    %c0_1 = arith.constant 0 : index
    %c0_2 = arith.constant 0 : index
    %1 = vector.load %arg1[%c0_1, %c0_2] : memref<16x1xf32, #tpu.memory_space<vmem>>, vector<16x1xf32>
    %c0_3 = arith.constant 0 : index
    %c0_4 = arith.constant 0 : index
    %2 = vector.load %arg2[%c0_3, %c0_4] : memref<1x16xf32, #tpu.memory_space<vmem>>, vector<1x16xf32>
    %3 = vector.shape_cast %2 : vector<1x16xf32> to vector<1x1x16xf32>
    %c0_5 = arith.constant 0 : index
    %c0_6 = arith.constant 0 : index
    %4 = vector.load %arg3[%c0_5, %c0_6] : memref<1x16xf32, #tpu.memory_space<vmem>>, vector<1x16xf32>
    %5 = math.absf %4 : vector<1x16xf32>
    %cst = arith.constant 9.99999974E-6 : f32
    %6 = vector.broadcast %cst : f32 to vector<1x16xf32>
    %7 = arith.addf %5, %6 : vector<1x16xf32>
    %cst_7 = arith.constant 1.000000e+00 : f32
    %8 = vector.broadcast %cst_7 : f32 to vector<1x16xf32>
    %9 = arith.divf %8, %7 : vector<1x16xf32>
    %10 = vector.shape_cast %9 : vector<1x16xf32> to vector<1x1x16xf32>
    %cst_8 = arith.constant 0.398942292 : f32
    %11 = vector.broadcast %cst_8 : f32 to vector<1x16xf32>
    %12 = arith.mulf %9, %11 : vector<1x16xf32>
    %13 = vector.shape_cast %12 : vector<1x16xf32> to vector<1x1x16xf32>
    %14 = vector.extract_strided_slice %0 {offsets = [0, 0], sizes = [8, 3], strides = [1, 1]} : vector<16x8xf32> to vector<8x3xf32>
    %15 = vector.extract_strided_slice %1 {offsets = [0, 0], sizes = [8, 1], strides = [1, 1]} : vector<16x1xf32> to vector<8x1xf32>
    %16 = vector.shape_cast %14 : vector<8x3xf32> to vector<8x1x3xf32>
    %17 = vector.shape_cast %14 : vector<8x3xf32> to vector<1x8x3xf32>
    %18 = vector.broadcast %16 : vector<8x1x3xf32> to vector<8x8x3xf32>
    %19 = vector.broadcast %17 : vector<1x8x3xf32> to vector<8x8x3xf32>
    %20 = arith.subf %18, %19 : vector<8x8x3xf32>
    %21 = arith.mulf %20, %20 : vector<8x8x3xf32>
    %cst_9 = arith.constant dense<0.000000e+00> : vector<8x8xf32>
    %22 = vector.multi_reduction <add>, %21, %cst_9 [2] : vector<8x8x3xf32> to vector<8x8xf32>
    %23 = math.sqrt %22 : vector<8x8xf32>
    %24 = tpu.transpose %15, [1, 0] : vector<8x1xf32> -> vector<1x8xf32>
    %25 = vector.broadcast %15 : vector<8x1xf32> to vector<8x8xf32>
    %26 = vector.broadcast %24 : vector<1x8xf32> to vector<8x8xf32>
    %27 = arith.mulf %25, %26 : vector<8x8xf32>
    %28 = vector.shape_cast %23 : vector<8x8xf32> to vector<8x8x1xf32>
    %29 = vector.broadcast %28 : vector<8x8x1xf32> to vector<8x8x16xf32>
    %30 = vector.broadcast %3 : vector<1x1x16xf32> to vector<8x8x16xf32>
    %31 = arith.subf %29, %30 : vector<8x8x16xf32>
    %32 = vector.broadcast %10 : vector<1x1x16xf32> to vector<8x8x16xf32>
    %33 = arith.mulf %31, %32 : vector<8x8x16xf32>
    %cst_10 = arith.constant -5.000000e-01 : f32
    %34 = vector.broadcast %cst_10 : f32 to vector<8x8x16xf32>
    %35 = arith.mulf %34, %33 : vector<8x8x16xf32>
    %36 = arith.mulf %35, %33 : vector<8x8x16xf32>
    %37 = math.exp %36 : vector<8x8x16xf32>
    %38 = vector.broadcast %13 : vector<1x1x16xf32> to vector<8x8x16xf32>
    %39 = arith.mulf %37, %38 : vector<8x8x16xf32>
    %40 = vector.shape_cast %27 : vector<8x8xf32> to vector<8x8x1xf32>
    %41 = vector.broadcast %40 : vector<8x8x1xf32> to vector<8x8x16xf32>
    %42 = arith.mulf %39, %41 : vector<8x8x16xf32>
    %cst_11 = arith.constant dense<0.000000e+00> : vector<8x16xf32>
    %43 = vector.multi_reduction <add>, %42, %cst_11 [1] : vector<8x8x16xf32> to vector<8x16xf32>
    %cst_12 = arith.constant dense<0.000000e+00> : vector<1xf32>
    %44 = vector.multi_reduction <add>, %15, %cst_12 [0] : vector<8x1xf32> to vector<1xf32>
    %45 = vector.shape_cast %44 : vector<1xf32> to vector<1x1xf32>
    %46 = tpu.reciprocal %45 {approx = true} : vector<1x1xf32> -> vector<1x1xf32>
    %47 = vector.shape_cast %46 : vector<1x1xf32> to vector<1x1xf32>
    %48 = vector.broadcast %47 : vector<1x1xf32> to vector<8x1xf32>
    %49 = vector.extract_strided_slice %0 {offsets = [8, 0], sizes = [8, 3], strides = [1, 1]} : vector<16x8xf32> to vector<8x3xf32>
    %50 = vector.extract_strided_slice %1 {offsets = [8, 0], sizes = [8, 1], strides = [1, 1]} : vector<16x1xf32> to vector<8x1xf32>
    %51 = vector.shape_cast %49 : vector<8x3xf32> to vector<8x1x3xf32>
    %52 = vector.shape_cast %49 : vector<8x3xf32> to vector<1x8x3xf32>
    %53 = vector.broadcast %51 : vector<8x1x3xf32> to vector<8x8x3xf32>
    %54 = vector.broadcast %52 : vector<1x8x3xf32> to vector<8x8x3xf32>
    %55 = arith.subf %53, %54 : vector<8x8x3xf32>
    %56 = arith.mulf %55, %55 : vector<8x8x3xf32>
    %cst_13 = arith.constant dense<0.000000e+00> : vector<8x8xf32>
    %57 = vector.multi_reduction <add>, %56, %cst_13 [2] : vector<8x8x3xf32> to vector<8x8xf32>
    %58 = math.sqrt %57 : vector<8x8xf32>
    %59 = tpu.transpose %50, [1, 0] : vector<8x1xf32> -> vector<1x8xf32>
    %60 = vector.broadcast %50 : vector<8x1xf32> to vector<8x8xf32>
    %61 = vector.broadcast %59 : vector<1x8xf32> to vector<8x8xf32>
    %62 = arith.mulf %60, %61 : vector<8x8xf32>
    %63 = vector.shape_cast %58 : vector<8x8xf32> to vector<8x8x1xf32>
    %64 = vector.broadcast %63 : vector<8x8x1xf32> to vector<8x8x16xf32>
    %65 = vector.broadcast %3 : vector<1x1x16xf32> to vector<8x8x16xf32>
    %66 = arith.subf %64, %65 : vector<8x8x16xf32>
    %67 = vector.broadcast %10 : vector<1x1x16xf32> to vector<8x8x16xf32>
    %68 = arith.mulf %66, %67 : vector<8x8x16xf32>
    %cst_14 = arith.constant -5.000000e-01 : f32
    %69 = vector.broadcast %cst_14 : f32 to vector<8x8x16xf32>
    %70 = arith.mulf %69, %68 : vector<8x8x16xf32>
    %71 = arith.mulf %70, %68 : vector<8x8x16xf32>
    %72 = math.exp %71 : vector<8x8x16xf32>
    %73 = vector.broadcast %13 : vector<1x1x16xf32> to vector<8x8x16xf32>
    %74 = arith.mulf %72, %73 : vector<8x8x16xf32>
    %75 = vector.shape_cast %62 : vector<8x8xf32> to vector<8x8x1xf32>
    %76 = vector.broadcast %75 : vector<8x8x1xf32> to vector<8x8x16xf32>
    %77 = arith.mulf %74, %76 : vector<8x8x16xf32>
    %cst_15 = arith.constant dense<0.000000e+00> : vector<8x16xf32>
    %78 = vector.multi_reduction <add>, %77, %cst_15 [1] : vector<8x8x16xf32> to vector<8x16xf32>
    %cst_16 = arith.constant dense<0.000000e+00> : vector<1xf32>
    %79 = vector.multi_reduction <add>, %50, %cst_16 [0] : vector<8x1xf32> to vector<1xf32>
    %80 = vector.shape_cast %79 : vector<1xf32> to vector<1x1xf32>
    %81 = tpu.reciprocal %80 {approx = true} : vector<1x1xf32> -> vector<1x1xf32>
    %82 = vector.shape_cast %81 : vector<1x1xf32> to vector<1x1xf32>
    %83 = vector.broadcast %82 : vector<1x1xf32> to vector<8x1xf32>
    %84 = tpu.concatenate %43, %78 in 0 : vector<8x16xf32>, vector<8x16xf32> -> vector<16x16xf32>
    %85 = tpu.concatenate %48, %83 in 0 : vector<8x1xf32>, vector<8x1xf32> -> vector<16x1xf32>
    %c0_17 = arith.constant 0 : index
    %c0_18 = arith.constant 0 : index
    %86 = vector.load %arg4[%c0_17, %c0_18] : memref<16x32xbf16, #tpu.memory_space<vmem>>, vector<16x32xbf16>
    %87 = arith.truncf %84 : vector<16x16xf32> to vector<16x16xbf16>
    %cst_19 = arith.constant dense<0.000000e+00> : vector<16x32xf32>
    %88 = tpu.matmul %87, %86, %cst_19 {dimension_numbers = #tpu.dot_dimension_numbers<[1], [0], [0], [1], [0, 0, 1, 1], [], []>} : vector<16x16xbf16>, vector<16x32xbf16>, vector<16x32xf32> -> vector<16x32xf32>
    %c0_20 = arith.constant 0 : index
    %c0_21 = arith.constant 0 : index
    %89 = vector.load %arg5[%c0_20, %c0_21] : memref<1x32xf32, #tpu.memory_space<vmem>>, vector<1x32xf32>
    %cst_22 = arith.constant 8.000000e+00 : f32
    %90 = vector.broadcast %cst_22 : f32 to vector<1x32xf32>
    %91 = arith.mulf %90, %89 : vector<1x32xf32>
    %92 = vector.broadcast %91 : vector<1x32xf32> to vector<16x32xf32>
    %93 = arith.addf %88, %92 : vector<16x32xf32>
    %94 = vector.broadcast %85 : vector<16x1xf32> to vector<16x32xf32>
    %95 = arith.mulf %93, %94 : vector<16x32xf32>
    %c0_23 = arith.constant 0 : index
    %c0_24 = arith.constant 0 : index
    %96 = vector.load %arg6[%c0_23, %c0_24] : memref<8x32xbf16, #tpu.memory_space<vmem>>, vector<8x32xbf16>
    %97 = arith.truncf %0 : vector<16x8xf32> to vector<16x8xbf16>
    %cst_25 = arith.constant dense<0.000000e+00> : vector<16x32xf32>
    %98 = tpu.matmul %97, %96, %cst_25 {dimension_numbers = #tpu.dot_dimension_numbers<[1], [0], [0], [1], [0, 0, 1, 1], [], []>} : vector<16x8xbf16>, vector<8x32xbf16>, vector<16x32xf32> -> vector<16x32xf32>
    %c0_26 = arith.constant 0 : index
    %c0_27 = arith.constant 0 : index
    %99 = vector.load %arg7[%c0_26, %c0_27] : memref<1x32xf32, #tpu.memory_space<vmem>>, vector<1x32xf32>
    %100 = vector.broadcast %99 : vector<1x32xf32> to vector<16x32xf32>
    %101 = arith.addf %98, %100 : vector<16x32xf32>
    %102 = tpu.concatenate %101, %95 in 1 : vector<16x32xf32>, vector<16x32xf32> -> vector<16x64xf32>
    %103 = vector.broadcast %1 : vector<16x1xf32> to vector<16x64xf32>
    %104 = arith.mulf %102, %103 : vector<16x64xf32>
    %c0_28 = arith.constant 0 : index
    %c0_29 = arith.constant 0 : index
    %105 = vector.load %arg8[%c0_28, %c0_29] : memref<16x64xf32, #tpu.memory_space<vmem>>, vector<16x64xf32>
    tpu.vector_store %arg8[%c0_28, %c0_29], %104 {strides = array<i32>} : memref<16x64xf32, #tpu.memory_space<vmem>>, vector<16x64xf32>,
    return
  }
}

module attributes {stable_mosaic.version = 11 : i64} {
  func.func @_final_kernel(%arg0: memref<16x64xf32, #tpu.memory_space<vmem>>, %arg1: memref<2x64xf32, #tpu.memory_space<vmem>>, %arg2: memref<64x128xbf16, #tpu.memory_space<vmem>>, %arg3: memref<1x128xf32, #tpu.memory_space<vmem>>, %arg4: memref<64x8xbf16, #tpu.memory_space<vmem>>, %arg5: memref<1x8xf32, #tpu.memory_space<vmem>>, %arg6: memref<16x8xf32, #tpu.memory_space<vmem>>) attributes {dimension_semantics = [], scalar_prefetch = 0 : i64, scratch_operands = 0 : i64, tpu.core_type = #tpu.core_type<tc>} {
    %c0 = arith.constant 0 : index
    %c0_0 = arith.constant 0 : index
    %0 = vector.load %arg1[%c0, %c0_0] : memref<2x64xf32, #tpu.memory_space<vmem>>, vector<2x64xf32>
    %cst = arith.constant 0.000000e+00 : f32
    %1 = vector.broadcast %cst : f32 to vector<2x64xf32>
    %2 = arith.subf %1, %0 : vector<2x64xf32>
    %3 = math.exp %2 : vector<2x64xf32>
    %cst_1 = arith.constant 1.000000e+00 : f32
    %4 = vector.broadcast %cst_1 : f32 to vector<2x64xf32>
    %5 = arith.addf %4, %3 : vector<2x64xf32>
    %6 = arith.divf %0, %5 : vector<2x64xf32>
    %c0_2 = arith.constant 0 : index
    %c0_3 = arith.constant 0 : index
    %7 = vector.load %arg2[%c0_2, %c0_3] : memref<64x128xbf16, #tpu.memory_space<vmem>>, vector<64x128xbf16>
    %8 = arith.truncf %6 : vector<2x64xf32> to vector<2x64xbf16>
    %cst_4 = arith.constant dense<0.000000e+00> : vector<2x128xf32>
    %9 = tpu.matmul %8, %7, %cst_4 {dimension_numbers = #tpu.dot_dimension_numbers<[1], [0], [0], [1], [0, 0, 1, 1], [], []>} : vector<2x64xbf16>, vector<64x128xbf16>, vector<2x128xf32> -> vector<2x128xf32>
    %c0_5 = arith.constant 0 : index
    %c0_6 = arith.constant 0 : index
    %10 = vector.load %arg3[%c0_5, %c0_6] : memref<1x128xf32, #tpu.memory_space<vmem>>, vector<1x128xf32>
    %11 = vector.broadcast %10 : vector<1x128xf32> to vector<2x128xf32>
    %12 = arith.addf %9, %11 : vector<2x128xf32>
    %13 = vector.extract_strided_slice %12 {offsets = [0, 0], sizes = [1, 128], strides = [1, 1]} : vector<2x128xf32> to vector<1x128xf32>
    %14 = vector.shape_cast %13 : vector<1x128xf32> to vector<1x128xf32>
    %15 = vector.broadcast %14 : vector<1x128xf32> to vector<8x128xf32>
    %16 = vector.extract_strided_slice %12 {offsets = [1, 0], sizes = [1, 128], strides = [1, 1]} : vector<2x128xf32> to vector<1x128xf32>
    %17 = vector.shape_cast %16 : vector<1x128xf32> to vector<1x128xf32>
    %18 = vector.broadcast %17 : vector<1x128xf32> to vector<8x128xf32>
    %19 = tpu.concatenate %15, %18 in 0 : vector<8x128xf32>, vector<8x128xf32> -> vector<16x128xf32>
    %20 = vector.extract_strided_slice %19 {offsets = [0, 0], sizes = [16, 64], strides = [1, 1]} : vector<16x128xf32> to vector<16x64xf32>
    %21 = vector.extract_strided_slice %19 {offsets = [0, 64], sizes = [16, 64], strides = [1, 1]} : vector<16x128xf32> to vector<16x64xf32>
    %c0_7 = arith.constant 0 : index
    %c0_8 = arith.constant 0 : index
    %22 = vector.load %arg0[%c0_7, %c0_8] : memref<16x64xf32, #tpu.memory_space<vmem>>, vector<16x64xf32>
    %cst_9 = arith.constant dense<0.000000e+00> : vector<16xf32>
    %23 = vector.multi_reduction <add>, %22, %cst_9 [1] : vector<16x64xf32> to vector<16xf32>
    %24 = vector.shape_cast %23 : vector<16xf32> to vector<16x1xf32>
    %cst_10 = arith.constant 6.400000e+01 : f32
    %25 = vector.broadcast %cst_10 : f32 to vector<16x1xf32>
    %26 = arith.divf %24, %25 : vector<16x1xf32>
    %27 = vector.broadcast %26 : vector<16x1xf32> to vector<16x64xf32>
    %28 = arith.subf %22, %27 : vector<16x64xf32>
    %29 = arith.mulf %28, %28 : vector<16x64xf32>
    %cst_11 = arith.constant dense<0.000000e+00> : vector<16xf32>
    %30 = vector.multi_reduction <add>, %29, %cst_11 [1] : vector<16x64xf32> to vector<16xf32>
    %31 = vector.shape_cast %30 : vector<16xf32> to vector<16x1xf32>
    %cst_12 = arith.constant 6.400000e+01 : f32
    %32 = vector.broadcast %cst_12 : f32 to vector<16x1xf32>
    %33 = arith.divf %31, %32 : vector<16x1xf32>
    %cst_13 = arith.constant 9.99999997E-7 : f32
    %34 = vector.broadcast %cst_13 : f32 to vector<16x1xf32>
    %35 = arith.addf %33, %34 : vector<16x1xf32>
    %36 = math.rsqrt %35 : vector<16x1xf32>
    %37 = vector.broadcast %36 : vector<16x1xf32> to vector<16x64xf32>
    %38 = arith.mulf %28, %37 : vector<16x64xf32>
    %cst_14 = arith.constant 1.000000e+00 : f32
    %39 = vector.broadcast %cst_14 : f32 to vector<16x64xf32>
    %40 = arith.addf %39, %21 : vector<16x64xf32>
    %41 = arith.mulf %38, %40 : vector<16x64xf32>
    %42 = arith.addf %41, %20 : vector<16x64xf32>
    %c0_15 = arith.constant 0 : index
    %c0_16 = arith.constant 0 : index
    %43 = vector.load %arg4[%c0_15, %c0_16] : memref<64x8xbf16, #tpu.memory_space<vmem>>, vector<64x8xbf16>
    %44 = arith.truncf %42 : vector<16x64xf32> to vector<16x64xbf16>
    %cst_17 = arith.constant dense<0.000000e+00> : vector<16x8xf32>
    %45 = tpu.matmul %44, %43, %cst_17 {dimension_numbers = #tpu.dot_dimension_numbers<[1], [0], [0], [1], [0, 0, 1, 1], [], []>} : vector<16x64xbf16>, vector<64x8xbf16>, vector<16x8xf32> -> vector<16x8xf32>
    %c0_18 = arith.constant 0 : index
    %c0_19 = arith.constant 0 : index
    %46 = vector.load %arg5[%c0_18, %c0_19] : memref<1x8xf32, #tpu.memory_space<vmem>>, vector<1x8xf32>
    %47 = vector.broadcast %46 : vector<1x8xf32> to vector<16x8xf32>
    %48 = arith.addf %45, %47 : vector<16x8xf32>
    %c0_20 = arith.constant 0 : index
    %c0_21 = arith.constant 0 : index
    %49 = vector.load %arg6[%c0_20, %c0_21] : memref<16x8xf32, #tpu.memory_space<vmem>>, vector<16x8xf32>
    tpu.vector_store %arg6[%c0_20, %c0_21], %48 {strides = array<i32>} : memref<16x8xf32, #tpu.memory_space<vmem>>, vector<16x8xf32>,
    return
  }
}

module attributes {stable_mosaic.version = 11 : i64} {
  func.func @_dit_block_kernel(%arg0: memref<16x64xf32, #tpu.memory_space<vmem>>, %arg1: memref<2x64xf32, #tpu.memory_space<vmem>>, %arg2: memref<2x8xf32, #tpu.memory_space<vmem>>, %arg3: memref<64x384xbf16, #tpu.memory_space<vmem>>, %arg4: memref<1x384xf32, #tpu.memory_space<vmem>>, %arg5: memref<64x192xbf16, #tpu.memory_space<vmem>>, %arg6: memref<1x192xf32, #tpu.memory_space<vmem>>, %arg7: memref<64x64xbf16, #tpu.memory_space<vmem>>, %arg8: memref<1x64xf32, #tpu.memory_space<vmem>>, %arg9: memref<64x128xbf16, #tpu.memory_space<vmem>>, %arg10: memref<1x128xf32, #tpu.memory_space<vmem>>, %arg11: memref<128x64xbf16, #tpu.memory_space<vmem>>, %arg12: memref<1x64xf32, #tpu.memory_space<vmem>>, %arg13: memref<16x64xf32, #tpu.memory_space<vmem>>) attributes {dimension_semantics = [], scalar_prefetch = 0 : i64, scratch_operands = 0 : i64, tpu.core_type = #tpu.core_type<tc>} {
    %c0 = arith.constant 0 : index
    %c0_0 = arith.constant 0 : index
    %0 = vector.load %arg0[%c0, %c0_0] : memref<16x64xf32, #tpu.memory_space<vmem>>, vector<16x64xf32>
    %c0_1 = arith.constant 0 : index
    %c0_2 = arith.constant 0 : index
    %1 = vector.load %arg2[%c0_1, %c0_2] : memref<2x8xf32, #tpu.memory_space<vmem>>, vector<2x8xf32>
    %c0_3 = arith.constant 0 : index
    %c0_4 = arith.constant 0 : index
    %2 = vector.load %arg1[%c0_3, %c0_4] : memref<2x64xf32, #tpu.memory_space<vmem>>, vector<2x64xf32>
    %cst = arith.constant 0.000000e+00 : f32
    %3 = vector.broadcast %cst : f32 to vector<2x64xf32>
    %4 = arith.subf %3, %2 : vector<2x64xf32>
    %5 = math.exp %4 : vector<2x64xf32>
    %cst_5 = arith.constant 1.000000e+00 : f32
    %6 = vector.broadcast %cst_5 : f32 to vector<2x64xf32>
    %7 = arith.addf %6, %5 : vector<2x64xf32>
    %8 = arith.divf %2, %7 : vector<2x64xf32>
    %c0_6 = arith.constant 0 : index
    %c0_7 = arith.constant 0 : index
    %9 = vector.load %arg3[%c0_6, %c0_7] : memref<64x384xbf16, #tpu.memory_space<vmem>>, vector<64x384xbf16>
    %10 = arith.truncf %8 : vector<2x64xf32> to vector<2x64xbf16>
    %cst_8 = arith.constant dense<0.000000e+00> : vector<2x384xf32>
    %11 = tpu.matmul %10, %9, %cst_8 {dimension_numbers = #tpu.dot_dimension_numbers<[1], [0], [0], [1], [0, 0, 1, 1], [], []>} : vector<2x64xbf16>, vector<64x384xbf16>, vector<2x384xf32> -> vector<2x384xf32>
    %c0_9 = arith.constant 0 : index
    %c0_10 = arith.constant 0 : index
    %12 = vector.load %arg4[%c0_9, %c0_10] : memref<1x384xf32, #tpu.memory_space<vmem>>, vector<1x384xf32>
    %13 = vector.broadcast %12 : vector<1x384xf32> to vector<2x384xf32>
    %14 = arith.addf %11, %13 : vector<2x384xf32>
    %15 = vector.extract_strided_slice %14 {offsets = [0, 0], sizes = [1, 384], strides = [1, 1]} : vector<2x384xf32> to vector<1x384xf32>
    %16 = vector.shape_cast %15 : vector<1x384xf32> to vector<1x384xf32>
    %17 = vector.broadcast %16 : vector<1x384xf32> to vector<8x384xf32>
    %18 = vector.extract_strided_slice %14 {offsets = [1, 0], sizes = [1, 384], strides = [1, 1]} : vector<2x384xf32> to vector<1x384xf32>
    %19 = vector.shape_cast %18 : vector<1x384xf32> to vector<1x384xf32>
    %20 = vector.broadcast %19 : vector<1x384xf32> to vector<8x384xf32>
    %21 = tpu.concatenate %17, %20 in 0 : vector<8x384xf32>, vector<8x384xf32> -> vector<16x384xf32>
    %22 = vector.extract_strided_slice %21 {offsets = [0, 0], sizes = [16, 64], strides = [1, 1]} : vector<16x384xf32> to vector<16x64xf32>
    %23 = vector.extract_strided_slice %21 {offsets = [0, 64], sizes = [16, 64], strides = [1, 1]} : vector<16x384xf32> to vector<16x64xf32>
    %24 = vector.extract_strided_slice %21 {offsets = [0, 128], sizes = [16, 64], strides = [1, 1]} : vector<16x384xf32> to vector<16x64xf32>
    %25 = vector.extract_strided_slice %21 {offsets = [0, 192], sizes = [16, 64], strides = [1, 1]} : vector<16x384xf32> to vector<16x64xf32>
    %26 = vector.extract_strided_slice %21 {offsets = [0, 256], sizes = [16, 64], strides = [1, 1]} : vector<16x384xf32> to vector<16x64xf32>
    %27 = vector.extract_strided_slice %21 {offsets = [0, 320], sizes = [16, 64], strides = [1, 1]} : vector<16x384xf32> to vector<16x64xf32>
    %cst_11 = arith.constant dense<0.000000e+00> : vector<16xf32>
    %28 = vector.multi_reduction <add>, %0, %cst_11 [1] : vector<16x64xf32> to vector<16xf32>
    %29 = vector.shape_cast %28 : vector<16xf32> to vector<16x1xf32>
    %cst_12 = arith.constant 6.400000e+01 : f32
    %30 = vector.broadcast %cst_12 : f32 to vector<16x1xf32>
    %31 = arith.divf %29, %30 : vector<16x1xf32>
    %32 = vector.broadcast %31 : vector<16x1xf32> to vector<16x64xf32>
    %33 = arith.subf %0, %32 : vector<16x64xf32>
    %34 = arith.mulf %33, %33 : vector<16x64xf32>
    %cst_13 = arith.constant dense<0.000000e+00> : vector<16xf32>
    %35 = vector.multi_reduction <add>, %34, %cst_13 [1] : vector<16x64xf32> to vector<16xf32>
    %36 = vector.shape_cast %35 : vector<16xf32> to vector<16x1xf32>
    %cst_14 = arith.constant 6.400000e+01 : f32
    %37 = vector.broadcast %cst_14 : f32 to vector<16x1xf32>
    %38 = arith.divf %36, %37 : vector<16x1xf32>
    %cst_15 = arith.constant 9.99999997E-7 : f32
    %39 = vector.broadcast %cst_15 : f32 to vector<16x1xf32>
    %40 = arith.addf %38, %39 : vector<16x1xf32>
    %41 = math.rsqrt %40 : vector<16x1xf32>
    %42 = vector.broadcast %41 : vector<16x1xf32> to vector<16x64xf32>
    %43 = arith.mulf %33, %42 : vector<16x64xf32>
    %cst_16 = arith.constant 1.000000e+00 : f32
    %44 = vector.broadcast %cst_16 : f32 to vector<16x64xf32>
    %45 = arith.addf %44, %23 : vector<16x64xf32>
    %46 = arith.mulf %43, %45 : vector<16x64xf32>
    %47 = arith.addf %46, %22 : vector<16x64xf32>
    %c0_17 = arith.constant 0 : index
    %c0_18 = arith.constant 0 : index
    %48 = vector.load %arg5[%c0_17, %c0_18] : memref<64x192xbf16, #tpu.memory_space<vmem>>, vector<64x192xbf16>
    %49 = arith.truncf %47 : vector<16x64xf32> to vector<16x64xbf16>
    %cst_19 = arith.constant dense<0.000000e+00> : vector<16x192xf32>
    %50 = tpu.matmul %49, %48, %cst_19 {dimension_numbers = #tpu.dot_dimension_numbers<[1], [0], [0], [1], [0, 0, 1, 1], [], []>} : vector<16x64xbf16>, vector<64x192xbf16>, vector<16x192xf32> -> vector<16x192xf32>
    %c0_20 = arith.constant 0 : index
    %c0_21 = arith.constant 0 : index
    %51 = vector.load %arg6[%c0_20, %c0_21] : memref<1x192xf32, #tpu.memory_space<vmem>>, vector<1x192xf32>
    %52 = vector.broadcast %51 : vector<1x192xf32> to vector<16x192xf32>
    %53 = arith.addf %50, %52 : vector<16x192xf32>
    %54 = vector.extract_strided_slice %1 {offsets = [0, 0], sizes = [1, 8], strides = [1, 1]} : vector<2x8xf32> to vector<1x8xf32>
    %cst_22 = arith.constant 5.000000e-01 : f32
    %55 = vector.broadcast %cst_22 : f32 to vector<1x8xf32>
    %56 = arith.cmpf ogt, %54, %55 : vector<1x8xf32>
    %57 = vector.extract_strided_slice %53 {offsets = [0, 0], sizes = [8, 16], strides = [1, 1]} : vector<16x192xf32> to vector<8x16xf32>
    %58 = vector.extract_strided_slice %53 {offsets = [0, 64], sizes = [8, 16], strides = [1, 1]} : vector<16x192xf32> to vector<8x16xf32>
    %59 = vector.extract_strided_slice %53 {offsets = [0, 128], sizes = [8, 16], strides = [1, 1]} : vector<16x192xf32> to vector<8x16xf32>
    %cst_23 = arith.constant dense<0.000000e+00> : vector<8x8xf32>
    %60 = tpu.matmul %57, %58, %cst_23 {dimension_numbers = #tpu.dot_dimension_numbers<[1], [1], [0], [0], [0, 0, 1, 0], [], []>} : vector<8x16xf32>, vector<8x16xf32>, vector<8x8xf32> -> vector<8x8xf32>
    %cst_24 = arith.constant 2.500000e-01 : f32
    %61 = vector.broadcast %cst_24 : f32 to vector<8x8xf32>
    %62 = arith.mulf %60, %61 : vector<8x8xf32>
    %cst_25 = arith.constant -1.000000e+09 : f32
    %63 = vector.shape_cast %56 : vector<1x8xi1> to vector<1x8xi1>
    %64 = vector.broadcast %63 : vector<1x8xi1> to vector<8x8xi1>
    %65 = vector.broadcast %cst_25 : f32 to vector<8x8xf32>
    %66 = arith.select %64, %62, %65 : vector<8x8xi1>, vector<8x8xf32>
    %cst_26 = arith.constant dense<0xFF800000> : vector<8xf32>
    %67 = vector.multi_reduction <maximumf>, %66, %cst_26 [1] : vector<8x8xf32> to vector<8xf32>
    %68 = vector.shape_cast %67 : vector<8xf32> to vector<8x1xf32>
    %69 = vector.broadcast %68 : vector<8x1xf32> to vector<8x8xf32>
    %70 = arith.subf %66, %69 : vector<8x8xf32>
    %71 = math.exp %70 : vector<8x8xf32>
    %cst_27 = arith.constant dense<0.000000e+00> : vector<8xf32>
    %72 = vector.multi_reduction <add>, %71, %cst_27 [1] : vector<8x8xf32> to vector<8xf32>
    %73 = vector.shape_cast %72 : vector<8xf32> to vector<8x1xf32>
    %74 = tpu.reciprocal %73 {approx = true} : vector<8x1xf32> -> vector<8x1xf32>
    %75 = vector.broadcast %74 : vector<8x1xf32> to vector<8x8xf32>
    %76 = arith.mulf %71, %75 : vector<8x8xf32>
    %cst_28 = arith.constant dense<0.000000e+00> : vector<8x16xf32>
    %77 = tpu.matmul %76, %59, %cst_28 {dimension_numbers = #tpu.dot_dimension_numbers<[1], [0], [0], [1], [0, 0, 1, 1], [], []>} : vector<8x8xf32>, vector<8x16xf32>, vector<8x16xf32> -> vector<8x16xf32>
    %78 = vector.extract_strided_slice %53 {offsets = [0, 16], sizes = [8, 16], strides = [1, 1]} : vector<16x192xf32> to vector<8x16xf32>
    %79 = vector.extract_strided_slice %53 {offsets = [0, 80], sizes = [8, 16], strides = [1, 1]} : vector<16x192xf32> to vector<8x16xf32>
    %80 = vector.extract_strided_slice %53 {offsets = [0, 144], sizes = [8, 16], strides = [1, 1]} : vector<16x192xf32> to vector<8x16xf32>
    %cst_29 = arith.constant dense<0.000000e+00> : vector<8x8xf32>
    %81 = tpu.matmul %78, %79, %cst_29 {dimension_numbers = #tpu.dot_dimension_numbers<[1], [1], [0], [0], [0, 0, 1, 0], [], []>} : vector<8x16xf32>, vector<8x16xf32>, vector<8x8xf32> -> vector<8x8xf32>
    %cst_30 = arith.constant 2.500000e-01 : f32
    %82 = vector.broadcast %cst_30 : f32 to vector<8x8xf32>
    %83 = arith.mulf %81, %82 : vector<8x8xf32>
    %cst_31 = arith.constant -1.000000e+09 : f32
    %84 = vector.shape_cast %56 : vector<1x8xi1> to vector<1x8xi1>
    %85 = vector.broadcast %84 : vector<1x8xi1> to vector<8x8xi1>
    %86 = vector.broadcast %cst_31 : f32 to vector<8x8xf32>
    %87 = arith.select %85, %83, %86 : vector<8x8xi1>, vector<8x8xf32>
    %cst_32 = arith.constant dense<0xFF800000> : vector<8xf32>
    %88 = vector.multi_reduction <maximumf>, %87, %cst_32 [1] : vector<8x8xf32> to vector<8xf32>
    %89 = vector.shape_cast %88 : vector<8xf32> to vector<8x1xf32>
    %90 = vector.broadcast %89 : vector<8x1xf32> to vector<8x8xf32>
    %91 = arith.subf %87, %90 : vector<8x8xf32>
    %92 = math.exp %91 : vector<8x8xf32>
    %cst_33 = arith.constant dense<0.000000e+00> : vector<8xf32>
    %93 = vector.multi_reduction <add>, %92, %cst_33 [1] : vector<8x8xf32> to vector<8xf32>
    %94 = vector.shape_cast %93 : vector<8xf32> to vector<8x1xf32>
    %95 = tpu.reciprocal %94 {approx = true} : vector<8x1xf32> -> vector<8x1xf32>
    %96 = vector.broadcast %95 : vector<8x1xf32> to vector<8x8xf32>
    %97 = arith.mulf %92, %96 : vector<8x8xf32>
    %cst_34 = arith.constant dense<0.000000e+00> : vector<8x16xf32>
    %98 = tpu.matmul %97, %80, %cst_34 {dimension_numbers = #tpu.dot_dimension_numbers<[1], [0], [0], [1], [0, 0, 1, 1], [], []>} : vector<8x8xf32>, vector<8x16xf32>, vector<8x16xf32> -> vector<8x16xf32>
    %99 = vector.extract_strided_slice %53 {offsets = [0, 32], sizes = [8, 16], strides = [1, 1]} : vector<16x192xf32> to vector<8x16xf32>
    %100 = vector.extract_strided_slice %53 {offsets = [0, 96], sizes = [8, 16], strides = [1, 1]} : vector<16x192xf32> to vector<8x16xf32>
    %101 = vector.extract_strided_slice %53 {offsets = [0, 160], sizes = [8, 16], strides = [1, 1]} : vector<16x192xf32> to vector<8x16xf32>
    %cst_35 = arith.constant dense<0.000000e+00> : vector<8x8xf32>
    %102 = tpu.matmul %99, %100, %cst_35 {dimension_numbers = #tpu.dot_dimension_numbers<[1], [1], [0], [0], [0, 0, 1, 0], [], []>} : vector<8x16xf32>, vector<8x16xf32>, vector<8x8xf32> -> vector<8x8xf32>
    %cst_36 = arith.constant 2.500000e-01 : f32
    %103 = vector.broadcast %cst_36 : f32 to vector<8x8xf32>
    %104 = arith.mulf %102, %103 : vector<8x8xf32>
    %cst_37 = arith.constant -1.000000e+09 : f32
    %105 = vector.shape_cast %56 : vector<1x8xi1> to vector<1x8xi1>
    %106 = vector.broadcast %105 : vector<1x8xi1> to vector<8x8xi1>
    %107 = vector.broadcast %cst_37 : f32 to vector<8x8xf32>
    %108 = arith.select %106, %104, %107 : vector<8x8xi1>, vector<8x8xf32>
    %cst_38 = arith.constant dense<0xFF800000> : vector<8xf32>
    %109 = vector.multi_reduction <maximumf>, %108, %cst_38 [1] : vector<8x8xf32> to vector<8xf32>
    %110 = vector.shape_cast %109 : vector<8xf32> to vector<8x1xf32>
    %111 = vector.broadcast %110 : vector<8x1xf32> to vector<8x8xf32>
    %112 = arith.subf %108, %111 : vector<8x8xf32>
    %113 = math.exp %112 : vector<8x8xf32>
    %cst_39 = arith.constant dense<0.000000e+00> : vector<8xf32>
    %114 = vector.multi_reduction <add>, %113, %cst_39 [1] : vector<8x8xf32> to vector<8xf32>
    %115 = vector.shape_cast %114 : vector<8xf32> to vector<8x1xf32>
    %116 = tpu.reciprocal %115 {approx = true} : vector<8x1xf32> -> vector<8x1xf32>
    %117 = vector.broadcast %116 : vector<8x1xf32> to vector<8x8xf32>
    %118 = arith.mulf %113, %117 : vector<8x8xf32>
    %cst_40 = arith.constant dense<0.000000e+00> : vector<8x16xf32>
    %119 = tpu.matmul %118, %101, %cst_40 {dimension_numbers = #tpu.dot_dimension_numbers<[1], [0], [0], [1], [0, 0, 1, 1], [], []>} : vector<8x8xf32>, vector<8x16xf32>, vector<8x16xf32> -> vector<8x16xf32>
    %120 = vector.extract_strided_slice %53 {offsets = [0, 48], sizes = [8, 16], strides = [1, 1]} : vector<16x192xf32> to vector<8x16xf32>
    %121 = vector.extract_strided_slice %53 {offsets = [0, 112], sizes = [8, 16], strides = [1, 1]} : vector<16x192xf32> to vector<8x16xf32>
    %122 = vector.extract_strided_slice %53 {offsets = [0, 176], sizes = [8, 16], strides = [1, 1]} : vector<16x192xf32> to vector<8x16xf32>
    %cst_41 = arith.constant dense<0.000000e+00> : vector<8x8xf32>
    %123 = tpu.matmul %120, %121, %cst_41 {dimension_numbers = #tpu.dot_dimension_numbers<[1], [1], [0], [0], [0, 0, 1, 0], [], []>} : vector<8x16xf32>, vector<8x16xf32>, vector<8x8xf32> -> vector<8x8xf32>
    %cst_42 = arith.constant 2.500000e-01 : f32
    %124 = vector.broadcast %cst_42 : f32 to vector<8x8xf32>
    %125 = arith.mulf %123, %124 : vector<8x8xf32>
    %cst_43 = arith.constant -1.000000e+09 : f32
    %126 = vector.shape_cast %56 : vector<1x8xi1> to vector<1x8xi1>
    %127 = vector.broadcast %126 : vector<1x8xi1> to vector<8x8xi1>
    %128 = vector.broadcast %cst_43 : f32 to vector<8x8xf32>
    %129 = arith.select %127, %125, %128 : vector<8x8xi1>, vector<8x8xf32>
    %cst_44 = arith.constant dense<0xFF800000> : vector<8xf32>
    %130 = vector.multi_reduction <maximumf>, %129, %cst_44 [1] : vector<8x8xf32> to vector<8xf32>
    %131 = vector.shape_cast %130 : vector<8xf32> to vector<8x1xf32>
    %132 = vector.broadcast %131 : vector<8x1xf32> to vector<8x8xf32>
    %133 = arith.subf %129, %132 : vector<8x8xf32>
    %134 = math.exp %133 : vector<8x8xf32>
    %cst_45 = arith.constant dense<0.000000e+00> : vector<8xf32>
    %135 = vector.multi_reduction <add>, %134, %cst_45 [1] : vector<8x8xf32> to vector<8xf32>
    %136 = vector.shape_cast %135 : vector<8xf32> to vector<8x1xf32>
    %137 = tpu.reciprocal %136 {approx = true} : vector<8x1xf32> -> vector<8x1xf32>
    %138 = vector.broadcast %137 : vector<8x1xf32> to vector<8x8xf32>
    %139 = arith.mulf %134, %138 : vector<8x8xf32>
    %cst_46 = arith.constant dense<0.000000e+00> : vector<8x16xf32>
    %140 = tpu.matmul %139, %122, %cst_46 {dimension_numbers = #tpu.dot_dimension_numbers<[1], [0], [0], [1], [0, 0, 1, 1], [], []>} : vector<8x8xf32>, vector<8x16xf32>, vector<8x16xf32> -> vector<8x16xf32>
    %141 = tpu.concatenate %77, %98, %119, %140 in 1 : vector<8x16xf32>, vector<8x16xf32>, vector<8x16xf32>, vector<8x16xf32> -> vector<8x64xf32>
    %142 = vector.extract_strided_slice %1 {offsets = [1, 0], sizes = [1, 8], strides = [1, 1]} : vector<2x8xf32> to vector<1x8xf32>
    %cst_47 = arith.constant 5.000000e-01 : f32
    %143 = vector.broadcast %cst_47 : f32 to vector<1x8xf32>
    %144 = arith.cmpf ogt, %142, %143 : vector<1x8xf32>
    %145 = vector.extract_strided_slice %53 {offsets = [8, 0], sizes = [8, 16], strides = [1, 1]} : vector<16x192xf32> to vector<8x16xf32>
    %146 = vector.extract_strided_slice %53 {offsets = [8, 64], sizes = [8, 16], strides = [1, 1]} : vector<16x192xf32> to vector<8x16xf32>
    %147 = vector.extract_strided_slice %53 {offsets = [8, 128], sizes = [8, 16], strides = [1, 1]} : vector<16x192xf32> to vector<8x16xf32>
    %cst_48 = arith.constant dense<0.000000e+00> : vector<8x8xf32>
    %148 = tpu.matmul %145, %146, %cst_48 {dimension_numbers = #tpu.dot_dimension_numbers<[1], [1], [0], [0], [0, 0, 1, 0], [], []>} : vector<8x16xf32>, vector<8x16xf32>, vector<8x8xf32> -> vector<8x8xf32>
    %cst_49 = arith.constant 2.500000e-01 : f32
    %149 = vector.broadcast %cst_49 : f32 to vector<8x8xf32>
    %150 = arith.mulf %148, %149 : vector<8x8xf32>
    %cst_50 = arith.constant -1.000000e+09 : f32
    %151 = vector.shape_cast %144 : vector<1x8xi1> to vector<1x8xi1>
    %152 = vector.broadcast %151 : vector<1x8xi1> to vector<8x8xi1>
    %153 = vector.broadcast %cst_50 : f32 to vector<8x8xf32>
    %154 = arith.select %152, %150, %153 : vector<8x8xi1>, vector<8x8xf32>
    %cst_51 = arith.constant dense<0xFF800000> : vector<8xf32>
    %155 = vector.multi_reduction <maximumf>, %154, %cst_51 [1] : vector<8x8xf32> to vector<8xf32>
    %156 = vector.shape_cast %155 : vector<8xf32> to vector<8x1xf32>
    %157 = vector.broadcast %156 : vector<8x1xf32> to vector<8x8xf32>
    %158 = arith.subf %154, %157 : vector<8x8xf32>
    %159 = math.exp %158 : vector<8x8xf32>
    %cst_52 = arith.constant dense<0.000000e+00> : vector<8xf32>
    %160 = vector.multi_reduction <add>, %159, %cst_52 [1] : vector<8x8xf32> to vector<8xf32>
    %161 = vector.shape_cast %160 : vector<8xf32> to vector<8x1xf32>
    %162 = tpu.reciprocal %161 {approx = true} : vector<8x1xf32> -> vector<8x1xf32>
    %163 = vector.broadcast %162 : vector<8x1xf32> to vector<8x8xf32>
    %164 = arith.mulf %159, %163 : vector<8x8xf32>
    %cst_53 = arith.constant dense<0.000000e+00> : vector<8x16xf32>
    %165 = tpu.matmul %164, %147, %cst_53 {dimension_numbers = #tpu.dot_dimension_numbers<[1], [0], [0], [1], [0, 0, 1, 1], [], []>} : vector<8x8xf32>, vector<8x16xf32>, vector<8x16xf32> -> vector<8x16xf32>
    %166 = vector.extract_strided_slice %53 {offsets = [8, 16], sizes = [8, 16], strides = [1, 1]} : vector<16x192xf32> to vector<8x16xf32>
    %167 = vector.extract_strided_slice %53 {offsets = [8, 80], sizes = [8, 16], strides = [1, 1]} : vector<16x192xf32> to vector<8x16xf32>
    %168 = vector.extract_strided_slice %53 {offsets = [8, 144], sizes = [8, 16], strides = [1, 1]} : vector<16x192xf32> to vector<8x16xf32>
    %cst_54 = arith.constant dense<0.000000e+00> : vector<8x8xf32>
    %169 = tpu.matmul %166, %167, %cst_54 {dimension_numbers = #tpu.dot_dimension_numbers<[1], [1], [0], [0], [0, 0, 1, 0], [], []>} : vector<8x16xf32>, vector<8x16xf32>, vector<8x8xf32> -> vector<8x8xf32>
    %cst_55 = arith.constant 2.500000e-01 : f32
    %170 = vector.broadcast %cst_55 : f32 to vector<8x8xf32>
    %171 = arith.mulf %169, %170 : vector<8x8xf32>
    %cst_56 = arith.constant -1.000000e+09 : f32
    %172 = vector.shape_cast %144 : vector<1x8xi1> to vector<1x8xi1>
    %173 = vector.broadcast %172 : vector<1x8xi1> to vector<8x8xi1>
    %174 = vector.broadcast %cst_56 : f32 to vector<8x8xf32>
    %175 = arith.select %173, %171, %174 : vector<8x8xi1>, vector<8x8xf32>
    %cst_57 = arith.constant dense<0xFF800000> : vector<8xf32>
    %176 = vector.multi_reduction <maximumf>, %175, %cst_57 [1] : vector<8x8xf32> to vector<8xf32>
    %177 = vector.shape_cast %176 : vector<8xf32> to vector<8x1xf32>
    %178 = vector.broadcast %177 : vector<8x1xf32> to vector<8x8xf32>
    %179 = arith.subf %175, %178 : vector<8x8xf32>
    %180 = math.exp %179 : vector<8x8xf32>
    %cst_58 = arith.constant dense<0.000000e+00> : vector<8xf32>
    %181 = vector.multi_reduction <add>, %180, %cst_58 [1] : vector<8x8xf32> to vector<8xf32>
    %182 = vector.shape_cast %181 : vector<8xf32> to vector<8x1xf32>
    %183 = tpu.reciprocal %182 {approx = true} : vector<8x1xf32> -> vector<8x1xf32>
    %184 = vector.broadcast %183 : vector<8x1xf32> to vector<8x8xf32>
    %185 = arith.mulf %180, %184 : vector<8x8xf32>
    %cst_59 = arith.constant dense<0.000000e+00> : vector<8x16xf32>
    %186 = tpu.matmul %185, %168, %cst_59 {dimension_numbers = #tpu.dot_dimension_numbers<[1], [0], [0], [1], [0, 0, 1, 1], [], []>} : vector<8x8xf32>, vector<8x16xf32>, vector<8x16xf32> -> vector<8x16xf32>
    %187 = vector.extract_strided_slice %53 {offsets = [8, 32], sizes = [8, 16], strides = [1, 1]} : vector<16x192xf32> to vector<8x16xf32>
    %188 = vector.extract_strided_slice %53 {offsets = [8, 96], sizes = [8, 16], strides = [1, 1]} : vector<16x192xf32> to vector<8x16xf32>
    %189 = vector.extract_strided_slice %53 {offsets = [8, 160], sizes = [8, 16], strides = [1, 1]} : vector<16x192xf32> to vector<8x16xf32>
    %cst_60 = arith.constant dense<0.000000e+00> : vector<8x8xf32>
    %190 = tpu.matmul %187, %188, %cst_60 {dimension_numbers = #tpu.dot_dimension_numbers<[1], [1], [0], [0], [0, 0, 1, 0], [], []>} : vector<8x16xf32>, vector<8x16xf32>, vector<8x8xf32> -> vector<8x8xf32>
    %cst_61 = arith.constant 2.500000e-01 : f32
    %191 = vector.broadcast %cst_61 : f32 to vector<8x8xf32>
    %192 = arith.mulf %190, %191 : vector<8x8xf32>
    %cst_62 = arith.constant -1.000000e+09 : f32
    %193 = vector.shape_cast %144 : vector<1x8xi1> to vector<1x8xi1>
    %194 = vector.broadcast %193 : vector<1x8xi1> to vector<8x8xi1>
    %195 = vector.broadcast %cst_62 : f32 to vector<8x8xf32>
    %196 = arith.select %194, %192, %195 : vector<8x8xi1>, vector<8x8xf32>
    %cst_63 = arith.constant dense<0xFF800000> : vector<8xf32>
    %197 = vector.multi_reduction <maximumf>, %196, %cst_63 [1] : vector<8x8xf32> to vector<8xf32>
    %198 = vector.shape_cast %197 : vector<8xf32> to vector<8x1xf32>
    %199 = vector.broadcast %198 : vector<8x1xf32> to vector<8x8xf32>
    %200 = arith.subf %196, %199 : vector<8x8xf32>
    %201 = math.exp %200 : vector<8x8xf32>
    %cst_64 = arith.constant dense<0.000000e+00> : vector<8xf32>
    %202 = vector.multi_reduction <add>, %201, %cst_64 [1] : vector<8x8xf32> to vector<8xf32>
    %203 = vector.shape_cast %202 : vector<8xf32> to vector<8x1xf32>
    %204 = tpu.reciprocal %203 {approx = true} : vector<8x1xf32> -> vector<8x1xf32>
    %205 = vector.broadcast %204 : vector<8x1xf32> to vector<8x8xf32>
    %206 = arith.mulf %201, %205 : vector<8x8xf32>
    %cst_65 = arith.constant dense<0.000000e+00> : vector<8x16xf32>
    %207 = tpu.matmul %206, %189, %cst_65 {dimension_numbers = #tpu.dot_dimension_numbers<[1], [0], [0], [1], [0, 0, 1, 1], [], []>} : vector<8x8xf32>, vector<8x16xf32>, vector<8x16xf32> -> vector<8x16xf32>
    %208 = vector.extract_strided_slice %53 {offsets = [8, 48], sizes = [8, 16], strides = [1, 1]} : vector<16x192xf32> to vector<8x16xf32>
    %209 = vector.extract_strided_slice %53 {offsets = [8, 112], sizes = [8, 16], strides = [1, 1]} : vector<16x192xf32> to vector<8x16xf32>
    %210 = vector.extract_strided_slice %53 {offsets = [8, 176], sizes = [8, 16], strides = [1, 1]} : vector<16x192xf32> to vector<8x16xf32>
    %cst_66 = arith.constant dense<0.000000e+00> : vector<8x8xf32>
    %211 = tpu.matmul %208, %209, %cst_66 {dimension_numbers = #tpu.dot_dimension_numbers<[1], [1], [0], [0], [0, 0, 1, 0], [], []>} : vector<8x16xf32>, vector<8x16xf32>, vector<8x8xf32> -> vector<8x8xf32>
    %cst_67 = arith.constant 2.500000e-01 : f32
    %212 = vector.broadcast %cst_67 : f32 to vector<8x8xf32>
    %213 = arith.mulf %211, %212 : vector<8x8xf32>
    %cst_68 = arith.constant -1.000000e+09 : f32
    %214 = vector.shape_cast %144 : vector<1x8xi1> to vector<1x8xi1>
    %215 = vector.broadcast %214 : vector<1x8xi1> to vector<8x8xi1>
    %216 = vector.broadcast %cst_68 : f32 to vector<8x8xf32>
    %217 = arith.select %215, %213, %216 : vector<8x8xi1>, vector<8x8xf32>
    %cst_69 = arith.constant dense<0xFF800000> : vector<8xf32>
    %218 = vector.multi_reduction <maximumf>, %217, %cst_69 [1] : vector<8x8xf32> to vector<8xf32>
    %219 = vector.shape_cast %218 : vector<8xf32> to vector<8x1xf32>
    %220 = vector.broadcast %219 : vector<8x1xf32> to vector<8x8xf32>
    %221 = arith.subf %217, %220 : vector<8x8xf32>
    %222 = math.exp %221 : vector<8x8xf32>
    %cst_70 = arith.constant dense<0.000000e+00> : vector<8xf32>
    %223 = vector.multi_reduction <add>, %222, %cst_70 [1] : vector<8x8xf32> to vector<8xf32>
    %224 = vector.shape_cast %223 : vector<8xf32> to vector<8x1xf32>
    %225 = tpu.reciprocal %224 {approx = true} : vector<8x1xf32> -> vector<8x1xf32>
    %226 = vector.broadcast %225 : vector<8x1xf32> to vector<8x8xf32>
    %227 = arith.mulf %222, %226 : vector<8x8xf32>
    %cst_71 = arith.constant dense<0.000000e+00> : vector<8x16xf32>
    %228 = tpu.matmul %227, %210, %cst_71 {dimension_numbers = #tpu.dot_dimension_numbers<[1], [0], [0], [1], [0, 0, 1, 1], [], []>} : vector<8x8xf32>, vector<8x16xf32>, vector<8x16xf32> -> vector<8x16xf32>
    %229 = tpu.concatenate %165, %186, %207, %228 in 1 : vector<8x16xf32>, vector<8x16xf32>, vector<8x16xf32>, vector<8x16xf32> -> vector<8x64xf32>
    %230 = tpu.concatenate %141, %229 in 0 : vector<8x64xf32>, vector<8x64xf32> -> vector<16x64xf32>
    %c0_72 = arith.constant 0 : index
    %c0_73 = arith.constant 0 : index
    %231 = vector.load %arg7[%c0_72, %c0_73] : memref<64x64xbf16, #tpu.memory_space<vmem>>, vector<64x64xbf16>
    %232 = arith.truncf %230 : vector<16x64xf32> to vector<16x64xbf16>
    %cst_74 = arith.constant dense<0.000000e+00> : vector<16x64xf32>
    %233 = tpu.matmul %232, %231, %cst_74 {dimension_numbers = #tpu.dot_dimension_numbers<[1], [0], [0], [1], [0, 0, 1, 1], [], []>} : vector<16x64xbf16>, vector<64x64xbf16>, vector<16x64xf32> -> vector<16x64xf32>
    %c0_75 = arith.constant 0 : index
    %c0_76 = arith.constant 0 : index
    %234 = vector.load %arg8[%c0_75, %c0_76] : memref<1x64xf32, #tpu.memory_space<vmem>>, vector<1x64xf32>
    %235 = vector.broadcast %234 : vector<1x64xf32> to vector<16x64xf32>
    %236 = arith.addf %233, %235 : vector<16x64xf32>
    %237 = arith.mulf %24, %236 : vector<16x64xf32>
    %238 = arith.addf %0, %237 : vector<16x64xf32>
    %cst_77 = arith.constant dense<0.000000e+00> : vector<16xf32>
    %239 = vector.multi_reduction <add>, %238, %cst_77 [1] : vector<16x64xf32> to vector<16xf32>
    %240 = vector.shape_cast %239 : vector<16xf32> to vector<16x1xf32>
    %cst_78 = arith.constant 6.400000e+01 : f32
    %241 = vector.broadcast %cst_78 : f32 to vector<16x1xf32>
    %242 = arith.divf %240, %241 : vector<16x1xf32>
    %243 = vector.broadcast %242 : vector<16x1xf32> to vector<16x64xf32>
    %244 = arith.subf %238, %243 : vector<16x64xf32>
    %245 = arith.mulf %244, %244 : vector<16x64xf32>
    %cst_79 = arith.constant dense<0.000000e+00> : vector<16xf32>
    %246 = vector.multi_reduction <add>, %245, %cst_79 [1] : vector<16x64xf32> to vector<16xf32>
    %247 = vector.shape_cast %246 : vector<16xf32> to vector<16x1xf32>
    %cst_80 = arith.constant 6.400000e+01 : f32
    %248 = vector.broadcast %cst_80 : f32 to vector<16x1xf32>
    %249 = arith.divf %247, %248 : vector<16x1xf32>
    %cst_81 = arith.constant 9.99999997E-7 : f32
    %250 = vector.broadcast %cst_81 : f32 to vector<16x1xf32>
    %251 = arith.addf %249, %250 : vector<16x1xf32>
    %252 = math.rsqrt %251 : vector<16x1xf32>
    %253 = vector.broadcast %252 : vector<16x1xf32> to vector<16x64xf32>
    %254 = arith.mulf %244, %253 : vector<16x64xf32>
    %cst_82 = arith.constant 1.000000e+00 : f32
    %255 = vector.broadcast %cst_82 : f32 to vector<16x64xf32>
    %256 = arith.addf %255, %26 : vector<16x64xf32>
    %257 = arith.mulf %254, %256 : vector<16x64xf32>
    %258 = arith.addf %257, %25 : vector<16x64xf32>
    %c0_83 = arith.constant 0 : index
    %c0_84 = arith.constant 0 : index
    %259 = vector.load %arg9[%c0_83, %c0_84] : memref<64x128xbf16, #tpu.memory_space<vmem>>, vector<64x128xbf16>
    %260 = arith.truncf %258 : vector<16x64xf32> to vector<16x64xbf16>
    %cst_85 = arith.constant dense<0.000000e+00> : vector<16x128xf32>
    %261 = tpu.matmul %260, %259, %cst_85 {dimension_numbers = #tpu.dot_dimension_numbers<[1], [0], [0], [1], [0, 0, 1, 1], [], []>} : vector<16x64xbf16>, vector<64x128xbf16>, vector<16x128xf32> -> vector<16x128xf32>
    %c0_86 = arith.constant 0 : index
    %c0_87 = arith.constant 0 : index
    %262 = vector.load %arg10[%c0_86, %c0_87] : memref<1x128xf32, #tpu.memory_space<vmem>>, vector<1x128xf32>
    %263 = vector.broadcast %262 : vector<1x128xf32> to vector<16x128xf32>
    %264 = arith.addf %261, %263 : vector<16x128xf32>
    %265 = arith.mulf %264, %264 : vector<16x128xf32>
    %266 = arith.mulf %264, %265 : vector<16x128xf32>
    %cst_88 = arith.constant 4.471500e-02 : f32
    %267 = vector.broadcast %cst_88 : f32 to vector<16x128xf32>
    %268 = arith.mulf %267, %266 : vector<16x128xf32>
    %269 = arith.addf %264, %268 : vector<16x128xf32>
    %cst_89 = arith.constant 0.797884583 : f32
    %270 = vector.broadcast %cst_89 : f32 to vector<16x128xf32>
    %271 = arith.mulf %270, %269 : vector<16x128xf32>
    %272 = math.tanh %271 : vector<16x128xf32>
    %cst_90 = arith.constant 1.000000e+00 : f32
    %273 = vector.broadcast %cst_90 : f32 to vector<16x128xf32>
    %274 = arith.addf %273, %272 : vector<16x128xf32>
    %cst_91 = arith.constant 5.000000e-01 : f32
    %275 = vector.broadcast %cst_91 : f32 to vector<16x128xf32>
    %276 = arith.mulf %275, %274 : vector<16x128xf32>
    %277 = arith.mulf %264, %276 : vector<16x128xf32>
    %c0_92 = arith.constant 0 : index
    %c0_93 = arith.constant 0 : index
    %278 = vector.load %arg11[%c0_92, %c0_93] : memref<128x64xbf16, #tpu.memory_space<vmem>>, vector<128x64xbf16>
    %279 = arith.truncf %277 : vector<16x128xf32> to vector<16x128xbf16>
    %cst_94 = arith.constant dense<0.000000e+00> : vector<16x64xf32>
    %280 = tpu.matmul %279, %278, %cst_94 {dimension_numbers = #tpu.dot_dimension_numbers<[1], [0], [0], [1], [0, 0, 1, 1], [], []>} : vector<16x128xbf16>, vector<128x64xbf16>, vector<16x64xf32> -> vector<16x64xf32>
    %c0_95 = arith.constant 0 : index
    %c0_96 = arith.constant 0 : index
    %281 = vector.load %arg12[%c0_95, %c0_96] : memref<1x64xf32, #tpu.memory_space<vmem>>, vector<1x64xf32>
    %282 = vector.broadcast %281 : vector<1x64xf32> to vector<16x64xf32>
    %283 = arith.addf %280, %282 : vector<16x64xf32>
    %284 = arith.mulf %27, %283 : vector<16x64xf32>
    %285 = arith.addf %238, %284 : vector<16x64xf32>
    %c0_97 = arith.constant 0 : index
    %c0_98 = arith.constant 0 : index
    %286 = vector.load %arg13[%c0_97, %c0_98] : memref<16x64xf32, #tpu.memory_space<vmem>>, vector<16x64xf32>
    tpu.vector_store %arg13[%c0_97, %c0_98], %285 {strides = array<i32>} : memref<16x64xf32, #tpu.memory_space<vmem>>, vector<16x64xf32>,
    return
  }
}

</mosaic_0001>

<llo_original>
// kernel: _lambda_.5
$region0: #{_lambda_.5}
  #allocation0 [shape = 'u32[]', space=smem, size = 0x4, offset = 0x4, fixed_abs, tag = 'smem constant byte address 0x4 - core index']
  #allocation1 [shape = 'u32[144,128]{1,0:T(1,128)}', space=vmem, size = 0x12000, scoped, tag = 'internal scratch']
  %s0 = inlined_call_operand.vmem [shape: f32[16,8], index: 0, kind: input, shape index: {}]
  %s1 = inlined_call_operand.vmem [shape: f32[16,1], index: 1, kind: input, shape index: {}]
  %s2 = inlined_call_operand.vmem [shape: f32[1,16], index: 2, kind: input, shape index: {}]
  %s3 = inlined_call_operand.vmem [shape: f32[1,16], index: 3, kind: input, shape index: {}]
  %s4 = inlined_call_operand.vmem [shape: bf16[16,32], index: 4, kind: input, shape index: {}]
  %s5 = inlined_call_operand.vmem [shape: f32[1,32], index: 5, kind: input, shape index: {}, may-alias: {5,7}]
  %s6 = inlined_call_operand.vmem [shape: bf16[8,32], index: 6, kind: input, shape index: {}]
  %s7 = inlined_call_operand.vmem [shape: f32[1,32], index: 7, kind: input, shape index: {}, may-alias: {5,7}]
  %s8 = inlined_call_operand.vmem [shape: f32[16,64], index: 8, kind: output, shape index: {}]
  %s9 = sld [smem:[#allocation0]]
  $region42: #{_lambda_.5} parent=0
    _
  %s11 = ssub.s32 1, %s9
  %s12 = scalar_select 0, %s11, %s9
  // Predicated region
  $region2: #{_lambda_.5} parent=0 // pred_check
    _
  $region3: #{_lambda_.5} parent=0 // pred_check_branch
    %14 = sbr.rel (0) target = $region5
  $region4: #{_lambda_.5} parent=0 // pred_region
    _
  $region5: #{_lambda_.5} parent=0 // pred_fallthru
    _
  // Predicated region
  $region6: #{_lambda_.5} parent=0 // pred_check
    _
  $region7: #{_lambda_.5} parent=0 // pred_check_branch
    %16 = sbr.rel (0) target = $region9
  $region8: #{_lambda_.5} parent=0 // pred_region
    _
  $region9: #{_lambda_.5} parent=0 // pred_fallthru
    _
  // Predicated region
  $region10: #{_lambda_.5} parent=0 // pred_check
    _
  $region11: #{_lambda_.5} parent=0 // pred_check_branch
    %18 = sbr.rel (0) target = $region13
  $region12: #{_lambda_.5} parent=0 // pred_region
    _
  $region13: #{_lambda_.5} parent=0 // pred_fallthru
    _
  // Predicated region
  $region14: #{_lambda_.5} parent=0 // pred_check
    _
  $region15: #{_lambda_.5} parent=0 // pred_check_branch
    %20 = sbr.rel (0) target = $region17
  $region16: #{_lambda_.5} parent=0 // pred_region
    _
  $region17: #{_lambda_.5} parent=0 // pred_fallthru
    _
  // Predicated region
  $region18: #{_lambda_.5} parent=0 // pred_check
    _
  $region19: #{_lambda_.5} parent=0 // pred_check_branch
    %22 = sbr.rel (0) target = $region21
  $region20: #{_lambda_.5} parent=0 // pred_region
    _
  $region21: #{_lambda_.5} parent=0 // pred_fallthru
    _
  // Predicated region
  $region22: #{_lambda_.5} parent=0 // pred_check
    _
  $region23: #{_lambda_.5} parent=0 // pred_check_branch
    %24 = sbr.rel (0) target = $region25
  $region24: #{_lambda_.5} parent=0 // pred_region
    _
  $region25: #{_lambda_.5} parent=0 // pred_fallthru
    _
  // Predicated region
  $region26: #{_lambda_.5} parent=0 // pred_check
    _
  $region27: #{_lambda_.5} parent=0 // pred_check_branch
    %26 = sbr.rel (0) target = $region29
  $region28: #{_lambda_.5} parent=0 // pred_region
    _
  $region29: #{_lambda_.5} parent=0 // pred_fallthru
    _
  // Predicated region
  $region30: #{_lambda_.5} parent=0 // pred_check
    _
  $region31: #{_lambda_.5} parent=0 // pred_check_branch
    %28 = sbr.rel (0) target = $region33
  $region32: #{_lambda_.5} parent=0 // pred_region
    _
  $region33: #{_lambda_.5} parent=0 // pred_fallthru
    _
  %v30 = vld [vmem:[%s0] sm:$0xff]
  %v31 = vld [vmem:[%s0 + $0x8] sm:$0xff]
  %v32 = vld [vmem:[%s1] sm:$0xff]
  %v33 = vld [vmem:[%s1 + $0x8] sm:$0xff]
  %v34 = vld [vmem:[%s2] sm:$0x1]
  %v35 = vld [vmem:[%s3] sm:$0x1]
  %v36 = vand.u32 2147483647, %v35
  %v37 = vadd.f32 %v36, 1e-05
  %v38 = vrcp.pop %v37
  %v39 = vmul.f32 1.0, %v38
  %v40 = vmul.f32 %v39, 0.3989423
  %v42 = vcombine.high %v30, %v30
  %v44 = vunpack.c.l.s4 1966171168
  %v45 = vunpack.c.0.s8 %v44
  %v46 = vlaneseq
  %v47 = vshrl.u32 %v46, 7
  %v48 = vsub.s32 %v45, %v47
  %v49 = vrot.slane %v30, %v48
  %v51 = vunpack.c.l.s4 1966171168
  %v52 = vunpack.c.0.s8 %v51
  %v53 = vlaneseq
  %v54 = vshrl.u32 %v53, 7
  %v55 = vsub.s32 %v52, %v54
  %v56 = vrot.slane %v42, %v55
  %v57 = vcombine.high %v49, %v49
  %v58 = vcombine.high %v56, %v56
  %v60 = vunpack.c.l.s4 1966171168
  %v61 = vunpack.c.0.s8 %v60
  %v62 = vlaneseq
  %v63 = vshrl.u32 %v62, 7
  %v64 = vsub.s32 %v61, %v63
  %v65 = vrot.slane %v49, %v64
  %v67 = vunpack.c.l.s4 1966171168
  %v68 = vunpack.c.0.s8 %v67
  %v69 = vlaneseq
  %v70 = vshrl.u32 %v69, 7
  %v71 = vsub.s32 %v68, %v70
  %v72 = vrot.slane %v56, %v71
  %v74 = vunpack.c.l.s4 1966171168
  %v75 = vunpack.c.0.s8 %v74
  %v76 = vlaneseq
  %v77 = vshrl.u32 %v76, 7
  %v78 = vsub.s32 %v75, %v77
  %v79 = vrot.slane %v57, %v78
  %v81 = vunpack.c.l.s4 1966171168
  %v82 = vunpack.c.0.s8 %v81
  %v83 = vlaneseq
  %v84 = vshrl.u32 %v83, 7
  %v85 = vsub.s32 %v82, %v84
  %v86 = vrot.slane %v58, %v85
  %v87 = vcombine.high %v65, %v65
  %v88 = vcombine.high %v72, %v72
  %v89 = vcombine.high %v79, %v79
  %v90 = vcombine.high %v86, %v86
  %v91 = vlaneseq
  %v92 = vshrl.u32 %v91, 7
  %v93 = vsub.s32 0, %v92
  %v94 = vrot.slane %v65, %v93
  %v95 = vlaneseq
  %v96 = vshrl.u32 %v95, 7
  %v97 = vsub.s32 0, %v96
  %v98 = vrot.slane %v79, %v97
  %v99 = vlaneseq
  %v100 = vshrl.u32 %v99, 7
  %v101 = vsub.s32 0, %v100
  %v102 = vrot.slane %v87, %v101
  %v103 = vlaneseq
  %v104 = vshrl.u32 %v103, 7
  %v105 = vsub.s32 0, %v104
  %v106 = vrot.slane %v89, %v105
  %v107 = vlaneseq
  %v108 = vshrl.u32 %v107, 7
  %v109 = vsub.s32 0, %v108
  %v110 = vrot.slane %v72, %v109
  %v111 = vlaneseq
  %v112 = vshrl.u32 %v111, 7
  %v113 = vsub.s32 0, %v112
  %v114 = vrot.slane %v86, %v113
  %v115 = vlaneseq
  %v116 = vshrl.u32 %v115, 7
  %v117 = vsub.s32 0, %v116
  %v118 = vrot.slane %v88, %v117
  %v119 = vlaneseq
  %v120 = vshrl.u32 %v119, 7
  %v121 = vsub.s32 0, %v120
  %v122 = vrot.slane %v90, %v121
  %v131 = vsub.f32 %v94, %v30
  %v132 = vsub.f32 %v98, %v30
  %v133 = vsub.f32 %v102, %v30
  %v134 = vsub.f32 %v106, %v30
  %v135 = vsub.f32 %v110, %v30
  %v136 = vsub.f32 %v114, %v30
  %v137 = vsub.f32 %v118, %v30
  %v138 = vsub.f32 %v122, %v30
  %v139 = vmul.f32 %v131, %v131
  %v140 = vmul.f32 %v132, %v132
  %v141 = vmul.f32 %v133, %v133
  %v142 = vmul.f32 %v134, %v134
  %v143 = vmul.f32 %v135, %v135
  %v144 = vmul.f32 %v136, %v136
  %v145 = vmul.f32 %v137, %v137
  %v146 = vmul.f32 %v138, %v138
  %vm147 = vcmask 23552
  %v148 = vsel %vm147, %v139, 0.0
  %149 = vadd.xlane.f32.xlu0 %v148
  %v150 = vpop.xlane.xlu0 %149
  %v151 = vsel %vm147, %v140, 0.0
  %152 = vadd.xlane.f32.xlu0 %v151
  %v153 = vpop.xlane.xlu0 %152
  %v154 = vsel %vm147, %v141, 0.0
  %155 = vadd.xlane.f32.xlu0 %v154
  %v156 = vpop.xlane.xlu0 %155
  %v157 = vsel %vm147, %v142, 0.0
  %158 = vadd.xlane.f32.xlu0 %v157
  %v159 = vpop.xlane.xlu0 %158
  %v160 = vsel %vm147, %v143, 0.0
  %161 = vadd.xlane.f32.xlu0 %v160
  %v162 = vpop.xlane.xlu0 %161
  %v163 = vsel %vm147, %v144, 0.0
  %164 = vadd.xlane.f32.xlu0 %v163
  %v165 = vpop.xlane.xlu0 %164
  %v166 = vsel %vm147, %v145, 0.0
  %167 = vadd.xlane.f32.xlu0 %v166
  %v168 = vpop.xlane.xlu0 %167
  %v169 = vsel %vm147, %v146, 0.0
  %170 = vadd.xlane.f32.xlu0 %v169
  %v171 = vpop.xlane.xlu0 %170
  %v172 = vrsqrt.pop %v150
  %v173 = vmul.f32 %v150, %v172
  %vm174 = vcmp.eq.f32.partialorder %v150, inf
  %v175 = vsel %vm174, %v150, %v173
  %vm176 = vcmp.eq.f32.partialorder %v150, 0.0
  %v177 = vand.u32 %v150, 2147483648
  %v178 = vsel %vm176, %v177, %v175
  %v179 = vrsqrt.pop %v153
  %v180 = vmul.f32 %v153, %v179
  %vm181 = vcmp.eq.f32.partialorder %v153, inf
  %v182 = vsel %vm181, %v153, %v180
  %vm183 = vcmp.eq.f32.partialorder %v153, 0.0
  %v184 = vand.u32 %v153, 2147483648
  %v185 = vsel %vm183, %v184, %v182
  %v186 = vrsqrt.pop %v156
  %v187 = vmul.f32 %v156, %v186
  %vm188 = vcmp.eq.f32.partialorder %v156, inf
  %v189 = vsel %vm188, %v156, %v187
  %vm190 = vcmp.eq.f32.partialorder %v156, 0.0
  %v191 = vand.u32 %v156, 2147483648
  %v192 = vsel %vm190, %v191, %v189
  %v193 = vrsqrt.pop %v159
  %v194 = vmul.f32 %v159, %v193
  %vm195 = vcmp.eq.f32.partialorder %v159, inf
  %v196 = vsel %vm195, %v159, %v194
  %vm197 = vcmp.eq.f32.partialorder %v159, 0.0
  %v198 = vand.u32 %v159, 2147483648
  %v199 = vsel %vm197, %v198, %v196
  %v200 = vrsqrt.pop %v162
  %v201 = vmul.f32 %v162, %v200
  %vm202 = vcmp.eq.f32.partialorder %v162, inf
  %v203 = vsel %vm202, %v162, %v201
  %vm204 = vcmp.eq.f32.partialorder %v162, 0.0
  %v205 = vand.u32 %v162, 2147483648
  %v206 = vsel %vm204, %v205, %v203
  %v207 = vrsqrt.pop %v165
  %v208 = vmul.f32 %v165, %v207
  %vm209 = vcmp.eq.f32.partialorder %v165, inf
  %v210 = vsel %vm209, %v165, %v208
  %vm211 = vcmp.eq.f32.partialorder %v165, 0.0
  %v212 = vand.u32 %v165, 2147483648
  %v213 = vsel %vm211, %v212, %v210
  %v214 = vrsqrt.pop %v168
  %v215 = vmul.f32 %v168, %v214
  %vm216 = vcmp.eq.f32.partialorder %v168, inf
  %v217 = vsel %vm216, %v168, %v215
  %vm218 = vcmp.eq.f32.partialorder %v168, 0.0
  %v219 = vand.u32 %v168, 2147483648
  %v220 = vsel %vm218, %v219, %v217
  %v221 = vrsqrt.pop %v171
  %v222 = vmul.f32 %v171, %v221
  %vm223 = vcmp.eq.f32.partialorder %v171, inf
  %v224 = vsel %vm223, %v171, %v222
  %vm225 = vcmp.eq.f32.partialorder %v171, 0.0
  %v226 = vand.u32 %v171, 2147483648
  %v227 = vsel %vm225, %v226, %v224
  %228 = vxpose.xlu0.b32.start [1/16] %v32, 128
  %229 = vxpose.xlu0.b32.cont [2/16] 0.0, 128
  %230 = vxpose.xlu0.b32.cont [3/16] 0.0, 128
  %231 = vxpose.xlu0.b32.cont [4/16] 0.0, 128
  %232 = vxpose.xlu0.b32.cont [5/16] 0.0, 128
  %233 = vxpose.xlu0.b32.cont [6/16] 0.0, 128
  %234 = vxpose.xlu0.b32.cont [7/16] 0.0, 128
  %235 = vxpose.xlu0.b32.cont [8/16] 0.0, 128
  %236 = vxpose.xlu0.b32.cont [9/16] 0.0, 128
  %237 = vxpose.xlu0.b32.cont [10/16] 0.0, 128
  %238 = vxpose.xlu0.b32.cont [11/16] 0.0, 128
  %239 = vxpose.xlu0.b32.cont [12/16] 0.0, 128
  %240 = vxpose.xlu0.b32.cont [13/16] 0.0, 128
  %241 = vxpose.xlu0.b32.cont [14/16] 0.0, 128
  %242 = vxpose.xlu0.b32.cont [15/16] 0.0, 128
  %243 = vxpose.xlu0.b32.end [16/16] 0.0, 128
  %v244 = vpop.trf.xlu0
  %v245 = vpop.trf.xlu0
  %v246 = vpop.trf.xlu0
  %v247 = vpop.trf.xlu0
  %v248 = vpop.trf.xlu0
  %v249 = vpop.trf.xlu0
  %v250 = vpop.trf.xlu0
  %v251 = vpop.trf.xlu0
  %v252 = vpop.trf.xlu0
  %v253 = vpop.trf.xlu0
  %v254 = vpop.trf.xlu0
  %v255 = vpop.trf.xlu0
  %v256 = vpop.trf.xlu0
  %v257 = vpop.trf.xlu0
  %v258 = vpop.trf.xlu0
  %v259 = vpop.trf.xlu0
  %261 = vset.pattern.permute.xlu0 0
  %262 = vperm.xlu0 %261, %v32
  %v263 = vpop.permute.xlu0 %262
  %v265 = vlaneseq
  %v266 = vshrl.u32 %v265, 7
  %v267 = vsub.s32 0, %v266
  %v268 = vrot.slane %v244, %v267
  %v269 = vmul.f32 %v263, %v268
  %v271 = vlaneseq
  %v272 = vshrl.u32 %v271, 7
  %v273 = vsub.s32 0, %v272
  %v274 = vrot.slane %v34, %v273
  %v276 = vsub.f32 %v178, %v274
  %v277 = vsub.f32 %v185, %v274
  %v278 = vsub.f32 %v192, %v274
  %v279 = vsub.f32 %v199, %v274
  %v280 = vsub.f32 %v206, %v274
  %v281 = vsub.f32 %v213, %v274
  %v282 = vsub.f32 %v220, %v274
  %v283 = vsub.f32 %v227, %v274
  %v285 = vlaneseq
  %v286 = vshrl.u32 %v285, 7
  %v287 = vsub.s32 0, %v286
  %v288 = vrot.slane %v39, %v287
  %v290 = vmul.f32 %v276, %v288
  %v291 = vmul.f32 %v277, %v288
  %v292 = vmul.f32 %v278, %v288
  %v293 = vmul.f32 %v279, %v288
  %v294 = vmul.f32 %v280, %v288
  %v295 = vmul.f32 %v281, %v288
  %v296 = vmul.f32 %v282, %v288
  %v297 = vmul.f32 %v283, %v288
  %v298 = vmul.f32 %v290, -0.5
  %v299 = vmul.f32 %v291, -0.5
  %v300 = vmul.f32 %v292, -0.5
  %v301 = vmul.f32 %v293, -0.5
  %v302 = vmul.f32 %v294, -0.5
  %v303 = vmul.f32 %v295, -0.5
  %v304 = vmul.f32 %v296, -0.5
  %v305 = vmul.f32 %v297, -0.5
  %v306 = vmul.f32 %v298, %v290
  %v307 = vmul.f32 %v299, %v291
  %v308 = vmul.f32 %v300, %v292
  %v309 = vmul.f32 %v301, %v293
  %v310 = vmul.f32 %v302, %v294
  %v311 = vmul.f32 %v303, %v295
  %v312 = vmul.f32 %v304, %v296
  %v313 = vmul.f32 %v305, %v297
  %v314 = vmul.f32 %v306, 1.442695
  %v315 = vpow.pop %v314
  %v316 = vmul.f32 %v307, 1.442695
  %v317 = vpow.pop %v316
  %v318 = vmul.f32 %v308, 1.442695
  %v319 = vpow.pop %v318
  %v320 = vmul.f32 %v309, 1.442695
  %v321 = vpow.pop %v320
  %v322 = vmul.f32 %v310, 1.442695
  %v323 = vpow.pop %v322
  %v324 = vmul.f32 %v311, 1.442695
  %v325 = vpow.pop %v324
  %v326 = vmul.f32 %v312, 1.442695
  %v327 = vpow.pop %v326
  %v328 = vmul.f32 %v313, 1.442695
  %v329 = vpow.pop %v328
  %v331 = vlaneseq
  %v332 = vshrl.u32 %v331, 7
  %v333 = vsub.s32 0, %v332
  %v334 = vrot.slane %v40, %v333
  %v336 = vmul.f32 %v315, %v334
  %v337 = vmul.f32 %v317, %v334
  %v338 = vmul.f32 %v319, %v334
  %v339 = vmul.f32 %v321, %v334
  %v340 = vmul.f32 %v323, %v334
  %v341 = vmul.f32 %v325, %v334
  %v342 = vmul.f32 %v327, %v334
  %v343 = vmul.f32 %v329, %v334
  %v344 = vlaneseq
  %v345 = vshrl.u32 %v344, 7
  %v346 = vsub.s32 0, %v345
  %v347 = vrot.slane %v269, %v346
  %349 = vbcast.lane.b32.xlu0 %v347, 256
  %v350 = vpop.permute.xlu0 %349
  %v351 = vlaneseq
  %v352 = vshrl.u32 %v351, 7
  %v353 = vsub.s32 1, %v352
  %v354 = vrot.slane %v269, %v353
  %356 = vbcast.lane.b32.xlu0 %v354, 256
  %v357 = vpop.permute.xlu0 %356
  %v358 = vlaneseq
  %v359 = vshrl.u32 %v358, 7
  %v360 = vsub.s32 2, %v359
  %v361 = vrot.slane %v269, %v360
  %363 = vbcast.lane.b32.xlu0 %v361, 256
  %v364 = vpop.permute.xlu0 %363
  %v365 = vlaneseq
  %v366 = vshrl.u32 %v365, 7
  %v367 = vsub.s32 3, %v366
  %v368 = vrot.slane %v269, %v367
  %370 = vbcast.lane.b32.xlu0 %v368, 256
  %v371 = vpop.permute.xlu0 %370
  %v372 = vlaneseq
  %v373 = vshrl.u32 %v372, 7
  %v374 = vsub.s32 4, %v373
  %v375 = vrot.slane %v269, %v374
  %377 = vbcast.lane.b32.xlu0 %v375, 256
  %v378 = vpop.permute.xlu0 %377
  %v379 = vlaneseq
  %v380 = vshrl.u32 %v379, 7
  %v381 = vsub.s32 5, %v380
  %v382 = vrot.slane %v269, %v381
  %384 = vbcast.lane.b32.xlu0 %v382, 256
  %v385 = vpop.permute.xlu0 %384
  %v386 = vlaneseq
  %v387 = vshrl.u32 %v386, 7
  %v388 = vsub.s32 6, %v387
  %v389 = vrot.slane %v269, %v388
  %391 = vbcast.lane.b32.xlu0 %v389, 256
  %v392 = vpop.permute.xlu0 %391
  %v393 = vlaneseq
  %v394 = vshrl.u32 %v393, 7
  %v395 = vsub.s32 7, %v394
  %v396 = vrot.slane %v269, %v395
  %398 = vbcast.lane.b32.xlu0 %v396, 256
  %v399 = vpop.permute.xlu0 %398
  %v400 = vmul.f32 %v336, %v350
  %v401 = vmul.f32 %v337, %v357
  %v402 = vmul.f32 %v338, %v364
  %v403 = vmul.f32 %v339, %v371
  %v404 = vmul.f32 %v340, %v378
  %v405 = vmul.f32 %v341, %v385
  %v406 = vmul.f32 %v342, %v392
  %v407 = vmul.f32 %v343, %v399
  %vm408 = vcmask 130048
  %v409 = vsel %vm408, %v400, 0.0
  %v410 = vrot.slane %v409, 4
  %v411 = vadd.f32 %v409, %v410
  %v412 = vrot.slane %v411, 2
  %v413 = vadd.f32 %v411, %v412
  %v414 = vrot.slane %v413, 1
  %v415 = vadd.f32 %v413, %v414
  %v416 = vsel %vm408, %v401, 0.0
  %v417 = vrot.slane %v416, 4
  %v418 = vadd.f32 %v416, %v417
  %v419 = vrot.slane %v418, 2
  %v420 = vadd.f32 %v418, %v419
  %v421 = vrot.slane %v420, 1
  %v422 = vadd.f32 %v420, %v421
  %v423 = vsel %vm408, %v402, 0.0
  %v424 = vrot.slane %v423, 4
  %v425 = vadd.f32 %v423, %v424
  %v426 = vrot.slane %v425, 2
  %v427 = vadd.f32 %v425, %v426
  %v428 = vrot.slane %v427, 1
  %v429 = vadd.f32 %v427, %v428
  %v430 = vsel %vm408, %v403, 0.0
  %v431 = vrot.slane %v430, 4
  %v432 = vadd.f32 %v430, %v431
  %v433 = vrot.slane %v432, 2
  %v434 = vadd.f32 %v432, %v433
  %v435 = vrot.slane %v434, 1
  %v436 = vadd.f32 %v434, %v435
  %v437 = vsel %vm408, %v404, 0.0
  %v438 = vrot.slane %v437, 4
  %v439 = vadd.f32 %v437, %v438
  %v440 = vrot.slane %v439, 2
  %v441 = vadd.f32 %v439, %v440
  %v442 = vrot.slane %v441, 1
  %v443 = vadd.f32 %v441, %v442
  %v444 = vsel %vm408, %v405, 0.0
  %v445 = vrot.slane %v444, 4
  %v446 = vadd.f32 %v444, %v445
  %v447 = vrot.slane %v446, 2
  %v448 = vadd.f32 %v446, %v447
  %v449 = vrot.slane %v448, 1
  %v450 = vadd.f32 %v448, %v449
  %v451 = vsel %vm408, %v406, 0.0
  %v452 = vrot.slane %v451, 4
  %v453 = vadd.f32 %v451, %v452
  %v454 = vrot.slane %v453, 2
  %v455 = vadd.f32 %v453, %v454
  %v456 = vrot.slane %v455, 1
  %v457 = vadd.f32 %v455, %v456
  %v458 = vsel %vm408, %v407, 0.0
  %v459 = vrot.slane %v458, 4
  %v460 = vadd.f32 %v458, %v459
  %v461 = vrot.slane %v460, 2
  %v462 = vadd.f32 %v460, %v461
  %v463 = vrot.slane %v462, 1
  %v464 = vadd.f32 %v462, %v463
  %vm465 = vcmask 7168
  %v466 = vsel %vm465, %v32, 0.0
  %v467 = vrot.slane %v466, 4
  %v468 = vadd.f32 %v466, %v467
  %v469 = vrot.slane %v468, 2
  %v470 = vadd.f32 %v468, %v469
  %v471 = vrot.slane %v470, 1
  %v472 = vadd.f32 %v470, %v471
  %v473 = vrcp.pop %v472
  %v475 = vcombine.high %v31, %v31
  %v477 = vunpack.c.l.s4 1966171168
  %v478 = vunpack.c.0.s8 %v477
  %v479 = vlaneseq
  %v480 = vshrl.u32 %v479, 7
  %v481 = vsub.s32 %v478, %v480
  %v482 = vrot.slane %v31, %v481
  %v484 = vunpack.c.l.s4 1966171168
  %v485 = vunpack.c.0.s8 %v484
  %v486 = vlaneseq
  %v487 = vshrl.u32 %v486, 7
  %v488 = vsub.s32 %v485, %v487
  %v489 = vrot.slane %v475, %v488
  %v490 = vcombine.high %v482, %v482
  %v491 = vcombine.high %v489, %v489
  %v493 = vunpack.c.l.s4 1966171168
  %v494 = vunpack.c.0.s8 %v493
  %v495 = vlaneseq
  %v496 = vshrl.u32 %v495, 7
  %v497 = vsub.s32 %v494, %v496
  %v498 = vrot.slane %v482, %v497
  %v500 = vunpack.c.l.s4 1966171168
  %v501 = vunpack.c.0.s8 %v500
  %v502 = vlaneseq
  %v503 = vshrl.u32 %v502, 7
  %v504 = vsub.s32 %v501, %v503
  %v505 = vrot.slane %v489, %v504
  %v507 = vunpack.c.l.s4 1966171168
  %v508 = vunpack.c.0.s8 %v507
  %v509 = vlaneseq
  %v510 = vshrl.u32 %v509, 7
  %v511 = vsub.s32 %v508, %v510
  %v512 = vrot.slane %v490, %v511
  %v514 = vunpack.c.l.s4 1966171168
  %v515 = vunpack.c.0.s8 %v514
  %v516 = vlaneseq
  %v517 = vshrl.u32 %v516, 7
  %v518 = vsub.s32 %v515, %v517
  %v519 = vrot.slane %v491, %v518
  %v520 = vcombine.high %v498, %v498
  %v521 = vcombine.high %v505, %v505
  %v522 = vcombine.high %v512, %v512
  %v523 = vcombine.high %v519, %v519
  %v524 = vlaneseq
  %v525 = vshrl.u32 %v524, 7
  %v526 = vsub.s32 0, %v525
  %v527 = vrot.slane %v498, %v526
  %v528 = vlaneseq
  %v529 = vshrl.u32 %v528, 7
  %v530 = vsub.s32 0, %v529
  %v531 = vrot.slane %v512, %v530
  %v532 = vlaneseq
  %v533 = vshrl.u32 %v532, 7
  %v534 = vsub.s32 0, %v533
  %v535 = vrot.slane %v520, %v534
  %v536 = vlaneseq
  %v537 = vshrl.u32 %v536, 7
  %v538 = vsub.s32 0, %v537
  %v539 = vrot.slane %v522, %v538
  %v540 = vlaneseq
  %v541 = vshrl.u32 %v540, 7
  %v542 = vsub.s32 0, %v541
  %v543 = vrot.slane %v505, %v542
  %v544 = vlaneseq
  %v545 = vshrl.u32 %v544, 7
  %v546 = vsub.s32 0, %v545
  %v547 = vrot.slane %v519, %v546
  %v548 = vlaneseq
  %v549 = vshrl.u32 %v548, 7
  %v550 = vsub.s32 0, %v549
  %v551 = vrot.slane %v521, %v550
  %v552 = vlaneseq
  %v553 = vshrl.u32 %v552, 7
  %v554 = vsub.s32 0, %v553
  %v555 = vrot.slane %v523, %v554
  %v564 = vsub.f32 %v527, %v31
  %v565 = vsub.f32 %v531, %v31
  %v566 = vsub.f32 %v535, %v31
  %v567 = vsub.f32 %v539, %v31
  %v568 = vsub.f32 %v543, %v31
  %v569 = vsub.f32 %v547, %v31
  %v570 = vsub.f32 %v551, %v31
  %v571 = vsub.f32 %v555, %v31
  %v572 = vmul.f32 %v564, %v564
  %v573 = vmul.f32 %v565, %v565
  %v574 = vmul.f32 %v566, %v566
  %v575 = vmul.f32 %v567, %v567
  %v576 = vmul.f32 %v568, %v568
  %v577 = vmul.f32 %v569, %v569
  %v578 = vmul.f32 %v570, %v570
  %v579 = vmul.f32 %v571, %v571
  %v580 = vsel %vm147, %v572, 0.0
  %581 = vadd.xlane.f32.xlu0 %v580
  %v582 = vpop.xlane.xlu0 %581
  %v583 = vsel %vm147, %v573, 0.0
  %584 = vadd.xlane.f32.xlu0 %v583
  %v585 = vpop.xlane.xlu0 %584
  %v586 = vsel %vm147, %v574, 0.0
  %587 = vadd.xlane.f32.xlu0 %v586
  %v588 = vpop.xlane.xlu0 %587
  %v589 = vsel %vm147, %v575, 0.0
  %590 = vadd.xlane.f32.xlu0 %v589
  %v591 = vpop.xlane.xlu0 %590
  %v592 = vsel %vm147, %v576, 0.0
  %593 = vadd.xlane.f32.xlu0 %v592
  %v594 = vpop.xlane.xlu0 %593
  %v595 = vsel %vm147, %v577, 0.0
  %596 = vadd.xlane.f32.xlu0 %v595
  %v597 = vpop.xlane.xlu0 %596
  %v598 = vsel %vm147, %v578, 0.0
  %599 = vadd.xlane.f32.xlu0 %v598
  %v600 = vpop.xlane.xlu0 %599
  %v601 = vsel %vm147, %v579, 0.0
  %602 = vadd.xlane.f32.xlu0 %v601
  %v603 = vpop.xlane.xlu0 %602
  %v604 = vrsqrt.pop %v582
  %v605 = vmul.f32 %v582, %v604
  %vm606 = vcmp.eq.f32.partialorder %v582, inf
  %v607 = vsel %vm606, %v582, %v605
  %vm608 = vcmp.eq.f32.partialorder %v582, 0.0
  %v609 = vand.u32 %v582, 2147483648
  %v610 = vsel %vm608, %v609, %v607
  %v611 = vrsqrt.pop %v585
  %v612 = vmul.f32 %v585, %v611
  %vm613 = vcmp.eq.f32.partialorder %v585, inf
  %v614 = vsel %vm613, %v585, %v612
  %vm615 = vcmp.eq.f32.partialorder %v585, 0.0
  %v616 = vand.u32 %v585, 2147483648
  %v617 = vsel %vm615, %v616, %v614
  %v618 = vrsqrt.pop %v588
  %v619 = vmul.f32 %v588, %v618
  %vm620 = vcmp.eq.f32.partialorder %v588, inf
  %v621 = vsel %vm620, %v588, %v619
  %vm622 = vcmp.eq.f32.partialorder %v588, 0.0
  %v623 = vand.u32 %v588, 2147483648
  %v624 = vsel %vm622, %v623, %v621
  %v625 = vrsqrt.pop %v591
  %v626 = vmul.f32 %v591, %v625
  %vm627 = vcmp.eq.f32.partialorder %v591, inf
  %v628 = vsel %vm627, %v591, %v626
  %vm629 = vcmp.eq.f32.partialorder %v591, 0.0
  %v630 = vand.u32 %v591, 2147483648
  %v631 = vsel %vm629, %v630, %v628
  %v632 = vrsqrt.pop %v594
  %v633 = vmul.f32 %v594, %v632
  %vm634 = vcmp.eq.f32.partialorder %v594, inf
  %v635 = vsel %vm634, %v594, %v633
  %vm636 = vcmp.eq.f32.partialorder %v594, 0.0
  %v637 = vand.u32 %v594, 2147483648
  %v638 = vsel %vm636, %v637, %v635
  %v639 = vrsqrt.pop %v597
  %v640 = vmul.f32 %v597, %v639
  %vm641 = vcmp.eq.f32.partialorder %v597, inf
  %v642 = vsel %vm641, %v597, %v640
  %vm643 = vcmp.eq.f32.partialorder %v597, 0.0
  %v644 = vand.u32 %v597, 2147483648
  %v645 = vsel %vm643, %v644, %v642
  %v646 = vrsqrt.pop %v600
  %v647 = vmul.f32 %v600, %v646
  %vm648 = vcmp.eq.f32.partialorder %v600, inf
  %v649 = vsel %vm648, %v600, %v647
  %vm650 = vcmp.eq.f32.partialorder %v600, 0.0
  %v651 = vand.u32 %v600, 2147483648
  %v652 = vsel %vm650, %v651, %v649
  %v653 = vrsqrt.pop %v603
  %v654 = vmul.f32 %v603, %v653
  %vm655 = vcmp.eq.f32.partialorder %v603, inf
  %v656 = vsel %vm655, %v603, %v654
  %vm657 = vcmp.eq.f32.partialorder %v603, 0.0
  %v658 = vand.u32 %v603, 2147483648
  %v659 = vsel %vm657, %v658, %v656
  %660 = vxpose.xlu0.b32.start [1/16] %v33, 128
  %661 = vxpose.xlu0.b32.cont [2/16] 0.0, 128
  %662 = vxpose.xlu0.b32.cont [3/16] 0.0, 128
  %663 = vxpose.xlu0.b32.cont [4/16] 0.0, 128
  %664 = vxpose.xlu0.b32.cont [5/16] 0.0, 128
  %665 = vxpose.xlu0.b32.cont [6/16] 0.0, 128
  %666 = vxpose.xlu0.b32.cont [7/16] 0.0, 128
  %667 = vxpose.xlu0.b32.cont [8/16] 0.0, 128
  %668 = vxpose.xlu0.b32.cont [9/16] 0.0, 128
  %669 = vxpose.xlu0.b32.cont [10/16] 0.0, 128
  %670 = vxpose.xlu0.b32.cont [11/16] 0.0, 128
  %671 = vxpose.xlu0.b32.cont [12/16] 0.0, 128
  %672 = vxpose.xlu0.b32.cont [13/16] 0.0, 128
  %673 = vxpose.xlu0.b32.cont [14/16] 0.0, 128
  %674 = vxpose.xlu0.b32.cont [15/16] 0.0, 128
  %675 = vxpose.xlu0.b32.end [16/16] 0.0, 128
  %v676 = vpop.trf.xlu0
  %v677 = vpop.trf.xlu0
  %v678 = vpop.trf.xlu0
  %v679 = vpop.trf.xlu0
  %v680 = vpop.trf.xlu0
  %v681 = vpop.trf.xlu0
  %v682 = vpop.trf.xlu0
  %v683 = vpop.trf.xlu0
  %v684 = vpop.trf.xlu0
  %v685 = vpop.trf.xlu0
  %v686 = vpop.trf.xlu0
  %v687 = vpop.trf.xlu0
  %v688 = vpop.trf.xlu0
  %v689 = vpop.trf.xlu0
  %v690 = vpop.trf.xlu0
  %v691 = vpop.trf.xlu0
  %693 = vset.pattern.permute.xlu0 0
  %694 = vperm.xlu0 %693, %v33
  %v695 = vpop.permute.xlu0 %694
  %v697 = vlaneseq
  %v698 = vshrl.u32 %v697, 7
  %v699 = vsub.s32 0, %v698
  %v700 = vrot.slane %v676, %v699
  %v701 = vmul.f32 %v695, %v700
  %v702 = vsub.f32 %v610, %v274
  %v703 = vsub.f32 %v617, %v274
  %v704 = vsub.f32 %v624, %v274
  %v705 = vsub.f32 %v631, %v274
  %v706 = vsub.f32 %v638, %v274
  %v707 = vsub.f32 %v645, %v274
  %v708 = vsub.f32 %v652, %v274
  %v709 = vsub.f32 %v659, %v274
  %v710 = vmul.f32 %v702, %v288
  %v711 = vmul.f32 %v703, %v288
  %v712 = vmul.f32 %v704, %v288
  %v713 = vmul.f32 %v705, %v288
  %v714 = vmul.f32 %v706, %v288
  %v715 = vmul.f32 %v707, %v288
  %v716 = vmul.f32 %v708, %v288
  %v717 = vmul.f32 %v709, %v288
  %v718 = vmul.f32 %v710, -0.5
  %v719 = vmul.f32 %v711, -0.5
  %v720 = vmul.f32 %v712, -0.5
  %v721 = vmul.f32 %v713, -0.5
  %v722 = vmul.f32 %v714, -0.5
  %v723 = vmul.f32 %v715, -0.5
  %v724 = vmul.f32 %v716, -0.5
  %v725 = vmul.f32 %v717, -0.5
  %v726 = vmul.f32 %v718, %v710
  %v727 = vmul.f32 %v719, %v711
  %v728 = vmul.f32 %v720, %v712
  %v729 = vmul.f32 %v721, %v713
  %v730 = vmul.f32 %v722, %v714
  %v731 = vmul.f32 %v723, %v715
  %v732 = vmul.f32 %v724, %v716
  %v733 = vmul.f32 %v725, %v717
  %v734 = vmul.f32 %v726, 1.442695
  %v735 = vpow.pop %v734
  %v736 = vmul.f32 %v727, 1.442695
  %v737 = vpow.pop %v736
  %v738 = vmul.f32 %v728, 1.442695
  %v739 = vpow.pop %v738
  %v740 = vmul.f32 %v729, 1.442695
  %v741 = vpow.pop %v740
  %v742 = vmul.f32 %v730, 1.442695
  %v743 = vpow.pop %v742
  %v744 = vmul.f32 %v731, 1.442695
  %v745 = vpow.pop %v744
  %v746 = vmul.f32 %v732, 1.442695
  %v747 = vpow.pop %v746
  %v748 = vmul.f32 %v733, 1.442695
  %v749 = vpow.pop %v748
  %v750 = vmul.f32 %v735, %v334
  %v751 = vmul.f32 %v737, %v334
  %v752 = vmul.f32 %v739, %v334
  %v753 = vmul.f32 %v741, %v334
  %v754 = vmul.f32 %v743, %v334
  %v755 = vmul.f32 %v745, %v334
  %v756 = vmul.f32 %v747, %v334
  %v757 = vmul.f32 %v749, %v334
  %v758 = vlaneseq
  %v759 = vshrl.u32 %v758, 7
  %v760 = vsub.s32 0, %v759
  %v761 = vrot.slane %v701, %v760
  %763 = vbcast.lane.b32.xlu0 %v761, 256
  %v764 = vpop.permute.xlu0 %763
  %v765 = vlaneseq
  %v766 = vshrl.u32 %v765, 7
  %v767 = vsub.s32 1, %v766
  %v768 = vrot.slane %v701, %v767
  %770 = vbcast.lane.b32.xlu0 %v768, 256
  %v771 = vpop.permute.xlu0 %770
  %v772 = vlaneseq
  %v773 = vshrl.u32 %v772, 7
  %v774 = vsub.s32 2, %v773
  %v775 = vrot.slane %v701, %v774
  %777 = vbcast.lane.b32.xlu0 %v775, 256
  %v778 = vpop.permute.xlu0 %777
  %v779 = vlaneseq
  %v780 = vshrl.u32 %v779, 7
  %v781 = vsub.s32 3, %v780
  %v782 = vrot.slane %v701, %v781
  %784 = vbcast.lane.b32.xlu0 %v782, 256
  %v785 = vpop.permute.xlu0 %784
  %v786 = vlaneseq
  %v787 = vshrl.u32 %v786, 7
  %v788 = vsub.s32 4, %v787
  %v789 = vrot.slane %v701, %v788
  %791 = vbcast.lane.b32.xlu0 %v789, 256
  %v792 = vpop.permute.xlu0 %791
  %v793 = vlaneseq
  %v794 = vshrl.u32 %v793, 7
  %v795 = vsub.s32 5, %v794
  %v796 = vrot.slane %v701, %v795
  %798 = vbcast.lane.b32.xlu0 %v796, 256
  %v799 = vpop.permute.xlu0 %798
  %v800 = vlaneseq
  %v801 = vshrl.u32 %v800, 7
  %v802 = vsub.s32 6, %v801
  %v803 = vrot.slane %v701, %v802
  %805 = vbcast.lane.b32.xlu0 %v803, 256
  %v806 = vpop.permute.xlu0 %805
  %v807 = vlaneseq
  %v808 = vshrl.u32 %v807, 7
  %v809 = vsub.s32 7, %v808
  %v810 = vrot.slane %v701, %v809
  %812 = vbcast.lane.b32.xlu0 %v810, 256
  %v813 = vpop.permute.xlu0 %812
  %v814 = vmul.f32 %v750, %v764
  %v815 = vmul.f32 %v751, %v771
  %v816 = vmul.f32 %v752, %v778
  %v817 = vmul.f32 %v753, %v785
  %v818 = vmul.f32 %v754, %v792
  %v819 = vmul.f32 %v755, %v799
  %v820 = vmul.f32 %v756, %v806
  %v821 = vmul.f32 %v757, %v813
  %v822 = vsel %vm408, %v814, 0.0
  %v823 = vrot.slane %v822, 4
  %v824 = vadd.f32 %v822, %v823
  %v825 = vrot.slane %v824, 2
  %v826 = vadd.f32 %v824, %v825
  %v827 = vrot.slane %v826, 1
  %v828 = vadd.f32 %v826, %v827
  %v829 = vsel %vm408, %v815, 0.0
  %v830 = vrot.slane %v829, 4
  %v831 = vadd.f32 %v829, %v830
  %v832 = vrot.slane %v831, 2
  %v833 = vadd.f32 %v831, %v832
  %v834 = vrot.slane %v833, 1
  %v835 = vadd.f32 %v833, %v834
  %v836 = vsel %vm408, %v816, 0.0
  %v837 = vrot.slane %v836, 4
  %v838 = vadd.f32 %v836, %v837
  %v839 = vrot.slane %v838, 2
  %v840 = vadd.f32 %v838, %v839
  %v841 = vrot.slane %v840, 1
  %v842 = vadd.f32 %v840, %v841
  %v843 = vsel %vm408, %v817, 0.0
  %v844 = vrot.slane %v843, 4
  %v845 = vadd.f32 %v843, %v844
  %v846 = vrot.slane %v845, 2
  %v847 = vadd.f32 %v845, %v846
  %v848 = vrot.slane %v847, 1
  %v849 = vadd.f32 %v847, %v848
  %v850 = vsel %vm408, %v818, 0.0
  %v851 = vrot.slane %v850, 4
  %v852 = vadd.f32 %v850, %v851
  %v853 = vrot.slane %v852, 2
  %v854 = vadd.f32 %v852, %v853
  %v855 = vrot.slane %v854, 1
  %v856 = vadd.f32 %v854, %v855
  %v857 = vsel %vm408, %v819, 0.0
  %v858 = vrot.slane %v857, 4
  %v859 = vadd.f32 %v857, %v858
  %v860 = vrot.slane %v859, 2
  %v861 = vadd.f32 %v859, %v860
  %v862 = vrot.slane %v861, 1
  %v863 = vadd.f32 %v861, %v862
  %v864 = vsel %vm408, %v820, 0.0
  %v865 = vrot.slane %v864, 4
  %v866 = vadd.f32 %v864, %v865
  %v867 = vrot.slane %v866, 2
  %v868 = vadd.f32 %v866, %v867
  %v869 = vrot.slane %v868, 1
  %v870 = vadd.f32 %v868, %v869
  %v871 = vsel %vm408, %v821, 0.0
  %v872 = vrot.slane %v871, 4
  %v873 = vadd.f32 %v871, %v872
  %v874 = vrot.slane %v873, 2
  %v875 = vadd.f32 %v873, %v874
  %v876 = vrot.slane %v875, 1
  %v877 = vadd.f32 %v875, %v876
  %v878 = vsel %vm465, %v33, 0.0
  %v879 = vrot.slane %v878, 4
  %v880 = vadd.f32 %v878, %v879
  %v881 = vrot.slane %v880, 2
  %v882 = vadd.f32 %v880, %v881
  %v883 = vrot.slane %v882, 1
  %v884 = vadd.f32 %v882, %v883
  %v885 = vrcp.pop %v884
  %vm894 = vcmask 1041409
  %v895 = vsel %vm894, %v422, %v415
  %vm896 = vcmask 1042434
  %v897 = vsel %vm896, %v429, %v895
  %vm898 = vcmask 1043459
  %v899 = vsel %vm898, %v436, %v897
  %vm900 = vcmask 1044484
  %v901 = vsel %vm900, %v443, %v899
  %vm902 = vcmask 1045509
  %v903 = vsel %vm902, %v450, %v901
  %vm904 = vcmask 1046534
  %v905 = vsel %vm904, %v457, %v903
  %vm906 = vcmask 1047559
  %v907 = vsel %vm906, %v464, %v905
  %v917 = vsel %vm894, %v835, %v828
  %v918 = vsel %vm896, %v842, %v917
  %v919 = vsel %vm898, %v849, %v918
  %v920 = vsel %vm900, %v856, %v919
  %v921 = vsel %vm902, %v863, %v920
  %v922 = vsel %vm904, %v870, %v921
  %v923 = vsel %vm906, %v877, %v922
  %v925 = vld [vmem:[%s4] sm:$0xf]
  %v926 = vld [vmem:[%s4 + $0x4] sm:$0xf]
  %v927 = vpack.c.bf16 %v923, %v907
  %v928 = vld [vmem:[%s5] sm:$0x1]
  %v929 = vmul.f32 %v928, 8.0
  %v931 = vlaneseq
  %v932 = vshrl.u32 %v931, 7
  %v933 = vsub.s32 0, %v932
  %v934 = vrot.slane %v929, %v933
  %v938 = vunpack.c.l.b16 %v925
  %v939 = vunpack.c.l.b16 %v926
  %v940 = vpack.c.b16 %v939, %v938
  %v943 = vsel %vm408, %v927, 0
  %945 = vmatprep.subr.bf16.mxu0 0
  %946 = vmatpush1.bf16.msra.mxu0 %v940
  %947 = vmatprep.subr.bf16.mxu0 0
  %948 = vmatpush1.bf16.msra.mxu0 0
  %949 = vmatprep.subr.bf16.mxu0 0
  %950 = vmatpush1.bf16.msra.mxu0 0
  %951 = vmatprep.subr.bf16.mxu0 0
  %952 = vmatpush1.bf16.msra.mxu0 0
  %953 = vmatprep.subr.bf16.mxu0 0
  %954 = vmatpush1.bf16.msra.mxu0 0
  %955 = vmatprep.subr.bf16.mxu0 0
  %956 = vmatpush1.bf16.msra.mxu0 0
  %957 = vmatprep.subr.bf16.mxu0 0
  %958 = vmatpush1.bf16.msra.mxu0 0
  %959 = vmatprep.subr.bf16.mxu0 0
  %960 = vmatpush1.bf16.msra.mxu0 0
  %961 = vmatprep.subr.bf16.mxu0 0
  %962 = vmatpush1.bf16.msra.mxu0 0
  %963 = vmatprep.subr.bf16.mxu0 0
  %964 = vmatpush1.bf16.msra.mxu0 0
  %965 = vmatprep.subr.bf16.mxu0 0
  %966 = vmatpush1.bf16.msra.mxu0 0
  %967 = vmatprep.subr.bf16.mxu0 0
  %968 = vmatpush1.bf16.msra.mxu0 0
  %969 = vmatprep.subr.bf16.mxu0 0
  %970 = vmatpush1.bf16.msra.mxu0 0
  %971 = vmatprep.subr.bf16.mxu0 0
  %972 = vmatpush1.bf16.msra.mxu0 0
  %973 = vmatprep.subr.bf16.mxu0 0
  %974 = vmatpush1.bf16.msra.mxu0 0
  %975 = vmatprep.subr.bf16.mxu0 0
  %976 = vmatpush1.bf16.msra.mxu0 0
  %977 = vmatprep.mubr.bf16.mxu0 0
  %978 = vmatmul.mubr.bf16.gmra.mrb[0].mxu0 %v943
  %v979 = vpop.f32.mrb[0].mxu0
  %v980 = vadd.f32 %v934, %v979
  %v981 = vpop.f32.mrb[0].mxu0
  %v982 = vpop.f32.mrb[0].mxu0
  %v983 = vadd.f32 %v934, %v982
  %v984 = vpop.f32.mrb[0].mxu0
  %985 = vdwg.mxu0
  %987 = vset.pattern.permute.xlu0 0
  %988 = vperm.xlu0 %987, %v473
  %v989 = vpop.permute.xlu0 %988
  %992 = vset.pattern.permute.xlu0 0
  %993 = vperm.xlu0 %992, %v885
  %v994 = vpop.permute.xlu0 %993
  %v996 = vmul.f32 %v980, %v989
  %v997 = vmul.f32 %v983, %v994
  %v998 = vld [vmem:[%s6] sm:$0xf]
  %v999 = vpack.c.bf16 %v31, %v30
  %v1000 = vld [vmem:[%s7] sm:$0x1]
  %v1002 = vlaneseq
  %v1003 = vshrl.u32 %v1002, 7
  %v1004 = vsub.s32 0, %v1003
  %v1005 = vrot.slane %v1000, %v1004
  %vm1007 = vcmask 64512
  %v1009 = vsel %vm1007, %v999, 0
  %vm1011 = vcmask 1043456
  %v1013 = vsel %vm1011, %v998, 0
  %1015 = vmatprep.subr.bf16.mxu0 0
  %1016 = vmatpush1.bf16.msra.mxu0 %v1013
  %1017 = vmatprep.subr.bf16.mxu0 0
  %1018 = vmatpush1.bf16.msra.mxu0 0
  %1019 = vmatprep.subr.bf16.mxu0 0
  %1020 = vmatpush1.bf16.msra.mxu0 0
  %1021 = vmatprep.subr.bf16.mxu0 0
  %1022 = vmatpush1.bf16.msra.mxu0 0
  %1023 = vmatprep.subr.bf16.mxu0 0
  %1024 = vmatpush1.bf16.msra.mxu0 0
  %1025 = vmatprep.subr.bf16.mxu0 0
  %1026 = vmatpush1.bf16.msra.mxu0 0
  %1027 = vmatprep.subr.bf16.mxu0 0
  %1028 = vmatpush1.bf16.msra.mxu0 0
  %1029 = vmatprep.subr.bf16.mxu0 0
  %1030 = vmatpush1.bf16.msra.mxu0 0
  %1031 = vmatprep.subr.bf16.mxu0 0
  %1032 = vmatpush1.bf16.msra.mxu0 0
  %1033 = vmatprep.subr.bf16.mxu0 0
  %1034 = vmatpush1.bf16.msra.mxu0 0
  %1035 = vmatprep.subr.bf16.mxu0 0
  %1036 = vmatpush1.bf16.msra.mxu0 0
  %1037 = vmatprep.subr.bf16.mxu0 0
  %1038 = vmatpush1.bf16.msra.mxu0 0
  %1039 = vmatprep.subr.bf16.mxu0 0
  %1040 = vmatpush1.bf16.msra.mxu0 0
  %1041 = vmatprep.subr.bf16.mxu0 0
  %1042 = vmatpush1.bf16.msra.mxu0 0
  %1043 = vmatprep.subr.bf16.mxu0 0
  %1044 = vmatpush1.bf16.msra.mxu0 0
  %1045 = vmatprep.subr.bf16.mxu0 0
  %1046 = vmatpush1.bf16.msra.mxu0 0
  %1047 = vmatprep.mubr.bf16.mxu0 0
  %1048 = vmatmul.mubr.bf16.gmra.mrb[0].mxu0 %v1009
  %v1049 = vpop.f32.mrb[0].mxu0
  %v1050 = vadd.f32 %v1005, %v1049
  %v1051 = vpop.f32.mrb[0].mxu0
  %v1052 = vpop.f32.mrb[0].mxu0
  %v1053 = vadd.f32 %v1005, %v1052
  %v1054 = vpop.f32.mrb[0].mxu0
  %1055 = vdwg.mxu0
  %1058 = vrot.lane.b32.xlu0 %v996, 32
  %v1059 = vpop.permute.xlu0 %1058
  %1060 = vrot.lane.b32.xlu0 %v997, 32
  %v1061 = vpop.permute.xlu0 %1060
  %vm1064 = vcmask 261120
  %v1065 = vsel %vm1064, %v1050, %v1059
  %v1066 = vsel %vm1064, %v1053, %v1061
  %v1067 = vmul.f32 %v1065, %v263
  %v1068 = vmul.f32 %v1066, %v695
  %vm1069 = vcmask 523264
  %1070 = vst.msk [vmem:[%s8] sm:$0xff] %vm1069, %v1067
  %1071 = vst.msk [vmem:[%s8 + $0x8] sm:$0xff] %vm1069, %v1068
  // Predicated region
  $region34: #{_lambda_.5} parent=0 // pred_check
    _
  $region35: #{_lambda_.5} parent=0 // pred_check_branch
    %1073 = sbr.rel (0) target = $region37
  $region36: #{_lambda_.5} parent=0 // pred_region
    _
  $region37: #{_lambda_.5} parent=0 // pred_fallthru
    _
  // Predicated region
  $region38: #{_lambda_.5} parent=0 // pred_check
    _
  $region39: #{_lambda_.5} parent=0 // pred_check_branch
    %1075 = sbr.rel (0) target = $region41
  $region40: #{_lambda_.5} parent=0 // pred_region
    _
  $region41: #{_lambda_.5} parent=0 // pred_fallthru
    _

// kernel: _lambda_.6
$region0: #{_lambda_.6}
  #allocation0 [shape = 'u32[]', space=smem, size = 0x4, offset = 0x4, fixed_abs, tag = 'smem constant byte address 0x4 - core index']
  #allocation1 [shape = 'u32[144,128]{1,0:T(1,128)}', space=vmem, size = 0x12000, scoped, tag = 'internal scratch']
  %s0 = inlined_call_operand.vmem [shape: f32[2,256], index: 0, kind: input, shape index: {}]
  %s1 = inlined_call_operand.vmem [shape: bf16[256,64], index: 1, kind: input, shape index: {}]
  %s2 = inlined_call_operand.vmem [shape: f32[1,64], index: 2, kind: input, shape index: {}, may-alias: {2,4}]
  %s3 = inlined_call_operand.vmem [shape: bf16[64,64], index: 3, kind: input, shape index: {}]
  %s4 = inlined_call_operand.vmem [shape: f32[1,64], index: 4, kind: input, shape index: {}, may-alias: {2,4}]
  %s5 = inlined_call_operand.vmem [shape: f32[2,64], index: 5, kind: output, shape index: {}]
  %s6 = sld [smem:[#allocation0]]
  $region30: #{_lambda_.6} parent=0
    _
  %s8 = ssub.s32 1, %s6
  %s9 = scalar_select 0, %s8, %s6
  // Predicated region
  $region2: #{_lambda_.6} parent=0 // pred_check
    _
  $region3: #{_lambda_.6} parent=0 // pred_check_branch
    %11 = sbr.rel (0) target = $region5
  $region4: #{_lambda_.6} parent=0 // pred_region
    _
  $region5: #{_lambda_.6} parent=0 // pred_fallthru
    _
  // Predicated region
  $region6: #{_lambda_.6} parent=0 // pred_check
    _
  $region7: #{_lambda_.6} parent=0 // pred_check_branch
    %13 = sbr.rel (0) target = $region9
  $region8: #{_lambda_.6} parent=0 // pred_region
    _
  $region9: #{_lambda_.6} parent=0 // pred_fallthru
    _
  // Predicated region
  $region10: #{_lambda_.6} parent=0 // pred_check
    _
  $region11: #{_lambda_.6} parent=0 // pred_check_branch
    %15 = sbr.rel (0) target = $region13
  $region12: #{_lambda_.6} parent=0 // pred_region
    _
  $region13: #{_lambda_.6} parent=0 // pred_fallthru
    _
  // Predicated region
  $region14: #{_lambda_.6} parent=0 // pred_check
    _
  $region15: #{_lambda_.6} parent=0 // pred_check_branch
    %17 = sbr.rel (0) target = $region17
  $region16: #{_lambda_.6} parent=0 // pred_region
    _
  $region17: #{_lambda_.6} parent=0 // pred_fallthru
    _
  // Predicated region
  $region18: #{_lambda_.6} parent=0 // pred_check
    _
  $region19: #{_lambda_.6} parent=0 // pred_check_branch
    %19 = sbr.rel (0) target = $region21
  $region20: #{_lambda_.6} parent=0 // pred_region
    _
  $region21: #{_lambda_.6} parent=0 // pred_fallthru
    _
  %v21 = vld [vmem:[%s0] sm:$0xf]
  %v22 = vld [vmem:[%s1] sm:$0xf]
  %v23 = vld [vmem:[%s1 + $0x4] sm:$0xf]
  %v24 = vld [vmem:[%s1 + $0x8] sm:$0xf]
  %v25 = vld [vmem:[%s1 + $0xc] sm:$0xf]
  %v26 = vld [vmem:[%s1 + $0x10] sm:$0xf]
  %v27 = vld [vmem:[%s1 + $0x14] sm:$0xf]
  %v28 = vld [vmem:[%s1 + $0x18] sm:$0xf]
  %v29 = vld [vmem:[%s1 + $0x1c] sm:$0xf]
  %v30 = vld [vmem:[%s1 + $0x20] sm:$0xf]
  %v31 = vld [vmem:[%s1 + $0x24] sm:$0xf]
  %v32 = vld [vmem:[%s1 + $0x28] sm:$0xf]
  %v33 = vld [vmem:[%s1 + $0x2c] sm:$0xf]
  %v34 = vld [vmem:[%s1 + $0x30] sm:$0xf]
  %v35 = vld [vmem:[%s1 + $0x34] sm:$0xf]
  %v36 = vld [vmem:[%s1 + $0x38] sm:$0xf]
  %v37 = vld [vmem:[%s1 + $0x3c] sm:$0xf]
  %v38 = vld [vmem:[%s1 + $0x40] sm:$0xf]
  %v39 = vld [vmem:[%s1 + $0x44] sm:$0xf]
  %v40 = vld [vmem:[%s1 + $0x48] sm:$0xf]
  %v41 = vld [vmem:[%s1 + $0x4c] sm:$0xf]
  %v42 = vld [vmem:[%s1 + $0x50] sm:$0xf]
  %v43 = vld [vmem:[%s1 + $0x54] sm:$0xf]
  %v44 = vld [vmem:[%s1 + $0x58] sm:$0xf]
  %v45 = vld [vmem:[%s1 + $0x5c] sm:$0xf]
  %v46 = vld [vmem:[%s1 + $0x60] sm:$0xf]
  %v47 = vld [vmem:[%s1 + $0x64] sm:$0xf]
  %v48 = vld [vmem:[%s1 + $0x68] sm:$0xf]
  %v49 = vld [vmem:[%s1 + $0x6c] sm:$0xf]
  %v50 = vld [vmem:[%s1 + $0x70] sm:$0xf]
  %v51 = vld [vmem:[%s1 + $0x74] sm:$0xf]
  %v52 = vld [vmem:[%s1 + $0x78] sm:$0xf]
  %v53 = vld [vmem:[%s1 + $0x7c] sm:$0xf]
  %v56 = vunpack.c.l.s4 1983009808
  %v57 = vunpack.c.0.s8 %v56
  %v58 = vlaneseq
  %v59 = vshrl.u32 %v58, 7
  %v60 = vsub.s32 %v57, %v59
  %v61 = vrot.slane %v21, %v60
  %v62 = vcombine.high %v61, %v61
  %v65 = vpack.c.bf16 %v61, %v61
  %v66 = vpack.c.bf16 %v62, %v62
  %v67 = vld [vmem:[%s2] sm:$0x1]
  %v69 = vlaneseq
  %v70 = vshrl.u32 %v69, 7
  %v71 = vsub.s32 0, %v70
  %v72 = vrot.slane %v67, %v71
  %v106 = vunpack.c.l.b16 %v22
  %v107 = vunpack.c.l.b16 %v23
  %v108 = vunpack.c.l.b16 %v24
  %v109 = vunpack.c.l.b16 %v25
  %v110 = vunpack.c.l.b16 %v26
  %v111 = vunpack.c.l.b16 %v27
  %v112 = vunpack.c.l.b16 %v28
  %v113 = vunpack.c.l.b16 %v29
  %v114 = vunpack.c.l.b16 %v30
  %v115 = vunpack.c.l.b16 %v31
  %v116 = vunpack.c.l.b16 %v32
  %v117 = vunpack.c.l.b16 %v33
  %v118 = vunpack.c.l.b16 %v34
  %v119 = vunpack.c.l.b16 %v35
  %v120 = vunpack.c.l.b16 %v36
  %v121 = vunpack.c.l.b16 %v37
  %v122 = vunpack.c.l.b16 %v38
  %v123 = vunpack.c.l.b16 %v39
  %v124 = vunpack.c.l.b16 %v40
  %v125 = vunpack.c.l.b16 %v41
  %v126 = vunpack.c.l.b16 %v42
  %v127 = vunpack.c.l.b16 %v43
  %v128 = vunpack.c.l.b16 %v44
  %v129 = vunpack.c.l.b16 %v45
  %v130 = vunpack.c.l.b16 %v46
  %v131 = vunpack.c.l.b16 %v47
  %v132 = vunpack.c.l.b16 %v48
  %v133 = vunpack.c.l.b16 %v49
  %v134 = vunpack.c.l.b16 %v50
  %v135 = vunpack.c.l.b16 %v51
  %v136 = vunpack.c.l.b16 %v52
  %v137 = vunpack.c.l.b16 %v53
  %v138 = vpack.c.b16 %v107, %v106
  %v139 = vpack.c.b16 %v109, %v108
  %v140 = vpack.c.b16 %v111, %v110
  %v141 = vpack.c.b16 %v113, %v112
  %v142 = vpack.c.b16 %v115, %v114
  %v143 = vpack.c.b16 %v117, %v116
  %v144 = vpack.c.b16 %v119, %v118
  %v145 = vpack.c.b16 %v121, %v120
  %v146 = vpack.c.b16 %v123, %v122
  %v147 = vpack.c.b16 %v125, %v124
  %v148 = vpack.c.b16 %v127, %v126
  %v149 = vpack.c.b16 %v129, %v128
  %v150 = vpack.c.b16 %v131, %v130
  %v151 = vpack.c.b16 %v133, %v132
  %v152 = vpack.c.b16 %v135, %v134
  %v153 = vpack.c.b16 %v137, %v136
  %170 = vmatprep.subr.bf16.mxu0 0
  %171 = vmatpush1.bf16.msra.mxu0 %v138
  %172 = vmatprep.subr.bf16.mxu0 0
  %173 = vmatpush1.bf16.msra.mxu0 %v139
  %174 = vmatprep.subr.bf16.mxu0 0
  %175 = vmatpush1.bf16.msra.mxu0 %v140
  %176 = vmatprep.subr.bf16.mxu0 0
  %177 = vmatpush1.bf16.msra.mxu0 %v141
  %178 = vmatprep.subr.bf16.mxu0 0
  %179 = vmatpush1.bf16.msra.mxu0 %v142
  %180 = vmatprep.subr.bf16.mxu0 0
  %181 = vmatpush1.bf16.msra.mxu0 %v143
  %182 = vmatprep.subr.bf16.mxu0 0
  %183 = vmatpush1.bf16.msra.mxu0 %v144
  %184 = vmatprep.subr.bf16.mxu0 0
  %185 = vmatpush1.bf16.msra.mxu0 %v145
  %186 = vmatprep.subr.bf16.mxu0 0
  %187 = vmatpush1.bf16.msra.mxu0 %v146
  %188 = vmatprep.subr.bf16.mxu0 0
  %189 = vmatpush1.bf16.msra.mxu0 %v147
  %190 = vmatprep.subr.bf16.mxu0 0
  %191 = vmatpush1.bf16.msra.mxu0 %v148
  %192 = vmatprep.subr.bf16.mxu0 0
  %193 = vmatpush1.bf16.msra.mxu0 %v149
  %194 = vmatprep.subr.bf16.mxu0 0
  %195 = vmatpush1.bf16.msra.mxu0 %v150
  %196 = vmatprep.subr.bf16.mxu0 0
  %197 = vmatpush1.bf16.msra.mxu0 %v151
  %198 = vmatprep.subr.bf16.mxu0 0
  %199 = vmatpush1.bf16.msra.mxu0 %v152
  %200 = vmatprep.subr.bf16.mxu0 0
  %201 = vmatpush1.bf16.msra.mxu0 %v153
  %202 = vmatprep.mubr.bf16.mxu0 %v66
  %203 = vmatmul.mubr.bf16.gmra.mrb[0].mxu0 %v65
  %v204 = vpop.f32.mrb[0].mxu0
  %v205 = vadd.f32 %v72, %v204
  %v206 = vpop.f32.mrb[0].mxu0
  %v207 = vpop.f32.mrb[0].mxu0
  %v208 = vpop.f32.mrb[0].mxu0
  %209 = vdwg.mxu0
  %v210 = vsub.f32 0.0, %v205
  %v211 = vmul.f32 %v210, 1.442695
  %v212 = vpow.pop %v211
  %v213 = vadd.f32 %v212, 1.0
  %v214 = vrcp.pop %v213
  %v215 = vmul.f32 %v205, %v214
  %v216 = vld [vmem:[%s3] sm:$0xf]
  %v217 = vld [vmem:[%s3 + $0x4] sm:$0xf]
  %v218 = vld [vmem:[%s3 + $0x8] sm:$0xf]
  %v219 = vld [vmem:[%s3 + $0xc] sm:$0xf]
  %v220 = vld [vmem:[%s3 + $0x10] sm:$0xf]
  %v221 = vld [vmem:[%s3 + $0x14] sm:$0xf]
  %v222 = vld [vmem:[%s3 + $0x18] sm:$0xf]
  %v223 = vld [vmem:[%s3 + $0x1c] sm:$0xf]
  %v224 = vpack.c.bf16 %v215, %v215
  %v225 = vld [vmem:[%s4] sm:$0x1]
  %v227 = vlaneseq
  %v228 = vshrl.u32 %v227, 7
  %v229 = vsub.s32 0, %v228
  %v230 = vrot.slane %v225, %v229
  %v240 = vunpack.c.l.b16 %v216
  %v241 = vunpack.c.l.b16 %v217
  %v242 = vunpack.c.l.b16 %v218
  %v243 = vunpack.c.l.b16 %v219
  %v244 = vunpack.c.l.b16 %v220
  %v245 = vunpack.c.l.b16 %v221
  %v246 = vunpack.c.l.b16 %v222
  %v247 = vunpack.c.l.b16 %v223
  %v248 = vpack.c.b16 %v241, %v240
  %v249 = vpack.c.b16 %v243, %v242
  %v250 = vpack.c.b16 %v245, %v244
  %v251 = vpack.c.b16 %v247, %v246
  %vm256 = vcmask 523264
  %v258 = vsel %vm256, %v224, 0
  %260 = vmatprep.subr.bf16.mxu0 0
  %261 = vmatpush1.bf16.msra.mxu0 %v248
  %262 = vmatprep.subr.bf16.mxu0 0
  %263 = vmatpush1.bf16.msra.mxu0 %v249
  %264 = vmatprep.subr.bf16.mxu0 0
  %265 = vmatpush1.bf16.msra.mxu0 %v250
  %266 = vmatprep.subr.bf16.mxu0 0
  %267 = vmatpush1.bf16.msra.mxu0 %v251
  %268 = vmatprep.subr.bf16.mxu0 0
  %269 = vmatpush1.bf16.msra.mxu0 0
  %270 = vmatprep.subr.bf16.mxu0 0
  %271 = vmatpush1.bf16.msra.mxu0 0
  %272 = vmatprep.subr.bf16.mxu0 0
  %273 = vmatpush1.bf16.msra.mxu0 0
  %274 = vmatprep.subr.bf16.mxu0 0
  %275 = vmatpush1.bf16.msra.mxu0 0
  %276 = vmatprep.subr.bf16.mxu0 0
  %277 = vmatpush1.bf16.msra.mxu0 0
  %278 = vmatprep.subr.bf16.mxu0 0
  %279 = vmatpush1.bf16.msra.mxu0 0
  %280 = vmatprep.subr.bf16.mxu0 0
  %281 = vmatpush1.bf16.msra.mxu0 0
  %282 = vmatprep.subr.bf16.mxu0 0
  %283 = vmatpush1.bf16.msra.mxu0 0
  %284 = vmatprep.subr.bf16.mxu0 0
  %285 = vmatpush1.bf16.msra.mxu0 0
  %286 = vmatprep.subr.bf16.mxu0 0
  %287 = vmatpush1.bf16.msra.mxu0 0
  %288 = vmatprep.subr.bf16.mxu0 0
  %289 = vmatpush1.bf16.msra.mxu0 0
  %290 = vmatprep.subr.bf16.mxu0 0
  %291 = vmatpush1.bf16.msra.mxu0 0
  %292 = vmatprep.mubr.bf16.mxu0 0
  %293 = vmatmul.mubr.bf16.gmra.mrb[0].mxu0 %v258
  %v294 = vpop.f32.mrb[0].mxu0
  %v295 = vadd.f32 %v230, %v294
  %v296 = vpop.f32.mrb[0].mxu0
  %v297 = vpop.f32.mrb[0].mxu0
  %v298 = vpop.f32.mrb[0].mxu0
  %299 = vdwg.mxu0
  %vm300 = vcmask 517120
  %301 = vst.msk [vmem:[%s5] sm:$0x3] %vm300, %v295
  // Predicated region
  $region22: #{_lambda_.6} parent=0 // pred_check
    _
  $region23: #{_lambda_.6} parent=0 // pred_check_branch
    %303 = sbr.rel (0) target = $region25
  $region24: #{_lambda_.6} parent=0 // pred_region
    _
  $region25: #{_lambda_.6} parent=0 // pred_fallthru
    _
  // Predicated region
  $region26: #{_lambda_.6} parent=0 // pred_check
    _
  $region27: #{_lambda_.6} parent=0 // pred_check_branch
    %305 = sbr.rel (0) target = $region29
  $region28: #{_lambda_.6} parent=0 // pred_region
    _
  $region29: #{_lambda_.6} parent=0 // pred_fallthru
    _

// kernel: _lambda_.9
$region0: #{_lambda_.9}
  #allocation0 [shape = 'u32[]', space=smem, size = 0x4, offset = 0x4, fixed_abs, tag = 'smem constant byte address 0x4 - core index']
  #allocation1 [shape = 'u32[144,128]{1,0:T(1,128)}', space=vmem, size = 0x12000, scoped, tag = 'internal scratch']
  %s0 = inlined_call_operand.vmem [shape: f32[16,64], index: 0, kind: input, shape index: {}]
  %s1 = inlined_call_operand.vmem [shape: f32[2,64], index: 1, kind: input, shape index: {}]
  %s2 = inlined_call_operand.vmem [shape: bf16[64,128], index: 2, kind: input, shape index: {}]
  %s3 = inlined_call_operand.vmem [shape: f32[1,128], index: 3, kind: input, shape index: {}]
  %s4 = inlined_call_operand.vmem [shape: bf16[64,8], index: 4, kind: input, shape index: {}]
  %s5 = inlined_call_operand.vmem [shape: f32[1,8], index: 5, kind: input, shape index: {}]
  %s6 = inlined_call_operand.vmem [shape: f32[16,8], index: 6, kind: output, shape index: {}]
  %s7 = sld [smem:[#allocation0]]
  $region34: #{_lambda_.9} parent=0
    _
  %s9 = ssub.s32 1, %s7
  %s10 = scalar_select 0, %s9, %s7
  // Predicated region
  $region2: #{_lambda_.9} parent=0 // pred_check
    _
  $region3: #{_lambda_.9} parent=0 // pred_check_branch
    %12 = sbr.rel (0) target = $region5
  $region4: #{_lambda_.9} parent=0 // pred_region
    _
  $region5: #{_lambda_.9} parent=0 // pred_fallthru
    _
  // Predicated region
  $region6: #{_lambda_.9} parent=0 // pred_check
    _
  $region7: #{_lambda_.9} parent=0 // pred_check_branch
    %14 = sbr.rel (0) target = $region9
  $region8: #{_lambda_.9} parent=0 // pred_region
    _
  $region9: #{_lambda_.9} parent=0 // pred_fallthru
    _
  // Predicated region
  $region10: #{_lambda_.9} parent=0 // pred_check
    _
  $region11: #{_lambda_.9} parent=0 // pred_check_branch
    %16 = sbr.rel (0) target = $region13
  $region12: #{_lambda_.9} parent=0 // pred_region
    _
  $region13: #{_lambda_.9} parent=0 // pred_fallthru
    _
  // Predicated region
  $region14: #{_lambda_.9} parent=0 // pred_check
    _
  $region15: #{_lambda_.9} parent=0 // pred_check_branch
    %18 = sbr.rel (0) target = $region17
  $region16: #{_lambda_.9} parent=0 // pred_region
    _
  $region17: #{_lambda_.9} parent=0 // pred_fallthru
    _
  // Predicated region
  $region18: #{_lambda_.9} parent=0 // pred_check
    _
  $region19: #{_lambda_.9} parent=0 // pred_check_branch
    %20 = sbr.rel (0) target = $region21
  $region20: #{_lambda_.9} parent=0 // pred_region
    _
  $region21: #{_lambda_.9} parent=0 // pred_fallthru
    _
  // Predicated region
  $region22: #{_lambda_.9} parent=0 // pred_check
    _
  $region23: #{_lambda_.9} parent=0 // pred_check_branch
    %22 = sbr.rel (0) target = $region25
  $region24: #{_lambda_.9} parent=0 // pred_region
    _
  $region25: #{_lambda_.9} parent=0 // pred_fallthru
    _
  %v24 = vld [vmem:[%s1] sm:$0x3]
  %v25 = vsub.f32 0.0, %v24
  %v26 = vmul.f32 %v25, 1.442695
  %v27 = vpow.pop %v26
  %v28 = vadd.f32 %v27, 1.0
  %v29 = vrcp.pop %v28
  %v30 = vmul.f32 %v24, %v29
  %v31 = vld [vmem:[%s2] sm:$0xf]
  %v32 = vld [vmem:[%s2 + $0x4] sm:$0xf]
  %v33 = vld [vmem:[%s2 + $0x8] sm:$0xf]
  %v34 = vld [vmem:[%s2 + $0xc] sm:$0xf]
  %v35 = vld [vmem:[%s2 + $0x10] sm:$0xf]
  %v36 = vld [vmem:[%s2 + $0x14] sm:$0xf]
  %v37 = vld [vmem:[%s2 + $0x18] sm:$0xf]
  %v38 = vld [vmem:[%s2 + $0x1c] sm:$0xf]
  %v39 = vpack.c.bf16 %v30, %v30
  %v40 = vld [vmem:[%s3] sm:$0x1]
  %v42 = vlaneseq
  %v43 = vshrl.u32 %v42, 7
  %v44 = vsub.s32 0, %v43
  %v45 = vrot.slane %v40, %v44
  %v55 = vunpack.c.l.b16 %v31
  %v56 = vunpack.c.l.b16 %v32
  %v57 = vunpack.c.l.b16 %v33
  %v58 = vunpack.c.l.b16 %v34
  %v59 = vunpack.c.l.b16 %v35
  %v60 = vunpack.c.l.b16 %v36
  %v61 = vunpack.c.l.b16 %v37
  %v62 = vunpack.c.l.b16 %v38
  %v63 = vpack.c.b16 %v56, %v55
  %v64 = vpack.c.b16 %v58, %v57
  %v65 = vpack.c.b16 %v60, %v59
  %v66 = vpack.c.b16 %v62, %v61
  %vm71 = vcmask 523264
  %v73 = vsel %vm71, %v39, 0
  %75 = vmatprep.subr.bf16.mxu0 0
  %76 = vmatpush1.bf16.msra.mxu0 %v63
  %77 = vmatprep.subr.bf16.mxu0 0
  %78 = vmatpush1.bf16.msra.mxu0 %v64
  %79 = vmatprep.subr.bf16.mxu0 0
  %80 = vmatpush1.bf16.msra.mxu0 %v65
  %81 = vmatprep.subr.bf16.mxu0 0
  %82 = vmatpush1.bf16.msra.mxu0 %v66
  %83 = vmatprep.subr.bf16.mxu0 0
  %84 = vmatpush1.bf16.msra.mxu0 0
  %85 = vmatprep.subr.bf16.mxu0 0
  %86 = vmatpush1.bf16.msra.mxu0 0
  %87 = vmatprep.subr.bf16.mxu0 0
  %88 = vmatpush1.bf16.msra.mxu0 0
  %89 = vmatprep.subr.bf16.mxu0 0
  %90 = vmatpush1.bf16.msra.mxu0 0
  %91 = vmatprep.subr.bf16.mxu0 0
  %92 = vmatpush1.bf16.msra.mxu0 0
  %93 = vmatprep.subr.bf16.mxu0 0
  %94 = vmatpush1.bf16.msra.mxu0 0
  %95 = vmatprep.subr.bf16.mxu0 0
  %96 = vmatpush1.bf16.msra.mxu0 0
  %97 = vmatprep.subr.bf16.mxu0 0
  %98 = vmatpush1.bf16.msra.mxu0 0
  %99 = vmatprep.subr.bf16.mxu0 0
  %100 = vmatpush1.bf16.msra.mxu0 0
  %101 = vmatprep.subr.bf16.mxu0 0
  %102 = vmatpush1.bf16.msra.mxu0 0
  %103 = vmatprep.subr.bf16.mxu0 0
  %104 = vmatpush1.bf16.msra.mxu0 0
  %105 = vmatprep.subr.bf16.mxu0 0
  %106 = vmatpush1.bf16.msra.mxu0 0
  %107 = vmatprep.mubr.bf16.mxu0 0
  %108 = vmatmul.mubr.bf16.gmra.mrb[0].mxu0 %v73
  %v109 = vpop.f32.mrb[0].mxu0
  %v110 = vadd.f32 %v45, %v109
  %v111 = vpop.f32.mrb[0].mxu0
  %v112 = vpop.f32.mrb[0].mxu0
  %v113 = vpop.f32.mrb[0].mxu0
  %114 = vdwg.mxu0
  %v115 = vlaneseq
  %v116 = vshrl.u32 %v115, 7
  %v117 = vsub.s32 0, %v116
  %v118 = vrot.slane %v110, %v117
  %v119 = vlaneseq
  %v120 = vshrl.u32 %v119, 7
  %v121 = vsub.s32 1, %v120
  %v122 = vrot.slane %v110, %v121
  %v123 = vld [vmem:[%s0] sm:$0xff]
  %v124 = vld [vmem:[%s0 + $0x8] sm:$0xff]
  %v125 = vsel %vm71, %v123, 0.0
  %126 = vadd.xlane.f32.xlu0 %v125
  %v127 = vpop.xlane.xlu0 %126
  %v128 = vsel %vm71, %v124, 0.0
  %129 = vadd.xlane.f32.xlu0 %v128
  %v130 = vpop.xlane.xlu0 %129
  %v131 = vrcp.pop 64.0
  %v132 = vmul.f32 %v127, %v131
  %v133 = vmul.f32 %v130, %v131
  %v134 = vsub.f32 %v123, %v132
  %v135 = vsub.f32 %v124, %v133
  %v136 = vmul.f32 %v134, %v134
  %v137 = vmul.f32 %v135, %v135
  %v138 = vsel %vm71, %v136, 0.0
  %139 = vadd.xlane.f32.xlu0 %v138
  %v140 = vpop.xlane.xlu0 %139
  %v141 = vsel %vm71, %v137, 0.0
  %142 = vadd.xlane.f32.xlu0 %v141
  %v143 = vpop.xlane.xlu0 %142
  %v144 = vmul.f32 %v140, %v131
  %v145 = vmul.f32 %v143, %v131
  %v146 = vadd.f32 %v144, 1e-06
  %v147 = vadd.f32 %v145, 1e-06
  %v148 = vrsqrt.pop %v146
  %v149 = vrsqrt.pop %v147
  %v150 = vmul.f32 %v134, %v148
  %v151 = vmul.f32 %v135, %v149
  %v152 = vadd.f32 %v118, 1.0
  %v153 = vadd.f32 %v122, 1.0
  %156 = vrot.lane.b32.xlu0 %v152, 64
  %v157 = vpop.permute.xlu0 %156
  %158 = vrot.lane.b32.xlu0 %v153, 64
  %v159 = vpop.permute.xlu0 %158
  %v162 = vmul.f32 %v150, %v157
  %v163 = vmul.f32 %v151, %v159
  %v164 = vadd.f32 %v162, %v118
  %v165 = vadd.f32 %v163, %v122
  %v166 = vld [vmem:[%s4] sm:$0xf]
  %v167 = vld [vmem:[%s4 + $0x4] sm:$0xf]
  %v168 = vld [vmem:[%s4 + $0x8] sm:$0xf]
  %v169 = vld [vmem:[%s4 + $0xc] sm:$0xf]
  %v170 = vld [vmem:[%s4 + $0x10] sm:$0xf]
  %v171 = vld [vmem:[%s4 + $0x14] sm:$0xf]
  %v172 = vld [vmem:[%s4 + $0x18] sm:$0xf]
  %v173 = vld [vmem:[%s4 + $0x1c] sm:$0xf]
  %v174 = vpack.c.bf16 %v165, %v164
  %v175 = vld [vmem:[%s5] sm:$0x1]
  %v177 = vlaneseq
  %v178 = vshrl.u32 %v177, 7
  %v179 = vsub.s32 0, %v178
  %v180 = vrot.slane %v175, %v179
  %v190 = vunpack.c.l.b16 %v166
  %v191 = vunpack.c.l.b16 %v167
  %v192 = vunpack.c.l.b16 %v168
  %v193 = vunpack.c.l.b16 %v169
  %v194 = vunpack.c.l.b16 %v170
  %v195 = vunpack.c.l.b16 %v171
  %v196 = vunpack.c.l.b16 %v172
  %v197 = vunpack.c.l.b16 %v173
  %v198 = vpack.c.b16 %v191, %v190
  %v199 = vpack.c.b16 %v193, %v192
  %v200 = vpack.c.b16 %v195, %v194
  %v201 = vpack.c.b16 %v197, %v196
  %v207 = vsel %vm71, %v174, 0
  %209 = vmatprep.subr.bf16.mxu0 0
  %210 = vmatpush1.bf16.msra.mxu0 %v198
  %211 = vmatprep.subr.bf16.mxu0 0
  %212 = vmatpush1.bf16.msra.mxu0 %v199
  %213 = vmatprep.subr.bf16.mxu0 0
  %214 = vmatpush1.bf16.msra.mxu0 %v200
  %215 = vmatprep.subr.bf16.mxu0 0
  %216 = vmatpush1.bf16.msra.mxu0 %v201
  %217 = vmatprep.subr.bf16.mxu0 0
  %218 = vmatpush1.bf16.msra.mxu0 0
  %219 = vmatprep.subr.bf16.mxu0 0
  %220 = vmatpush1.bf16.msra.mxu0 0
  %221 = vmatprep.subr.bf16.mxu0 0
  %222 = vmatpush1.bf16.msra.mxu0 0
  %223 = vmatprep.subr.bf16.mxu0 0
  %224 = vmatpush1.bf16.msra.mxu0 0
  %225 = vmatprep.subr.bf16.mxu0 0
  %226 = vmatpush1.bf16.msra.mxu0 0
  %227 = vmatprep.subr.bf16.mxu0 0
  %228 = vmatpush1.bf16.msra.mxu0 0
  %229 = vmatprep.subr.bf16.mxu0 0
  %230 = vmatpush1.bf16.msra.mxu0 0
  %231 = vmatprep.subr.bf16.mxu0 0
  %232 = vmatpush1.bf16.msra.mxu0 0
  %233 = vmatprep.subr.bf16.mxu0 0
  %234 = vmatpush1.bf16.msra.mxu0 0
  %235 = vmatprep.subr.bf16.mxu0 0
  %236 = vmatpush1.bf16.msra.mxu0 0
  %237 = vmatprep.subr.bf16.mxu0 0
  %238 = vmatpush1.bf16.msra.mxu0 0
  %239 = vmatprep.subr.bf16.mxu0 0
  %240 = vmatpush1.bf16.msra.mxu0 0
  %241 = vmatprep.mubr.bf16.mxu0 0
  %242 = vmatmul.mubr.bf16.gmra.mrb[0].mxu0 %v207
  %v243 = vpop.f32.mrb[0].mxu0
  %v244 = vadd.f32 %v180, %v243
  %v245 = vpop.f32.mrb[0].mxu0
  %v246 = vpop.f32.mrb[0].mxu0
  %v247 = vadd.f32 %v180, %v246
  %v248 = vpop.f32.mrb[0].mxu0
  %249 = vdwg.mxu0
  %vm250 = vcmask 64512
  %251 = vst.msk [vmem:[%s6] sm:$0xff] %vm250, %v244
  %252 = vst.msk [vmem:[%s6 + $0x8] sm:$0xff] %vm250, %v247
  // Predicated region
  $region26: #{_lambda_.9} parent=0 // pred_check
    _
  $region27: #{_lambda_.9} parent=0 // pred_check_branch
    %254 = sbr.rel (0) target = $region29
  $region28: #{_lambda_.9} parent=0 // pred_region
    _
  $region29: #{_lambda_.9} parent=0 // pred_fallthru
    _
  // Predicated region
  $region30: #{_lambda_.9} parent=0 // pred_check
    _
  $region31: #{_lambda_.9} parent=0 // pred_check_branch
    %256 = sbr.rel (0) target = $region33
  $region32: #{_lambda_.9} parent=0 // pred_region
    _
  $region33: #{_lambda_.9} parent=0 // pred_fallthru
    _

// kernel: _lambda_.7
$region0: #{_lambda_.7}
  #allocation0 [shape = 'u32[]', space=smem, size = 0x4, offset = 0x4, fixed_abs, tag = 'smem constant byte address 0x4 - core index']
  #allocation1 [shape = 'u32[144,128]{1,0:T(1,128)}', space=vmem, size = 0x12000, scoped, tag = 'internal scratch']
  %s0 = inlined_call_operand.vmem [shape: f32[16,64], index: 0, kind: input, shape index: {}]
  %s1 = inlined_call_operand.vmem [shape: f32[2,64], index: 1, kind: input, shape index: {}]
  %s2 = inlined_call_operand.vmem [shape: f32[2,8], index: 2, kind: input, shape index: {}]
  %s3 = inlined_call_operand.vmem [shape: bf16[64,384], index: 3, kind: input, shape index: {}]
  %s4 = inlined_call_operand.vmem [shape: f32[1,384], index: 4, kind: input, shape index: {}]
  %s5 = inlined_call_operand.vmem [shape: bf16[64,192], index: 5, kind: input, shape index: {}]
  %s6 = inlined_call_operand.vmem [shape: f32[1,192], index: 6, kind: input, shape index: {}]
  %s7 = inlined_call_operand.vmem [shape: bf16[64,64], index: 7, kind: input, shape index: {}]
  %s8 = inlined_call_operand.vmem [shape: f32[1,64], index: 8, kind: input, shape index: {}, may-alias: {8,12}]
  %s9 = inlined_call_operand.vmem [shape: bf16[64,128], index: 9, kind: input, shape index: {}]
  %s10 = inlined_call_operand.vmem [shape: f32[1,128], index: 10, kind: input, shape index: {}]
  %s11 = inlined_call_operand.vmem [shape: bf16[128,64], index: 11, kind: input, shape index: {}]
  %s12 = inlined_call_operand.vmem [shape: f32[1,64], index: 12, kind: input, shape index: {}, may-alias: {8,12}]
  %s13 = inlined_call_operand.vmem [shape: f32[16,64], index: 13, kind: output, shape index: {}]
  %s14 = sld [smem:[#allocation0]]
  $region62: #{_lambda_.7} parent=0
    _
  %s16 = ssub.s32 1, %s14
  %s17 = scalar_select 0, %s16, %s14
  // Predicated region
  $region2: #{_lambda_.7} parent=0 // pred_check
    _
  $region3: #{_lambda_.7} parent=0 // pred_check_branch
    %19 = sbr.rel (0) target = $region5
  $region4: #{_lambda_.7} parent=0 // pred_region
    _
  $region5: #{_lambda_.7} parent=0 // pred_fallthru
    _
  // Predicated region
  $region6: #{_lambda_.7} parent=0 // pred_check
    _
  $region7: #{_lambda_.7} parent=0 // pred_check_branch
    %21 = sbr.rel (0) target = $region9
  $region8: #{_lambda_.7} parent=0 // pred_region
    _
  $region9: #{_lambda_.7} parent=0 // pred_fallthru
    _
  // Predicated region
  $region10: #{_lambda_.7} parent=0 // pred_check
    _
  $region11: #{_lambda_.7} parent=0 // pred_check_branch
    %23 = sbr.rel (0) target = $region13
  $region12: #{_lambda_.7} parent=0 // pred_region
    _
  $region13: #{_lambda_.7} parent=0 // pred_fallthru
    _
  // Predicated region
  $region14: #{_lambda_.7} parent=0 // pred_check
    _
  $region15: #{_lambda_.7} parent=0 // pred_check_branch
    %25 = sbr.rel (0) target = $region17
  $region16: #{_lambda_.7} parent=0 // pred_region
    _
  $region17: #{_lambda_.7} parent=0 // pred_fallthru
    _
  // Predicated region
  $region18: #{_lambda_.7} parent=0 // pred_check
    _
  $region19: #{_lambda_.7} parent=0 // pred_check_branch
    %27 = sbr.rel (0) target = $region21
  $region20: #{_lambda_.7} parent=0 // pred_region
    _
  $region21: #{_lambda_.7} parent=0 // pred_fallthru
    _
  // Predicated region
  $region22: #{_lambda_.7} parent=0 // pred_check
    _
  $region23: #{_lambda_.7} parent=0 // pred_check_branch
    %29 = sbr.rel (0) target = $region25
  $region24: #{_lambda_.7} parent=0 // pred_region
    _
  $region25: #{_lambda_.7} parent=0 // pred_fallthru
    _
  // Predicated region
  $region26: #{_lambda_.7} parent=0 // pred_check
    _
  $region27: #{_lambda_.7} parent=0 // pred_check_branch
    %31 = sbr.rel (0) target = $region29
  $region28: #{_lambda_.7} parent=0 // pred_region
    _
  $region29: #{_lambda_.7} parent=0 // pred_fallthru
    _
  // Predicated region
  $region30: #{_lambda_.7} parent=0 // pred_check
    _
  $region31: #{_lambda_.7} parent=0 // pred_check_branch
    %33 = sbr.rel (0) target = $region33
  $region32: #{_lambda_.7} parent=0 // pred_region
    _
  $region33: #{_lambda_.7} parent=0 // pred_fallthru
    _
  // Predicated region
  $region34: #{_lambda_.7} parent=0 // pred_check
    _
  $region35: #{_lambda_.7} parent=0 // pred_check_branch
    %35 = sbr.rel (0) target = $region37
  $region36: #{_lambda_.7} parent=0 // pred_region
    _
  $region37: #{_lambda_.7} parent=0 // pred_fallthru
    _
  // Predicated region
  $region38: #{_lambda_.7} parent=0 // pred_check
    _
  $region39: #{_lambda_.7} parent=0 // pred_check_branch
    %37 = sbr.rel (0) target = $region41
  $region40: #{_lambda_.7} parent=0 // pred_region
    _
  $region41: #{_lambda_.7} parent=0 // pred_fallthru
    _
  // Predicated region
  $region42: #{_lambda_.7} parent=0 // pred_check
    _
  $region43: #{_lambda_.7} parent=0 // pred_check_branch
    %39 = sbr.rel (0) target = $region45
  $region44: #{_lambda_.7} parent=0 // pred_region
    _
  $region45: #{_lambda_.7} parent=0 // pred_fallthru
    _
  // Predicated region
  $region46: #{_lambda_.7} parent=0 // pred_check
    _
  $region47: #{_lambda_.7} parent=0 // pred_check_branch
    %41 = sbr.rel (0) target = $region49
  $region48: #{_lambda_.7} parent=0 // pred_region
    _
  $region49: #{_lambda_.7} parent=0 // pred_fallthru
    _
  // Predicated region
  $region50: #{_lambda_.7} parent=0 // pred_check
    _
  $region51: #{_lambda_.7} parent=0 // pred_check_branch
    %43 = sbr.rel (0) target = $region53
  $region52: #{_lambda_.7} parent=0 // pred_region
    _
  $region53: #{_lambda_.7} parent=0 // pred_fallthru
    _
  %v45 = vld [vmem:[%s0] sm:$0xff]
  %v46 = vld [vmem:[%s0 + $0x8] sm:$0xff]
  %v47 = vld [vmem:[%s2] sm:$0x3]
  %v48 = vld [vmem:[%s1] sm:$0x3]
  %v49 = vsub.f32 0.0, %v48
  %v50 = vmul.f32 %v49, 1.442695
  %v51 = vpow.pop %v50
  %v52 = vadd.f32 %v51, 1.0
  %v53 = vrcp.pop %v52
  %v54 = vmul.f32 %v48, %v53
  %v55 = vld [vmem:[%s3] sm:$0xff]
  %v56 = vld [vmem:[%s3 + $0x8] sm:$0xf]
  %v57 = vld [vmem:[%s3 + $0xc] sm:$0xff]
  %v58 = vld [vmem:[%s3 + $0x14] sm:$0xf]
  %v59 = vld [vmem:[%s3 + $0x18] sm:$0xff]
  %v60 = vld [vmem:[%s3 + $0x20] sm:$0xf]
  %v61 = vld [vmem:[%s3 + $0x24] sm:$0xff]
  %v62 = vld [vmem:[%s3 + $0x2c] sm:$0xf]
  %v63 = vld [vmem:[%s3 + $0x30] sm:$0xff]
  %v64 = vld [vmem:[%s3 + $0x38] sm:$0xf]
  %v65 = vld [vmem:[%s3 + $0x3c] sm:$0xff]
  %v66 = vld [vmem:[%s3 + $0x44] sm:$0xf]
  %v67 = vld [vmem:[%s3 + $0x48] sm:$0xff]
  %v68 = vld [vmem:[%s3 + $0x50] sm:$0xf]
  %v69 = vld [vmem:[%s3 + $0x54] sm:$0xff]
  %v70 = vld [vmem:[%s3 + $0x5c] sm:$0xf]
  %v71 = vpack.c.bf16 %v54, %v54
  %v72 = vld [vmem:[%s4] sm:$0x7]
  %v74 = vlaneseq
  %v75 = vshrl.u32 %v74, 7
  %v76 = vsub.s32 0, %v75
  %v77 = vrot.slane %v72, %v76
  %v78 = vlaneseq
  %v79 = vshrl.u32 %v78, 7
  %v80 = vsub.s32 1, %v79
  %v81 = vrot.slane %v72, %v80
  %v82 = vlaneseq
  %v83 = vshrl.u32 %v82, 7
  %v84 = vsub.s32 2, %v83
  %v85 = vrot.slane %v72, %v84
  %v105 = vunpack.c.l.b16 %v55
  %v106 = vunpack.c.h.b16 %v55
  %v107 = vunpack.c.l.b16 %v56
  %v108 = vunpack.c.l.b16 %v57
  %v109 = vunpack.c.h.b16 %v57
  %v110 = vunpack.c.l.b16 %v58
  %v111 = vunpack.c.l.b16 %v59
  %v112 = vunpack.c.h.b16 %v59
  %v113 = vunpack.c.l.b16 %v60
  %v114 = vunpack.c.l.b16 %v61
  %v115 = vunpack.c.h.b16 %v61
  %v116 = vunpack.c.l.b16 %v62
  %v117 = vunpack.c.l.b16 %v63
  %v118 = vunpack.c.h.b16 %v63
  %v119 = vunpack.c.l.b16 %v64
  %v120 = vunpack.c.l.b16 %v65
  %v121 = vunpack.c.h.b16 %v65
  %v122 = vunpack.c.l.b16 %v66
  %v123 = vunpack.c.l.b16 %v67
  %v124 = vunpack.c.h.b16 %v67
  %v125 = vunpack.c.l.b16 %v68
  %v126 = vunpack.c.l.b16 %v69
  %v127 = vunpack.c.h.b16 %v69
  %v128 = vunpack.c.l.b16 %v70
  %v129 = vpack.c.b16 %v108, %v105
  %v130 = vpack.c.b16 %v109, %v106
  %v131 = vpack.c.b16 %v110, %v107
  %v132 = vpack.c.b16 %v114, %v111
  %v133 = vpack.c.b16 %v115, %v112
  %v134 = vpack.c.b16 %v116, %v113
  %v135 = vpack.c.b16 %v120, %v117
  %v136 = vpack.c.b16 %v121, %v118
  %v137 = vpack.c.b16 %v122, %v119
  %v138 = vpack.c.b16 %v126, %v123
  %v139 = vpack.c.b16 %v127, %v124
  %v140 = vpack.c.b16 %v128, %v125
  %vm153 = vcmask 523264
  %v155 = vsel %vm153, %v71, 0
  %157 = vmatprep.subr.bf16.mxu0 %v130
  %158 = vmatpush1.bf16.msra.mxu0 %v129
  %159 = vmatprep.subr.bf16.mxu0 %v133
  %160 = vmatpush1.bf16.msra.mxu0 %v132
  %161 = vmatprep.subr.bf16.mxu0 %v136
  %162 = vmatpush1.bf16.msra.mxu0 %v135
  %163 = vmatprep.subr.bf16.mxu0 %v139
  %164 = vmatpush1.bf16.msra.mxu0 %v138
  %165 = vmatprep.subr.bf16.mxu0 0
  %166 = vmatpush1.bf16.msra.mxu0 0
  %167 = vmatprep.subr.bf16.mxu0 0
  %168 = vmatpush1.bf16.msra.mxu0 0
  %169 = vmatprep.subr.bf16.mxu0 0
  %170 = vmatpush1.bf16.msra.mxu0 0
  %171 = vmatprep.subr.bf16.mxu0 0
  %172 = vmatpush1.bf16.msra.mxu0 0
  %173 = vmatprep.subr.bf16.mxu0 0
  %174 = vmatpush1.bf16.msra.mxu0 0
  %175 = vmatprep.subr.bf16.mxu0 0
  %176 = vmatpush1.bf16.msra.mxu0 0
  %177 = vmatprep.subr.bf16.mxu0 0
  %178 = vmatpush1.bf16.msra.mxu0 0
  %179 = vmatprep.subr.bf16.mxu0 0
  %180 = vmatpush1.bf16.msra.mxu0 0
  %181 = vmatprep.subr.bf16.mxu0 0
  %182 = vmatpush1.bf16.msra.mxu0 0
  %183 = vmatprep.subr.bf16.mxu0 0
  %184 = vmatpush1.bf16.msra.mxu0 0
  %185 = vmatprep.subr.bf16.mxu0 0
  %186 = vmatpush1.bf16.msra.mxu0 0
  %187 = vmatprep.subr.bf16.mxu0 0
  %188 = vmatpush1.bf16.msra.mxu0 0
  %189 = vmatprep.mubr.bf16.mxu0 0
  %190 = vmatmul.mubr.bf16.gmra.mrb[0].mxu0 %v155
  %v191 = vpop.f32.mrb[0].mxu0
  %v192 = vadd.f32 %v77, %v191
  %v193 = vpop.f32.mrb[0].mxu0
  %v194 = vadd.f32 %v81, %v193
  %v195 = vpop.f32.mrb[0].mxu0
  %v196 = vpop.f32.mrb[0].mxu0
  %197 = vdwg.mxu0
  %198 = vmatprep.subr.bf16.mxu0 0
  %199 = vmatpush1.bf16.msra.mxu0 %v131
  %200 = vmatprep.subr.bf16.mxu0 0
  %201 = vmatpush1.bf16.msra.mxu0 %v134
  %202 = vmatprep.subr.bf16.mxu0 0
  %203 = vmatpush1.bf16.msra.mxu0 %v137
  %204 = vmatprep.subr.bf16.mxu0 0
  %205 = vmatpush1.bf16.msra.mxu0 %v140
  %206 = vmatprep.subr.bf16.mxu0 0
  %207 = vmatpush1.bf16.msra.mxu0 0
  %208 = vmatprep.subr.bf16.mxu0 0
  %209 = vmatpush1.bf16.msra.mxu0 0
  %210 = vmatprep.subr.bf16.mxu0 0
  %211 = vmatpush1.bf16.msra.mxu0 0
  %212 = vmatprep.subr.bf16.mxu0 0
  %213 = vmatpush1.bf16.msra.mxu0 0
  %214 = vmatprep.subr.bf16.mxu0 0
  %215 = vmatpush1.bf16.msra.mxu0 0
  %216 = vmatprep.subr.bf16.mxu0 0
  %217 = vmatpush1.bf16.msra.mxu0 0
  %218 = vmatprep.subr.bf16.mxu0 0
  %219 = vmatpush1.bf16.msra.mxu0 0
  %220 = vmatprep.subr.bf16.mxu0 0
  %221 = vmatpush1.bf16.msra.mxu0 0
  %222 = vmatprep.subr.bf16.mxu0 0
  %223 = vmatpush1.bf16.msra.mxu0 0
  %224 = vmatprep.subr.bf16.mxu0 0
  %225 = vmatpush1.bf16.msra.mxu0 0
  %226 = vmatprep.subr.bf16.mxu0 0
  %227 = vmatpush1.bf16.msra.mxu0 0
  %228 = vmatprep.subr.bf16.mxu0 0
  %229 = vmatpush1.bf16.msra.mxu0 0
  %230 = vmatprep.mubr.bf16.mxu0 0
  %231 = vmatmul.mubr.bf16.gmra.mrb[0].mxu0 %v155
  %v232 = vpop.f32.mrb[0].mxu0
  %v233 = vadd.f32 %v85, %v232
  %v234 = vpop.f32.mrb[0].mxu0
  %v235 = vpop.f32.mrb[0].mxu0
  %v236 = vpop.f32.mrb[0].mxu0
  %237 = vdwg.mxu0
  %v238 = vlaneseq
  %v239 = vshrl.u32 %v238, 7
  %v240 = vsub.s32 0, %v239
  %v241 = vrot.slane %v192, %v240
  %v242 = vlaneseq
  %v243 = vshrl.u32 %v242, 7
  %v244 = vsub.s32 0, %v243
  %v245 = vrot.slane %v194, %v244
  %v246 = vlaneseq
  %v247 = vshrl.u32 %v246, 7
  %v248 = vsub.s32 0, %v247
  %v249 = vrot.slane %v233, %v248
  %v250 = vlaneseq
  %v251 = vshrl.u32 %v250, 7
  %v252 = vsub.s32 1, %v251
  %v253 = vrot.slane %v192, %v252
  %v254 = vlaneseq
  %v255 = vshrl.u32 %v254, 7
  %v256 = vsub.s32 1, %v255
  %v257 = vrot.slane %v194, %v256
  %v258 = vlaneseq
  %v259 = vshrl.u32 %v258, 7
  %v260 = vsub.s32 1, %v259
  %v261 = vrot.slane %v233, %v260
  %v262 = vsel %vm153, %v45, 0.0
  %263 = vadd.xlane.f32.xlu0 %v262
  %v264 = vpop.xlane.xlu0 %263
  %v265 = vsel %vm153, %v46, 0.0
  %266 = vadd.xlane.f32.xlu0 %v265
  %v267 = vpop.xlane.xlu0 %266
  %v268 = vrcp.pop 64.0
  %v269 = vmul.f32 %v264, %v268
  %v270 = vmul.f32 %v267, %v268
  %v271 = vsub.f32 %v45, %v269
  %v272 = vsub.f32 %v46, %v270
  %v273 = vmul.f32 %v271, %v271
  %v274 = vmul.f32 %v272, %v272
  %v275 = vsel %vm153, %v273, 0.0
  %276 = vadd.xlane.f32.xlu0 %v275
  %v277 = vpop.xlane.xlu0 %276
  %v278 = vsel %vm153, %v274, 0.0
  %279 = vadd.xlane.f32.xlu0 %v278
  %v280 = vpop.xlane.xlu0 %279
  %v281 = vmul.f32 %v277, %v268
  %v282 = vmul.f32 %v280, %v268
  %v283 = vadd.f32 %v281, 1e-06
  %v284 = vadd.f32 %v282, 1e-06
  %v285 = vrsqrt.pop %v283
  %v286 = vrsqrt.pop %v284
  %v287 = vmul.f32 %v271, %v285
  %v288 = vmul.f32 %v272, %v286
  %v289 = vadd.f32 %v241, 1.0
  %v290 = vadd.f32 %v253, 1.0
  %293 = vrot.lane.b32.xlu0 %v289, 64
  %v294 = vpop.permute.xlu0 %293
  %295 = vrot.lane.b32.xlu0 %v290, 64
  %v296 = vpop.permute.xlu0 %295
  %v299 = vmul.f32 %v287, %v294
  %v300 = vmul.f32 %v288, %v296
  %v301 = vadd.f32 %v299, %v241
  %v302 = vadd.f32 %v300, %v253
  %v303 = vld [vmem:[%s5] sm:$0xff]
  %v304 = vld [vmem:[%s5 + $0x8] sm:$0xff]
  %v305 = vld [vmem:[%s5 + $0x10] sm:$0xff]
  %v306 = vld [vmem:[%s5 + $0x18] sm:$0xff]
  %v307 = vld [vmem:[%s5 + $0x20] sm:$0xff]
  %v308 = vld [vmem:[%s5 + $0x28] sm:$0xff]
  %v309 = vld [vmem:[%s5 + $0x30] sm:$0xff]
  %v310 = vld [vmem:[%s5 + $0x38] sm:$0xff]
  %v311 = vpack.c.bf16 %v302, %v301
  %v312 = vld [vmem:[%s6] sm:$0x3]
  %v314 = vlaneseq
  %v315 = vshrl.u32 %v314, 7
  %v316 = vsub.s32 0, %v315
  %v317 = vrot.slane %v312, %v316
  %v318 = vlaneseq
  %v319 = vshrl.u32 %v318, 7
  %v320 = vsub.s32 1, %v319
  %v321 = vrot.slane %v312, %v320
  %v332 = vunpack.c.l.b16 %v303
  %v333 = vunpack.c.h.b16 %v303
  %v334 = vunpack.c.l.b16 %v304
  %v335 = vunpack.c.h.b16 %v304
  %v336 = vunpack.c.l.b16 %v305
  %v337 = vunpack.c.h.b16 %v305
  %v338 = vunpack.c.l.b16 %v306
  %v339 = vunpack.c.h.b16 %v306
  %v340 = vunpack.c.l.b16 %v307
  %v341 = vunpack.c.h.b16 %v307
  %v342 = vunpack.c.l.b16 %v308
  %v343 = vunpack.c.h.b16 %v308
  %v344 = vunpack.c.l.b16 %v309
  %v345 = vunpack.c.h.b16 %v309
  %v346 = vunpack.c.l.b16 %v310
  %v347 = vunpack.c.h.b16 %v310
  %v348 = vpack.c.b16 %v334, %v332
  %v349 = vpack.c.b16 %v335, %v333
  %v350 = vpack.c.b16 %v338, %v336
  %v351 = vpack.c.b16 %v339, %v337
  %v352 = vpack.c.b16 %v342, %v340
  %v353 = vpack.c.b16 %v343, %v341
  %v354 = vpack.c.b16 %v346, %v344
  %v355 = vpack.c.b16 %v347, %v345
  %v365 = vsel %vm153, %v311, 0
  %367 = vmatprep.subr.bf16.mxu0 %v349
  %368 = vmatpush1.bf16.msra.mxu0 %v348
  %369 = vmatprep.subr.bf16.mxu0 %v351
  %370 = vmatpush1.bf16.msra.mxu0 %v350
  %371 = vmatprep.subr.bf16.mxu0 %v353
  %372 = vmatpush1.bf16.msra.mxu0 %v352
  %373 = vmatprep.subr.bf16.mxu0 %v355
  %374 = vmatpush1.bf16.msra.mxu0 %v354
  %375 = vmatprep.subr.bf16.mxu0 0
  %376 = vmatpush1.bf16.msra.mxu0 0
  %377 = vmatprep.subr.bf16.mxu0 0
  %378 = vmatpush1.bf16.msra.mxu0 0
  %379 = vmatprep.subr.bf16.mxu0 0
  %380 = vmatpush1.bf16.msra.mxu0 0
  %381 = vmatprep.subr.bf16.mxu0 0
  %382 = vmatpush1.bf16.msra.mxu0 0
  %383 = vmatprep.subr.bf16.mxu0 0
  %384 = vmatpush1.bf16.msra.mxu0 0
  %385 = vmatprep.subr.bf16.mxu0 0
  %386 = vmatpush1.bf16.msra.mxu0 0
  %387 = vmatprep.subr.bf16.mxu0 0
  %388 = vmatpush1.bf16.msra.mxu0 0
  %389 = vmatprep.subr.bf16.mxu0 0
  %390 = vmatpush1.bf16.msra.mxu0 0
  %391 = vmatprep.subr.bf16.mxu0 0
  %392 = vmatpush1.bf16.msra.mxu0 0
  %393 = vmatprep.subr.bf16.mxu0 0
  %394 = vmatpush1.bf16.msra.mxu0 0
  %395 = vmatprep.subr.bf16.mxu0 0
  %396 = vmatpush1.bf16.msra.mxu0 0
  %397 = vmatprep.subr.bf16.mxu0 0
  %398 = vmatpush1.bf16.msra.mxu0 0
  %399 = vmatprep.mubr.bf16.mxu0 0
  %400 = vmatmul.mubr.bf16.gmra.mrb[0].mxu0 %v365
  %v401 = vpop.f32.mrb[0].mxu0
  %v402 = vadd.f32 %v317, %v401
  %v403 = vpop.f32.mrb[0].mxu0
  %v404 = vadd.f32 %v321, %v403
  %v405 = vpop.f32.mrb[0].mxu0
  %v406 = vadd.f32 %v317, %v405
  %v407 = vpop.f32.mrb[0].mxu0
  %v408 = vadd.f32 %v321, %v407
  %409 = vdwg.mxu0
  %vm410 = vcmp.gt.f32.partialorder %v47, 0.5
  %412 = vrot.lane.b32.xlu0 %v402, 64
  %v413 = vpop.permute.xlu0 %412
  %vm414 = vcmask 130048
  %v415 = vsel %vm414, %v402, 0
  %v417 = vsel %vm414, %v413, 0
  %419 = vmatprep.subr.mxu0 0.0
  %420 = vmatpush1.xpose.msra.mxu0 %v417
  %421 = vmatprep.subr.mxu0 0.0
  %422 = vmatpush1.xpose.msra.mxu0 0.0
  %423 = vmatprep.subr.mxu0 0.0
  %424 = vmatpush1.xpose.msra.mxu0 0.0
  %425 = vmatprep.subr.mxu0 0.0
  %426 = vmatpush1.xpose.msra.mxu0 0.0
  %427 = vmatprep.subr.mxu0 0.0
  %428 = vmatpush1.xpose.msra.mxu0 0.0
  %429 = vmatprep.subr.mxu0 0.0
  %430 = vmatpush1.xpose.msra.mxu0 0.0
  %431 = vmatprep.subr.mxu0 0.0
  %432 = vmatpush1.xpose.msra.mxu0 0.0
  %433 = vmatprep.subr.mxu0 0.0
  %434 = vmatpush1.xpose.msra.mxu0 0.0
  %435 = vmatprep.subr.mxu0 0.0
  %436 = vmatpush1.xpose.msra.mxu0 0.0
  %437 = vmatprep.subr.mxu0 0.0
  %438 = vmatpush1.xpose.msra.mxu0 0.0
  %439 = vmatprep.subr.mxu0 0.0
  %440 = vmatpush1.xpose.msra.mxu0 0.0
  %441 = vmatprep.subr.mxu0 0.0
  %442 = vmatpush1.xpose.msra.mxu0 0.0
  %443 = vmatprep.subr.mxu0 0.0
  %444 = vmatpush1.xpose.msra.mxu0 0.0
  %445 = vmatprep.subr.mxu0 0.0
  %446 = vmatpush1.xpose.msra.mxu0 0.0
  %447 = vmatprep.subr.mxu0 0.0
  %448 = vmatpush1.xpose.msra.mxu0 0.0
  %449 = vmatprep.subr.mxu0 0.0
  %450 = vmatpush1.xpose.msra.mxu0 0.0
  %451 = vmatprep.subr.mxu0 0.0
  %452 = vmatpush1.xpose.msra.mxu0 0.0
  %453 = vmatprep.subr.mxu0 0.0
  %454 = vmatpush1.xpose.msra.mxu0 0.0
  %455 = vmatprep.subr.mxu0 0.0
  %456 = vmatpush1.xpose.msra.mxu0 0.0
  %457 = vmatprep.subr.mxu0 0.0
  %458 = vmatpush1.xpose.msra.mxu0 0.0
  %459 = vmatprep.subr.mxu0 0.0
  %460 = vmatpush1.xpose.msra.mxu0 0.0
  %461 = vmatprep.subr.mxu0 0.0
  %462 = vmatpush1.xpose.msra.mxu0 0.0
  %463 = vmatprep.subr.mxu0 0.0
  %464 = vmatpush1.xpose.msra.mxu0 0.0
  %465 = vmatprep.subr.mxu0 0.0
  %466 = vmatpush1.xpose.msra.mxu0 0.0
  %467 = vmatprep.subr.mxu0 0.0
  %468 = vmatpush1.xpose.msra.mxu0 0.0
  %469 = vmatprep.subr.mxu0 0.0
  %470 = vmatpush1.xpose.msra.mxu0 0.0
  %471 = vmatprep.subr.mxu0 0.0
  %472 = vmatpush1.xpose.msra.mxu0 0.0
  %473 = vmatprep.subr.mxu0 0.0
  %474 = vmatpush1.xpose.msra.mxu0 0.0
  %475 = vmatprep.subr.mxu0 0.0
  %476 = vmatpush1.xpose.msra.mxu0 0.0
  %477 = vmatprep.subr.mxu0 0.0
  %478 = vmatpush1.xpose.msra.mxu0 0.0
  %479 = vmatprep.subr.mxu0 0.0
  %480 = vmatpush1.xpose.msra.mxu0 0.0
  %481 = vmatprep.subr.mxu0 0.0
  %482 = vmatpush1.xpose.msra.mxu0 0.0
  %483 = vmatprep.mubr.f32.mxu0 0.0
  %484 = vmatmul.mubr.f32.gmra.mrb[0].mxu0 %v415
  %v485 = vpop.f32.mrb[0].mxu0
  %v486 = vadd.f32 0.0, %v485
  %v487 = vpop.f32.mrb[0].mxu0
  %488 = vdwg.mxu0
  %v489 = vmul.f32 %v486, 0.25
  %v490 = vsel %vm410, 1, 0
  %v491 = vlaneseq
  %v492 = vshrl.u32 %v491, 7
  %v493 = vsub.s32 0, %v492
  %v494 = vrot.slane %v490, %v493
  %vm495 = vcmp.eq.s32.totalorder %v494, 1
  %v496 = vsel %vm495, %v489, -1e+09
  %vm497 = vcmask 64512
  %v498 = vsel %vm497, %v496, -inf
  %499 = vmax.xlane.f32.xlu0 %v498
  %v500 = vpop.xlane.xlu0 %499
  %v501 = vsub.f32 %v496, %v500
  %v502 = vmul.f32 %v501, 1.442695
  %v503 = vpow.pop %v502
  %v504 = vsel %vm497, %v503, 0.0
  %505 = vadd.xlane.f32.xlu0 %v504
  %v506 = vpop.xlane.xlu0 %505
  %v507 = vrcp.pop %v506
  %v508 = vmul.f32 %v503, %v507
  %v510 = vsel %vm497, %v508, 0
  %512 = vmatprep.subr.mxu0 0.0
  %513 = vmatpush1.msra.mxu0 %v404
  %514 = vmatprep.subr.mxu0 0.0
  %515 = vmatpush1.msra.mxu0 0.0
  %516 = vmatprep.subr.mxu0 0.0
  %517 = vmatpush1.msra.mxu0 0.0
  %518 = vmatprep.subr.mxu0 0.0
  %519 = vmatpush1.msra.mxu0 0.0
  %520 = vmatprep.subr.mxu0 0.0
  %521 = vmatpush1.msra.mxu0 0.0
  %522 = vmatprep.subr.mxu0 0.0
  %523 = vmatpush1.msra.mxu0 0.0
  %524 = vmatprep.subr.mxu0 0.0
  %525 = vmatpush1.msra.mxu0 0.0
  %526 = vmatprep.subr.mxu0 0.0
  %527 = vmatpush1.msra.mxu0 0.0
  %528 = vmatprep.subr.mxu0 0.0
  %529 = vmatpush1.msra.mxu0 0.0
  %530 = vmatprep.subr.mxu0 0.0
  %531 = vmatpush1.msra.mxu0 0.0
  %532 = vmatprep.subr.mxu0 0.0
  %533 = vmatpush1.msra.mxu0 0.0
  %534 = vmatprep.subr.mxu0 0.0
  %535 = vmatpush1.msra.mxu0 0.0
  %536 = vmatprep.subr.mxu0 0.0
  %537 = vmatpush1.msra.mxu0 0.0
  %538 = vmatprep.subr.mxu0 0.0
  %539 = vmatpush1.msra.mxu0 0.0
  %540 = vmatprep.subr.mxu0 0.0
  %541 = vmatpush1.msra.mxu0 0.0
  %542 = vmatprep.subr.mxu0 0.0
  %543 = vmatpush1.msra.mxu0 0.0
  %544 = vmatprep.subr.mxu0 0.0
  %545 = vmatpush1.msra.mxu0 0.0
  %546 = vmatprep.subr.mxu0 0.0
  %547 = vmatpush1.msra.mxu0 0.0
  %548 = vmatprep.subr.mxu0 0.0
  %549 = vmatpush1.msra.mxu0 0.0
  %550 = vmatprep.subr.mxu0 0.0
  %551 = vmatpush1.msra.mxu0 0.0
  %552 = vmatprep.subr.mxu0 0.0
  %553 = vmatpush1.msra.mxu0 0.0
  %554 = vmatprep.subr.mxu0 0.0
  %555 = vmatpush1.msra.mxu0 0.0
  %556 = vmatprep.subr.mxu0 0.0
  %557 = vmatpush1.msra.mxu0 0.0
  %558 = vmatprep.subr.mxu0 0.0
  %559 = vmatpush1.msra.mxu0 0.0
  %560 = vmatprep.subr.mxu0 0.0
  %561 = vmatpush1.msra.mxu0 0.0
  %562 = vmatprep.subr.mxu0 0.0
  %563 = vmatpush1.msra.mxu0 0.0
  %564 = vmatprep.subr.mxu0 0.0
  %565 = vmatpush1.msra.mxu0 0.0
  %566 = vmatprep.subr.mxu0 0.0
  %567 = vmatpush1.msra.mxu0 0.0
  %568 = vmatprep.subr.mxu0 0.0
  %569 = vmatpush1.msra.mxu0 0.0
  %570 = vmatprep.subr.mxu0 0.0
  %571 = vmatpush1.msra.mxu0 0.0
  %572 = vmatprep.subr.mxu0 0.0
  %573 = vmatpush1.msra.mxu0 0.0
  %574 = vmatprep.subr.mxu0 0.0
  %575 = vmatpush1.msra.mxu0 0.0
  %576 = vmatprep.mubr.f32.mxu0 0.0
  %577 = vmatmul.mubr.f32.gmra.mrb[0].mxu0 %v510
  %v578 = vpop.f32.mrb[0].mxu0
  %v579 = vadd.f32 0.0, %v578
  %v580 = vpop.f32.mrb[0].mxu0
  %581 = vdwg.mxu0
  %582 = vrot.lane.b32.xlu0 %v402, 112
  %v583 = vpop.permute.xlu0 %582
  %584 = vrot.lane.b32.xlu0 %v402, 48
  %v585 = vpop.permute.xlu0 %584
  %v586 = vsel %vm414, %v583, 0
  %v588 = vsel %vm414, %v585, 0
  %590 = vmatprep.subr.mxu0 0.0
  %591 = vmatpush1.xpose.msra.mxu0 %v588
  %592 = vmatprep.subr.mxu0 0.0
  %593 = vmatpush1.xpose.msra.mxu0 0.0
  %594 = vmatprep.subr.mxu0 0.0
  %595 = vmatpush1.xpose.msra.mxu0 0.0
  %596 = vmatprep.subr.mxu0 0.0
  %597 = vmatpush1.xpose.msra.mxu0 0.0
  %598 = vmatprep.subr.mxu0 0.0
  %599 = vmatpush1.xpose.msra.mxu0 0.0
  %600 = vmatprep.subr.mxu0 0.0
  %601 = vmatpush1.xpose.msra.mxu0 0.0
  %602 = vmatprep.subr.mxu0 0.0
  %603 = vmatpush1.xpose.msra.mxu0 0.0
  %604 = vmatprep.subr.mxu0 0.0
  %605 = vmatpush1.xpose.msra.mxu0 0.0
  %606 = vmatprep.subr.mxu0 0.0
  %607 = vmatpush1.xpose.msra.mxu0 0.0
  %608 = vmatprep.subr.mxu0 0.0
  %609 = vmatpush1.xpose.msra.mxu0 0.0
  %610 = vmatprep.subr.mxu0 0.0
  %611 = vmatpush1.xpose.msra.mxu0 0.0
  %612 = vmatprep.subr.mxu0 0.0
  %613 = vmatpush1.xpose.msra.mxu0 0.0
  %614 = vmatprep.subr.mxu0 0.0
  %615 = vmatpush1.xpose.msra.mxu0 0.0
  %616 = vmatprep.subr.mxu0 0.0
  %617 = vmatpush1.xpose.msra.mxu0 0.0
  %618 = vmatprep.subr.mxu0 0.0
  %619 = vmatpush1.xpose.msra.mxu0 0.0
  %620 = vmatprep.subr.mxu0 0.0
  %621 = vmatpush1.xpose.msra.mxu0 0.0
  %622 = vmatprep.subr.mxu0 0.0
  %623 = vmatpush1.xpose.msra.mxu0 0.0
  %624 = vmatprep.subr.mxu0 0.0
  %625 = vmatpush1.xpose.msra.mxu0 0.0
  %626 = vmatprep.subr.mxu0 0.0
  %627 = vmatpush1.xpose.msra.mxu0 0.0
  %628 = vmatprep.subr.mxu0 0.0
  %629 = vmatpush1.xpose.msra.mxu0 0.0
  %630 = vmatprep.subr.mxu0 0.0
  %631 = vmatpush1.xpose.msra.mxu0 0.0
  %632 = vmatprep.subr.mxu0 0.0
  %633 = vmatpush1.xpose.msra.mxu0 0.0
  %634 = vmatprep.subr.mxu0 0.0
  %635 = vmatpush1.xpose.msra.mxu0 0.0
  %636 = vmatprep.subr.mxu0 0.0
  %637 = vmatpush1.xpose.msra.mxu0 0.0
  %638 = vmatprep.subr.mxu0 0.0
  %639 = vmatpush1.xpose.msra.mxu0 0.0
  %640 = vmatprep.subr.mxu0 0.0
  %641 = vmatpush1.xpose.msra.mxu0 0.0
  %642 = vmatprep.subr.mxu0 0.0
  %643 = vmatpush1.xpose.msra.mxu0 0.0
  %644 = vmatprep.subr.mxu0 0.0
  %645 = vmatpush1.xpose.msra.mxu0 0.0
  %646 = vmatprep.subr.mxu0 0.0
  %647 = vmatpush1.xpose.msra.mxu0 0.0
  %648 = vmatprep.subr.mxu0 0.0
  %649 = vmatpush1.xpose.msra.mxu0 0.0
  %650 = vmatprep.subr.mxu0 0.0
  %651 = vmatpush1.xpose.msra.mxu0 0.0
  %652 = vmatprep.subr.mxu0 0.0
  %653 = vmatpush1.xpose.msra.mxu0 0.0
  %654 = vmatprep.mubr.f32.mxu0 0.0
  %655 = vmatmul.mubr.f32.gmra.mrb[0].mxu0 %v586
  %v656 = vpop.f32.mrb[0].mxu0
  %v657 = vadd.f32 0.0, %v656
  %v658 = vpop.f32.mrb[0].mxu0
  %659 = vdwg.mxu0
  %v660 = vmul.f32 %v657, 0.25
  %v661 = vsel %vm495, %v660, -1e+09
  %v662 = vsel %vm497, %v661, -inf
  %663 = vmax.xlane.f32.xlu0 %v662
  %v664 = vpop.xlane.xlu0 %663
  %v665 = vsub.f32 %v661, %v664
  %v666 = vmul.f32 %v665, 1.442695
  %v667 = vpow.pop %v666
  %v668 = vsel %vm497, %v667, 0.0
  %669 = vadd.xlane.f32.xlu0 %v668
  %v670 = vpop.xlane.xlu0 %669
  %v671 = vrcp.pop %v670
  %v672 = vmul.f32 %v667, %v671
  %674 = vrot.lane.b32.xlu0 %v404, 112
  %v675 = vpop.permute.xlu0 %674
  %v678 = vsel %vm497, %v672, 0
  %680 = vmatprep.subr.mxu0 0.0
  %681 = vmatpush1.msra.mxu0 %v675
  %682 = vmatprep.subr.mxu0 0.0
  %683 = vmatpush1.msra.mxu0 0.0
  %684 = vmatprep.subr.mxu0 0.0
  %685 = vmatpush1.msra.mxu0 0.0
  %686 = vmatprep.subr.mxu0 0.0
  %687 = vmatpush1.msra.mxu0 0.0
  %688 = vmatprep.subr.mxu0 0.0
  %689 = vmatpush1.msra.mxu0 0.0
  %690 = vmatprep.subr.mxu0 0.0
  %691 = vmatpush1.msra.mxu0 0.0
  %692 = vmatprep.subr.mxu0 0.0
  %693 = vmatpush1.msra.mxu0 0.0
  %694 = vmatprep.subr.mxu0 0.0
  %695 = vmatpush1.msra.mxu0 0.0
  %696 = vmatprep.subr.mxu0 0.0
  %697 = vmatpush1.msra.mxu0 0.0
  %698 = vmatprep.subr.mxu0 0.0
  %699 = vmatpush1.msra.mxu0 0.0
  %700 = vmatprep.subr.mxu0 0.0
  %701 = vmatpush1.msra.mxu0 0.0
  %702 = vmatprep.subr.mxu0 0.0
  %703 = vmatpush1.msra.mxu0 0.0
  %704 = vmatprep.subr.mxu0 0.0
  %705 = vmatpush1.msra.mxu0 0.0
  %706 = vmatprep.subr.mxu0 0.0
  %707 = vmatpush1.msra.mxu0 0.0
  %708 = vmatprep.subr.mxu0 0.0
  %709 = vmatpush1.msra.mxu0 0.0
  %710 = vmatprep.subr.mxu0 0.0
  %711 = vmatpush1.msra.mxu0 0.0
  %712 = vmatprep.subr.mxu0 0.0
  %713 = vmatpush1.msra.mxu0 0.0
  %714 = vmatprep.subr.mxu0 0.0
  %715 = vmatpush1.msra.mxu0 0.0
  %716 = vmatprep.subr.mxu0 0.0
  %717 = vmatpush1.msra.mxu0 0.0
  %718 = vmatprep.subr.mxu0 0.0
  %719 = vmatpush1.msra.mxu0 0.0
  %720 = vmatprep.subr.mxu0 0.0
  %721 = vmatpush1.msra.mxu0 0.0
  %722 = vmatprep.subr.mxu0 0.0
  %723 = vmatpush1.msra.mxu0 0.0
  %724 = vmatprep.subr.mxu0 0.0
  %725 = vmatpush1.msra.mxu0 0.0
  %726 = vmatprep.subr.mxu0 0.0
  %727 = vmatpush1.msra.mxu0 0.0
  %728 = vmatprep.subr.mxu0 0.0
  %729 = vmatpush1.msra.mxu0 0.0
  %730 = vmatprep.subr.mxu0 0.0
  %731 = vmatpush1.msra.mxu0 0.0
  %732 = vmatprep.subr.mxu0 0.0
  %733 = vmatpush1.msra.mxu0 0.0
  %734 = vmatprep.subr.mxu0 0.0
  %735 = vmatpush1.msra.mxu0 0.0
  %736 = vmatprep.subr.mxu0 0.0
  %737 = vmatpush1.msra.mxu0 0.0
  %738 = vmatprep.subr.mxu0 0.0
  %739 = vmatpush1.msra.mxu0 0.0
  %740 = vmatprep.subr.mxu0 0.0
  %741 = vmatpush1.msra.mxu0 0.0
  %742 = vmatprep.subr.mxu0 0.0
  %743 = vmatpush1.msra.mxu0 0.0
  %744 = vmatprep.mubr.f32.mxu0 0.0
  %745 = vmatmul.mubr.f32.gmra.mrb[0].mxu0 %v678
  %v746 = vpop.f32.mrb[0].mxu0
  %v747 = vadd.f32 0.0, %v746
  %v748 = vpop.f32.mrb[0].mxu0
  %749 = vdwg.mxu0
  %750 = vrot.lane.b32.xlu0 %v402, 96
  %v751 = vpop.permute.xlu0 %750
  %752 = vrot.lane.b32.xlu0 %v402, 32
  %v753 = vpop.permute.xlu0 %752
  %v754 = vsel %vm414, %v751, 0
  %v756 = vsel %vm414, %v753, 0
  %758 = vmatprep.subr.mxu0 0.0
  %759 = vmatpush1.xpose.msra.mxu0 %v756
  %760 = vmatprep.subr.mxu0 0.0
  %761 = vmatpush1.xpose.msra.mxu0 0.0
  %762 = vmatprep.subr.mxu0 0.0
  %763 = vmatpush1.xpose.msra.mxu0 0.0
  %764 = vmatprep.subr.mxu0 0.0
  %765 = vmatpush1.xpose.msra.mxu0 0.0
  %766 = vmatprep.subr.mxu0 0.0
  %767 = vmatpush1.xpose.msra.mxu0 0.0
  %768 = vmatprep.subr.mxu0 0.0
  %769 = vmatpush1.xpose.msra.mxu0 0.0
  %770 = vmatprep.subr.mxu0 0.0
  %771 = vmatpush1.xpose.msra.mxu0 0.0
  %772 = vmatprep.subr.mxu0 0.0
  %773 = vmatpush1.xpose.msra.mxu0 0.0
  %774 = vmatprep.subr.mxu0 0.0
  %775 = vmatpush1.xpose.msra.mxu0 0.0
  %776 = vmatprep.subr.mxu0 0.0
  %777 = vmatpush1.xpose.msra.mxu0 0.0
  %778 = vmatprep.subr.mxu0 0.0
  %779 = vmatpush1.xpose.msra.mxu0 0.0
  %780 = vmatprep.subr.mxu0 0.0
  %781 = vmatpush1.xpose.msra.mxu0 0.0
  %782 = vmatprep.subr.mxu0 0.0
  %783 = vmatpush1.xpose.msra.mxu0 0.0
  %784 = vmatprep.subr.mxu0 0.0
  %785 = vmatpush1.xpose.msra.mxu0 0.0
  %786 = vmatprep.subr.mxu0 0.0
  %787 = vmatpush1.xpose.msra.mxu0 0.0
  %788 = vmatprep.subr.mxu0 0.0
  %789 = vmatpush1.xpose.msra.mxu0 0.0
  %790 = vmatprep.subr.mxu0 0.0
  %791 = vmatpush1.xpose.msra.mxu0 0.0
  %792 = vmatprep.subr.mxu0 0.0
  %793 = vmatpush1.xpose.msra.mxu0 0.0
  %794 = vmatprep.subr.mxu0 0.0
  %795 = vmatpush1.xpose.msra.mxu0 0.0
  %796 = vmatprep.subr.mxu0 0.0
  %797 = vmatpush1.xpose.msra.mxu0 0.0
  %798 = vmatprep.subr.mxu0 0.0
  %799 = vmatpush1.xpose.msra.mxu0 0.0
  %800 = vmatprep.subr.mxu0 0.0
  %801 = vmatpush1.xpose.msra.mxu0 0.0
  %802 = vmatprep.subr.mxu0 0.0
  %803 = vmatpush1.xpose.msra.mxu0 0.0
  %804 = vmatprep.subr.mxu0 0.0
  %805 = vmatpush1.xpose.msra.mxu0 0.0
  %806 = vmatprep.subr.mxu0 0.0
  %807 = vmatpush1.xpose.msra.mxu0 0.0
  %808 = vmatprep.subr.mxu0 0.0
  %809 = vmatpush1.xpose.msra.mxu0 0.0
  %810 = vmatprep.subr.mxu0 0.0
  %811 = vmatpush1.xpose.msra.mxu0 0.0
  %812 = vmatprep.subr.mxu0 0.0
  %813 = vmatpush1.xpose.msra.mxu0 0.0
  %814 = vmatprep.subr.mxu0 0.0
  %815 = vmatpush1.xpose.msra.mxu0 0.0
  %816 = vmatprep.subr.mxu0 0.0
  %817 = vmatpush1.xpose.msra.mxu0 0.0
  %818 = vmatprep.subr.mxu0 0.0
  %819 = vmatpush1.xpose.msra.mxu0 0.0
  %820 = vmatprep.subr.mxu0 0.0
  %821 = vmatpush1.xpose.msra.mxu0 0.0
  %822 = vmatprep.mubr.f32.mxu0 0.0
  %823 = vmatmul.mubr.f32.gmra.mrb[0].mxu0 %v754
  %v824 = vpop.f32.mrb[0].mxu0
  %v825 = vadd.f32 0.0, %v824
  %v826 = vpop.f32.mrb[0].mxu0
  %827 = vdwg.mxu0
  %v828 = vmul.f32 %v825, 0.25
  %v829 = vsel %vm495, %v828, -1e+09
  %v830 = vsel %vm497, %v829, -inf
  %831 = vmax.xlane.f32.xlu0 %v830
  %v832 = vpop.xlane.xlu0 %831
  %v833 = vsub.f32 %v829, %v832
  %v834 = vmul.f32 %v833, 1.442695
  %v835 = vpow.pop %v834
  %v836 = vsel %vm497, %v835, 0.0
  %837 = vadd.xlane.f32.xlu0 %v836
  %v838 = vpop.xlane.xlu0 %837
  %v839 = vrcp.pop %v838
  %v840 = vmul.f32 %v835, %v839
  %841 = vrot.lane.b32.xlu0 %v404, 96
  %v842 = vpop.permute.xlu0 %841
  %v845 = vsel %vm497, %v840, 0
  %847 = vmatprep.subr.mxu0 0.0
  %848 = vmatpush1.msra.mxu0 %v842
  %849 = vmatprep.subr.mxu0 0.0
  %850 = vmatpush1.msra.mxu0 0.0
  %851 = vmatprep.subr.mxu0 0.0
  %852 = vmatpush1.msra.mxu0 0.0
  %853 = vmatprep.subr.mxu0 0.0
  %854 = vmatpush1.msra.mxu0 0.0
  %855 = vmatprep.subr.mxu0 0.0
  %856 = vmatpush1.msra.mxu0 0.0
  %857 = vmatprep.subr.mxu0 0.0
  %858 = vmatpush1.msra.mxu0 0.0
  %859 = vmatprep.subr.mxu0 0.0
  %860 = vmatpush1.msra.mxu0 0.0
  %861 = vmatprep.subr.mxu0 0.0
  %862 = vmatpush1.msra.mxu0 0.0
  %863 = vmatprep.subr.mxu0 0.0
  %864 = vmatpush1.msra.mxu0 0.0
  %865 = vmatprep.subr.mxu0 0.0
  %866 = vmatpush1.msra.mxu0 0.0
  %867 = vmatprep.subr.mxu0 0.0
  %868 = vmatpush1.msra.mxu0 0.0
  %869 = vmatprep.subr.mxu0 0.0
  %870 = vmatpush1.msra.mxu0 0.0
  %871 = vmatprep.subr.mxu0 0.0
  %872 = vmatpush1.msra.mxu0 0.0
  %873 = vmatprep.subr.mxu0 0.0
  %874 = vmatpush1.msra.mxu0 0.0
  %875 = vmatprep.subr.mxu0 0.0
  %876 = vmatpush1.msra.mxu0 0.0
  %877 = vmatprep.subr.mxu0 0.0
  %878 = vmatpush1.msra.mxu0 0.0
  %879 = vmatprep.subr.mxu0 0.0
  %880 = vmatpush1.msra.mxu0 0.0
  %881 = vmatprep.subr.mxu0 0.0
  %882 = vmatpush1.msra.mxu0 0.0
  %883 = vmatprep.subr.mxu0 0.0
  %884 = vmatpush1.msra.mxu0 0.0
  %885 = vmatprep.subr.mxu0 0.0
  %886 = vmatpush1.msra.mxu0 0.0
  %887 = vmatprep.subr.mxu0 0.0
  %888 = vmatpush1.msra.mxu0 0.0
  %889 = vmatprep.subr.mxu0 0.0
  %890 = vmatpush1.msra.mxu0 0.0
  %891 = vmatprep.subr.mxu0 0.0
  %892 = vmatpush1.msra.mxu0 0.0
  %893 = vmatprep.subr.mxu0 0.0
  %894 = vmatpush1.msra.mxu0 0.0
  %895 = vmatprep.subr.mxu0 0.0
  %896 = vmatpush1.msra.mxu0 0.0
  %897 = vmatprep.subr.mxu0 0.0
  %898 = vmatpush1.msra.mxu0 0.0
  %899 = vmatprep.subr.mxu0 0.0
  %900 = vmatpush1.msra.mxu0 0.0
  %901 = vmatprep.subr.mxu0 0.0
  %902 = vmatpush1.msra.mxu0 0.0
  %903 = vmatprep.subr.mxu0 0.0
  %904 = vmatpush1.msra.mxu0 0.0
  %905 = vmatprep.subr.mxu0 0.0
  %906 = vmatpush1.msra.mxu0 0.0
  %907 = vmatprep.subr.mxu0 0.0
  %908 = vmatpush1.msra.mxu0 0.0
  %909 = vmatprep.subr.mxu0 0.0
  %910 = vmatpush1.msra.mxu0 0.0
  %911 = vmatprep.mubr.f32.mxu0 0.0
  %912 = vmatmul.mubr.f32.gmra.mrb[0].mxu0 %v845
  %v913 = vpop.f32.mrb[0].mxu0
  %v914 = vadd.f32 0.0, %v913
  %v915 = vpop.f32.mrb[0].mxu0
  %916 = vdwg.mxu0
  %917 = vrot.lane.b32.xlu0 %v402, 80
  %v918 = vpop.permute.xlu0 %917
  %919 = vrot.lane.b32.xlu0 %v402, 16
  %v920 = vpop.permute.xlu0 %919
  %v921 = vsel %vm414, %v918, 0
  %v923 = vsel %vm414, %v920, 0
  %925 = vmatprep.subr.mxu0 0.0
  %926 = vmatpush1.xpose.msra.mxu0 %v923
  %927 = vmatprep.subr.mxu0 0.0
  %928 = vmatpush1.xpose.msra.mxu0 0.0
  %929 = vmatprep.subr.mxu0 0.0
  %930 = vmatpush1.xpose.msra.mxu0 0.0
  %931 = vmatprep.subr.mxu0 0.0
  %932 = vmatpush1.xpose.msra.mxu0 0.0
  %933 = vmatprep.subr.mxu0 0.0
  %934 = vmatpush1.xpose.msra.mxu0 0.0
  %935 = vmatprep.subr.mxu0 0.0
  %936 = vmatpush1.xpose.msra.mxu0 0.0
  %937 = vmatprep.subr.mxu0 0.0
  %938 = vmatpush1.xpose.msra.mxu0 0.0
  %939 = vmatprep.subr.mxu0 0.0
  %940 = vmatpush1.xpose.msra.mxu0 0.0
  %941 = vmatprep.subr.mxu0 0.0
  %942 = vmatpush1.xpose.msra.mxu0 0.0
  %943 = vmatprep.subr.mxu0 0.0
  %944 = vmatpush1.xpose.msra.mxu0 0.0
  %945 = vmatprep.subr.mxu0 0.0
  %946 = vmatpush1.xpose.msra.mxu0 0.0
  %947 = vmatprep.subr.mxu0 0.0
  %948 = vmatpush1.xpose.msra.mxu0 0.0
  %949 = vmatprep.subr.mxu0 0.0
  %950 = vmatpush1.xpose.msra.mxu0 0.0
  %951 = vmatprep.subr.mxu0 0.0
  %952 = vmatpush1.xpose.msra.mxu0 0.0
  %953 = vmatprep.subr.mxu0 0.0
  %954 = vmatpush1.xpose.msra.mxu0 0.0
  %955 = vmatprep.subr.mxu0 0.0
  %956 = vmatpush1.xpose.msra.mxu0 0.0
  %957 = vmatprep.subr.mxu0 0.0
  %958 = vmatpush1.xpose.msra.mxu0 0.0
  %959 = vmatprep.subr.mxu0 0.0
  %960 = vmatpush1.xpose.msra.mxu0 0.0
  %961 = vmatprep.subr.mxu0 0.0
  %962 = vmatpush1.xpose.msra.mxu0 0.0
  %963 = vmatprep.subr.mxu0 0.0
  %964 = vmatpush1.xpose.msra.mxu0 0.0
  %965 = vmatprep.subr.mxu0 0.0
  %966 = vmatpush1.xpose.msra.mxu0 0.0
  %967 = vmatprep.subr.mxu0 0.0
  %968 = vmatpush1.xpose.msra.mxu0 0.0
  %969 = vmatprep.subr.mxu0 0.0
  %970 = vmatpush1.xpose.msra.mxu0 0.0
  %971 = vmatprep.subr.mxu0 0.0
  %972 = vmatpush1.xpose.msra.mxu0 0.0
  %973 = vmatprep.subr.mxu0 0.0
  %974 = vmatpush1.xpose.msra.mxu0 0.0
  %975 = vmatprep.subr.mxu0 0.0
  %976 = vmatpush1.xpose.msra.mxu0 0.0
  %977 = vmatprep.subr.mxu0 0.0
  %978 = vmatpush1.xpose.msra.mxu0 0.0
  %979 = vmatprep.subr.mxu0 0.0
  %980 = vmatpush1.xpose.msra.mxu0 0.0
  %981 = vmatprep.subr.mxu0 0.0
  %982 = vmatpush1.xpose.msra.mxu0 0.0
  %983 = vmatprep.subr.mxu0 0.0
  %984 = vmatpush1.xpose.msra.mxu0 0.0
  %985 = vmatprep.subr.mxu0 0.0
  %986 = vmatpush1.xpose.msra.mxu0 0.0
  %987 = vmatprep.subr.mxu0 0.0
  %988 = vmatpush1.xpose.msra.mxu0 0.0
  %989 = vmatprep.mubr.f32.mxu0 0.0
  %990 = vmatmul.mubr.f32.gmra.mrb[0].mxu0 %v921
  %v991 = vpop.f32.mrb[0].mxu0
  %v992 = vadd.f32 0.0, %v991
  %v993 = vpop.f32.mrb[0].mxu0
  %994 = vdwg.mxu0
  %v995 = vmul.f32 %v992, 0.25
  %v996 = vsel %vm495, %v995, -1e+09
  %v997 = vsel %vm497, %v996, -inf
  %998 = vmax.xlane.f32.xlu0 %v997
  %v999 = vpop.xlane.xlu0 %998
  %v1000 = vsub.f32 %v996, %v999
  %v1001 = vmul.f32 %v1000, 1.442695
  %v1002 = vpow.pop %v1001
  %v1003 = vsel %vm497, %v1002, 0.0
  %1004 = vadd.xlane.f32.xlu0 %v1003
  %v1005 = vpop.xlane.xlu0 %1004
  %v1006 = vrcp.pop %v1005
  %v1007 = vmul.f32 %v1002, %v1006
  %1008 = vrot.lane.b32.xlu0 %v404, 80
  %v1009 = vpop.permute.xlu0 %1008
  %v1012 = vsel %vm497, %v1007, 0
  %1014 = vmatprep.subr.mxu0 0.0
  %1015 = vmatpush1.msra.mxu0 %v1009
  %1016 = vmatprep.subr.mxu0 0.0
  %1017 = vmatpush1.msra.mxu0 0.0
  %1018 = vmatprep.subr.mxu0 0.0
  %1019 = vmatpush1.msra.mxu0 0.0
  %1020 = vmatprep.subr.mxu0 0.0
  %1021 = vmatpush1.msra.mxu0 0.0
  %1022 = vmatprep.subr.mxu0 0.0
  %1023 = vmatpush1.msra.mxu0 0.0
  %1024 = vmatprep.subr.mxu0 0.0
  %1025 = vmatpush1.msra.mxu0 0.0
  %1026 = vmatprep.subr.mxu0 0.0
  %1027 = vmatpush1.msra.mxu0 0.0
  %1028 = vmatprep.subr.mxu0 0.0
  %1029 = vmatpush1.msra.mxu0 0.0
  %1030 = vmatprep.subr.mxu0 0.0
  %1031 = vmatpush1.msra.mxu0 0.0
  %1032 = vmatprep.subr.mxu0 0.0
  %1033 = vmatpush1.msra.mxu0 0.0
  %1034 = vmatprep.subr.mxu0 0.0
  %1035 = vmatpush1.msra.mxu0 0.0
  %1036 = vmatprep.subr.mxu0 0.0
  %1037 = vmatpush1.msra.mxu0 0.0
  %1038 = vmatprep.subr.mxu0 0.0
  %1039 = vmatpush1.msra.mxu0 0.0
  %1040 = vmatprep.subr.mxu0 0.0
  %1041 = vmatpush1.msra.mxu0 0.0
  %1042 = vmatprep.subr.mxu0 0.0
  %1043 = vmatpush1.msra.mxu0 0.0
  %1044 = vmatprep.subr.mxu0 0.0
  %1045 = vmatpush1.msra.mxu0 0.0
  %1046 = vmatprep.subr.mxu0 0.0
  %1047 = vmatpush1.msra.mxu0 0.0
  %1048 = vmatprep.subr.mxu0 0.0
  %1049 = vmatpush1.msra.mxu0 0.0
  %1050 = vmatprep.subr.mxu0 0.0
  %1051 = vmatpush1.msra.mxu0 0.0
  %1052 = vmatprep.subr.mxu0 0.0
  %1053 = vmatpush1.msra.mxu0 0.0
  %1054 = vmatprep.subr.mxu0 0.0
  %1055 = vmatpush1.msra.mxu0 0.0
  %1056 = vmatprep.subr.mxu0 0.0
  %1057 = vmatpush1.msra.mxu0 0.0
  %1058 = vmatprep.subr.mxu0 0.0
  %1059 = vmatpush1.msra.mxu0 0.0
  %1060 = vmatprep.subr.mxu0 0.0
  %1061 = vmatpush1.msra.mxu0 0.0
  %1062 = vmatprep.subr.mxu0 0.0
  %1063 = vmatpush1.msra.mxu0 0.0
  %1064 = vmatprep.subr.mxu0 0.0
  %1065 = vmatpush1.msra.mxu0 0.0
  %1066 = vmatprep.subr.mxu0 0.0
  %1067 = vmatpush1.msra.mxu0 0.0
  %1068 = vmatprep.subr.mxu0 0.0
  %1069 = vmatpush1.msra.mxu0 0.0
  %1070 = vmatprep.subr.mxu0 0.0
  %1071 = vmatpush1.msra.mxu0 0.0
  %1072 = vmatprep.subr.mxu0 0.0
  %1073 = vmatpush1.msra.mxu0 0.0
  %1074 = vmatprep.subr.mxu0 0.0
  %1075 = vmatpush1.msra.mxu0 0.0
  %1076 = vmatprep.subr.mxu0 0.0
  %1077 = vmatpush1.msra.mxu0 0.0
  %1078 = vmatprep.mubr.f32.mxu0 0.0
  %1079 = vmatmul.mubr.f32.gmra.mrb[0].mxu0 %v1012
  %v1080 = vpop.f32.mrb[0].mxu0
  %v1081 = vadd.f32 0.0, %v1080
  %v1082 = vpop.f32.mrb[0].mxu0
  %1083 = vdwg.mxu0
  %1085 = vrot.lane.b32.xlu0 %v747, 16
  %v1086 = vpop.permute.xlu0 %1085
  %1089 = vrot.lane.b32.xlu0 %v914, 32
  %v1090 = vpop.permute.xlu0 %1089
  %1093 = vrot.lane.b32.xlu0 %v1081, 48
  %v1094 = vpop.permute.xlu0 %1093
  %v1096 = vsel %vm414, %v579, %v1086
  %vm1097 = vcmask 261120
  %v1098 = vsel %vm1097, %v1096, %v1090
  %vm1099 = vcmask 392192
  %v1100 = vsel %vm1099, %v1098, %v1094
  %1102 = vrot.lane.b32.xlu0 %v406, 64
  %v1103 = vpop.permute.xlu0 %1102
  %v1104 = vsel %vm414, %v406, 0
  %v1106 = vsel %vm414, %v1103, 0
  %1108 = vmatprep.subr.mxu0 0.0
  %1109 = vmatpush1.xpose.msra.mxu0 %v1106
  %1110 = vmatprep.subr.mxu0 0.0
  %1111 = vmatpush1.xpose.msra.mxu0 0.0
  %1112 = vmatprep.subr.mxu0 0.0
  %1113 = vmatpush1.xpose.msra.mxu0 0.0
  %1114 = vmatprep.subr.mxu0 0.0
  %1115 = vmatpush1.xpose.msra.mxu0 0.0
  %1116 = vmatprep.subr.mxu0 0.0
  %1117 = vmatpush1.xpose.msra.mxu0 0.0
  %1118 = vmatprep.subr.mxu0 0.0
  %1119 = vmatpush1.xpose.msra.mxu0 0.0
  %1120 = vmatprep.subr.mxu0 0.0
  %1121 = vmatpush1.xpose.msra.mxu0 0.0
  %1122 = vmatprep.subr.mxu0 0.0
  %1123 = vmatpush1.xpose.msra.mxu0 0.0
  %1124 = vmatprep.subr.mxu0 0.0
  %1125 = vmatpush1.xpose.msra.mxu0 0.0
  %1126 = vmatprep.subr.mxu0 0.0
  %1127 = vmatpush1.xpose.msra.mxu0 0.0
  %1128 = vmatprep.subr.mxu0 0.0
  %1129 = vmatpush1.xpose.msra.mxu0 0.0
  %1130 = vmatprep.subr.mxu0 0.0
  %1131 = vmatpush1.xpose.msra.mxu0 0.0
  %1132 = vmatprep.subr.mxu0 0.0
  %1133 = vmatpush1.xpose.msra.mxu0 0.0
  %1134 = vmatprep.subr.mxu0 0.0
  %1135 = vmatpush1.xpose.msra.mxu0 0.0
  %1136 = vmatprep.subr.mxu0 0.0
  %1137 = vmatpush1.xpose.msra.mxu0 0.0
  %1138 = vmatprep.subr.mxu0 0.0
  %1139 = vmatpush1.xpose.msra.mxu0 0.0
  %1140 = vmatprep.subr.mxu0 0.0
  %1141 = vmatpush1.xpose.msra.mxu0 0.0
  %1142 = vmatprep.subr.mxu0 0.0
  %1143 = vmatpush1.xpose.msra.mxu0 0.0
  %1144 = vmatprep.subr.mxu0 0.0
  %1145 = vmatpush1.xpose.msra.mxu0 0.0
  %1146 = vmatprep.subr.mxu0 0.0
  %1147 = vmatpush1.xpose.msra.mxu0 0.0
  %1148 = vmatprep.subr.mxu0 0.0
  %1149 = vmatpush1.xpose.msra.mxu0 0.0
  %1150 = vmatprep.subr.mxu0 0.0
  %1151 = vmatpush1.xpose.msra.mxu0 0.0
  %1152 = vmatprep.subr.mxu0 0.0
  %1153 = vmatpush1.xpose.msra.mxu0 0.0
  %1154 = vmatprep.subr.mxu0 0.0
  %1155 = vmatpush1.xpose.msra.mxu0 0.0
  %1156 = vmatprep.subr.mxu0 0.0
  %1157 = vmatpush1.xpose.msra.mxu0 0.0
  %1158 = vmatprep.subr.mxu0 0.0
  %1159 = vmatpush1.xpose.msra.mxu0 0.0
  %1160 = vmatprep.subr.mxu0 0.0
  %1161 = vmatpush1.xpose.msra.mxu0 0.0
  %1162 = vmatprep.subr.mxu0 0.0
  %1163 = vmatpush1.xpose.msra.mxu0 0.0
  %1164 = vmatprep.subr.mxu0 0.0
  %1165 = vmatpush1.xpose.msra.mxu0 0.0
  %1166 = vmatprep.subr.mxu0 0.0
  %1167 = vmatpush1.xpose.msra.mxu0 0.0
  %1168 = vmatprep.subr.mxu0 0.0
  %1169 = vmatpush1.xpose.msra.mxu0 0.0
  %1170 = vmatprep.subr.mxu0 0.0
  %1171 = vmatpush1.xpose.msra.mxu0 0.0
  %1172 = vmatprep.mubr.f32.mxu0 0.0
  %1173 = vmatmul.mubr.f32.gmra.mrb[0].mxu0 %v1104
  %v1174 = vpop.f32.mrb[0].mxu0
  %v1175 = vadd.f32 0.0, %v1174
  %v1176 = vpop.f32.mrb[0].mxu0
  %1177 = vdwg.mxu0
  %v1178 = vmul.f32 %v1175, 0.25
  %v1179 = vlaneseq
  %v1180 = vshrl.u32 %v1179, 7
  %v1181 = vsub.s32 1, %v1180
  %v1182 = vrot.slane %v490, %v1181
  %vm1183 = vcmp.eq.s32.totalorder %v1182, 1
  %v1184 = vsel %vm1183, %v1178, -1e+09
  %v1185 = vsel %vm497, %v1184, -inf
  %1186 = vmax.xlane.f32.xlu0 %v1185
  %v1187 = vpop.xlane.xlu0 %1186
  %v1188 = vsub.f32 %v1184, %v1187
  %v1189 = vmul.f32 %v1188, 1.442695
  %v1190 = vpow.pop %v1189
  %v1191 = vsel %vm497, %v1190, 0.0
  %1192 = vadd.xlane.f32.xlu0 %v1191
  %v1193 = vpop.xlane.xlu0 %1192
  %v1194 = vrcp.pop %v1193
  %v1195 = vmul.f32 %v1190, %v1194
  %v1197 = vsel %vm497, %v1195, 0
  %1199 = vmatprep.subr.mxu0 0.0
  %1200 = vmatpush1.msra.mxu0 %v408
  %1201 = vmatprep.subr.mxu0 0.0
  %1202 = vmatpush1.msra.mxu0 0.0
  %1203 = vmatprep.subr.mxu0 0.0
  %1204 = vmatpush1.msra.mxu0 0.0
  %1205 = vmatprep.subr.mxu0 0.0
  %1206 = vmatpush1.msra.mxu0 0.0
  %1207 = vmatprep.subr.mxu0 0.0
  %1208 = vmatpush1.msra.mxu0 0.0
  %1209 = vmatprep.subr.mxu0 0.0
  %1210 = vmatpush1.msra.mxu0 0.0
  %1211 = vmatprep.subr.mxu0 0.0
  %1212 = vmatpush1.msra.mxu0 0.0
  %1213 = vmatprep.subr.mxu0 0.0
  %1214 = vmatpush1.msra.mxu0 0.0
  %1215 = vmatprep.subr.mxu0 0.0
  %1216 = vmatpush1.msra.mxu0 0.0
  %1217 = vmatprep.subr.mxu0 0.0
  %1218 = vmatpush1.msra.mxu0 0.0
  %1219 = vmatprep.subr.mxu0 0.0
  %1220 = vmatpush1.msra.mxu0 0.0
  %1221 = vmatprep.subr.mxu0 0.0
  %1222 = vmatpush1.msra.mxu0 0.0
  %1223 = vmatprep.subr.mxu0 0.0
  %1224 = vmatpush1.msra.mxu0 0.0
  %1225 = vmatprep.subr.mxu0 0.0
  %1226 = vmatpush1.msra.mxu0 0.0
  %1227 = vmatprep.subr.mxu0 0.0
  %1228 = vmatpush1.msra.mxu0 0.0
  %1229 = vmatprep.subr.mxu0 0.0
  %1230 = vmatpush1.msra.mxu0 0.0
  %1231 = vmatprep.subr.mxu0 0.0
  %1232 = vmatpush1.msra.mxu0 0.0
  %1233 = vmatprep.subr.mxu0 0.0
  %1234 = vmatpush1.msra.mxu0 0.0
  %1235 = vmatprep.subr.mxu0 0.0
  %1236 = vmatpush1.msra.mxu0 0.0
  %1237 = vmatprep.subr.mxu0 0.0
  %1238 = vmatpush1.msra.mxu0 0.0
  %1239 = vmatprep.subr.mxu0 0.0
  %1240 = vmatpush1.msra.mxu0 0.0
  %1241 = vmatprep.subr.mxu0 0.0
  %1242 = vmatpush1.msra.mxu0 0.0
  %1243 = vmatprep.subr.mxu0 0.0
  %1244 = vmatpush1.msra.mxu0 0.0
  %1245 = vmatprep.subr.mxu0 0.0
  %1246 = vmatpush1.msra.mxu0 0.0
  %1247 = vmatprep.subr.mxu0 0.0
  %1248 = vmatpush1.msra.mxu0 0.0
  %1249 = vmatprep.subr.mxu0 0.0
  %1250 = vmatpush1.msra.mxu0 0.0
  %1251 = vmatprep.subr.mxu0 0.0
  %1252 = vmatpush1.msra.mxu0 0.0
  %1253 = vmatprep.subr.mxu0 0.0
  %1254 = vmatpush1.msra.mxu0 0.0
  %1255 = vmatprep.subr.mxu0 0.0
  %1256 = vmatpush1.msra.mxu0 0.0
  %1257 = vmatprep.subr.mxu0 0.0
  %1258 = vmatpush1.msra.mxu0 0.0
  %1259 = vmatprep.subr.mxu0 0.0
  %1260 = vmatpush1.msra.mxu0 0.0
  %1261 = vmatprep.subr.mxu0 0.0
  %1262 = vmatpush1.msra.mxu0 0.0
  %1263 = vmatprep.mubr.f32.mxu0 0.0
  %1264 = vmatmul.mubr.f32.gmra.mrb[0].mxu0 %v1197
  %v1265 = vpop.f32.mrb[0].mxu0
  %v1266 = vadd.f32 0.0, %v1265
  %v1267 = vpop.f32.mrb[0].mxu0
  %1268 = vdwg.mxu0
  %1269 = vrot.lane.b32.xlu0 %v406, 112
  %v1270 = vpop.permute.xlu0 %1269
  %1271 = vrot.lane.b32.xlu0 %v406, 48
  %v1272 = vpop.permute.xlu0 %1271
  %v1273 = vsel %vm414, %v1270, 0
  %v1275 = vsel %vm414, %v1272, 0
  %1277 = vmatprep.subr.mxu0 0.0
  %1278 = vmatpush1.xpose.msra.mxu0 %v1275
  %1279 = vmatprep.subr.mxu0 0.0
  %1280 = vmatpush1.xpose.msra.mxu0 0.0
  %1281 = vmatprep.subr.mxu0 0.0
  %1282 = vmatpush1.xpose.msra.mxu0 0.0
  %1283 = vmatprep.subr.mxu0 0.0
  %1284 = vmatpush1.xpose.msra.mxu0 0.0
  %1285 = vmatprep.subr.mxu0 0.0
  %1286 = vmatpush1.xpose.msra.mxu0 0.0
  %1287 = vmatprep.subr.mxu0 0.0
  %1288 = vmatpush1.xpose.msra.mxu0 0.0
  %1289 = vmatprep.subr.mxu0 0.0
  %1290 = vmatpush1.xpose.msra.mxu0 0.0
  %1291 = vmatprep.subr.mxu0 0.0
  %1292 = vmatpush1.xpose.msra.mxu0 0.0
  %1293 = vmatprep.subr.mxu0 0.0
  %1294 = vmatpush1.xpose.msra.mxu0 0.0
  %1295 = vmatprep.subr.mxu0 0.0
  %1296 = vmatpush1.xpose.msra.mxu0 0.0
  %1297 = vmatprep.subr.mxu0 0.0
  %1298 = vmatpush1.xpose.msra.mxu0 0.0
  %1299 = vmatprep.subr.mxu0 0.0
  %1300 = vmatpush1.xpose.msra.mxu0 0.0
  %1301 = vmatprep.subr.mxu0 0.0
  %1302 = vmatpush1.xpose.msra.mxu0 0.0
  %1303 = vmatprep.subr.mxu0 0.0
  %1304 = vmatpush1.xpose.msra.mxu0 0.0
  %1305 = vmatprep.subr.mxu0 0.0
  %1306 = vmatpush1.xpose.msra.mxu0 0.0
  %1307 = vmatprep.subr.mxu0 0.0
  %1308 = vmatpush1.xpose.msra.mxu0 0.0
  %1309 = vmatprep.subr.mxu0 0.0
  %1310 = vmatpush1.xpose.msra.mxu0 0.0
  %1311 = vmatprep.subr.mxu0 0.0
  %1312 = vmatpush1.xpose.msra.mxu0 0.0
  %1313 = vmatprep.subr.mxu0 0.0
  %1314 = vmatpush1.xpose.msra.mxu0 0.0
  %1315 = vmatprep.subr.mxu0 0.0
  %1316 = vmatpush1.xpose.msra.mxu0 0.0
  %1317 = vmatprep.subr.mxu0 0.0
  %1318 = vmatpush1.xpose.msra.mxu0 0.0
  %1319 = vmatprep.subr.mxu0 0.0
  %1320 = vmatpush1.xpose.msra.mxu0 0.0
  %1321 = vmatprep.subr.mxu0 0.0
  %1322 = vmatpush1.xpose.msra.mxu0 0.0
  %1323 = vmatprep.subr.mxu0 0.0
  %1324 = vmatpush1.xpose.msra.mxu0 0.0
  %1325 = vmatprep.subr.mxu0 0.0
  %1326 = vmatpush1.xpose.msra.mxu0 0.0
  %1327 = vmatprep.subr.mxu0 0.0
  %1328 = vmatpush1.xpose.msra.mxu0 0.0
  %1329 = vmatprep.subr.mxu0 0.0
  %1330 = vmatpush1.xpose.msra.mxu0 0.0
  %1331 = vmatprep.subr.mxu0 0.0
  %1332 = vmatpush1.xpose.msra.mxu0 0.0
  %1333 = vmatprep.subr.mxu0 0.0
  %1334 = vmatpush1.xpose.msra.mxu0 0.0
  %1335 = vmatprep.subr.mxu0 0.0
  %1336 = vmatpush1.xpose.msra.mxu0 0.0
  %1337 = vmatprep.subr.mxu0 0.0
  %1338 = vmatpush1.xpose.msra.mxu0 0.0
  %1339 = vmatprep.subr.mxu0 0.0
  %1340 = vmatpush1.xpose.msra.mxu0 0.0
  %1341 = vmatprep.mubr.f32.mxu0 0.0
  %1342 = vmatmul.mubr.f32.gmra.mrb[0].mxu0 %v1273
  %v1343 = vpop.f32.mrb[0].mxu0
  %v1344 = vadd.f32 0.0, %v1343
  %v1345 = vpop.f32.mrb[0].mxu0
  %1346 = vdwg.mxu0
  %v1347 = vmul.f32 %v1344, 0.25
  %v1348 = vsel %vm1183, %v1347, -1e+09
  %v1349 = vsel %vm497, %v1348, -inf
  %1350 = vmax.xlane.f32.xlu0 %v1349
  %v1351 = vpop.xlane.xlu0 %1350
  %v1352 = vsub.f32 %v1348, %v1351
  %v1353 = vmul.f32 %v1352, 1.442695
  %v1354 = vpow.pop %v1353
  %v1355 = vsel %vm497, %v1354, 0.0
  %1356 = vadd.xlane.f32.xlu0 %v1355
  %v1357 = vpop.xlane.xlu0 %1356
  %v1358 = vrcp.pop %v1357
  %v1359 = vmul.f32 %v1354, %v1358
  %1361 = vrot.lane.b32.xlu0 %v408, 112
  %v1362 = vpop.permute.xlu0 %1361
  %v1365 = vsel %vm497, %v1359, 0
  %1367 = vmatprep.subr.mxu0 0.0
  %1368 = vmatpush1.msra.mxu0 %v1362
  %1369 = vmatprep.subr.mxu0 0.0
  %1370 = vmatpush1.msra.mxu0 0.0
  %1371 = vmatprep.subr.mxu0 0.0
  %1372 = vmatpush1.msra.mxu0 0.0
  %1373 = vmatprep.subr.mxu0 0.0
  %1374 = vmatpush1.msra.mxu0 0.0
  %1375 = vmatprep.subr.mxu0 0.0
  %1376 = vmatpush1.msra.mxu0 0.0
  %1377 = vmatprep.subr.mxu0 0.0
  %1378 = vmatpush1.msra.mxu0 0.0
  %1379 = vmatprep.subr.mxu0 0.0
  %1380 = vmatpush1.msra.mxu0 0.0
  %1381 = vmatprep.subr.mxu0 0.0
  %1382 = vmatpush1.msra.mxu0 0.0
  %1383 = vmatprep.subr.mxu0 0.0
  %1384 = vmatpush1.msra.mxu0 0.0
  %1385 = vmatprep.subr.mxu0 0.0
  %1386 = vmatpush1.msra.mxu0 0.0
  %1387 = vmatprep.subr.mxu0 0.0
  %1388 = vmatpush1.msra.mxu0 0.0
  %1389 = vmatprep.subr.mxu0 0.0
  %1390 = vmatpush1.msra.mxu0 0.0
  %1391 = vmatprep.subr.mxu0 0.0
  %1392 = vmatpush1.msra.mxu0 0.0
  %1393 = vmatprep.subr.mxu0 0.0
  %1394 = vmatpush1.msra.mxu0 0.0
  %1395 = vmatprep.subr.mxu0 0.0
  %1396 = vmatpush1.msra.mxu0 0.0
  %1397 = vmatprep.subr.mxu0 0.0
  %1398 = vmatpush1.msra.mxu0 0.0
  %1399 = vmatprep.subr.mxu0 0.0
  %1400 = vmatpush1.msra.mxu0 0.0
  %1401 = vmatprep.subr.mxu0 0.0
  %1402 = vmatpush1.msra.mxu0 0.0
  %1403 = vmatprep.subr.mxu0 0.0
  %1404 = vmatpush1.msra.mxu0 0.0
  %1405 = vmatprep.subr.mxu0 0.0
  %1406 = vmatpush1.msra.mxu0 0.0
  %1407 = vmatprep.subr.mxu0 0.0
  %1408 = vmatpush1.msra.mxu0 0.0
  %1409 = vmatprep.subr.mxu0 0.0
  %1410 = vmatpush1.msra.mxu0 0.0
  %1411 = vmatprep.subr.mxu0 0.0
  %1412 = vmatpush1.msra.mxu0 0.0
  %1413 = vmatprep.subr.mxu0 0.0
  %1414 = vmatpush1.msra.mxu0 0.0
  %1415 = vmatprep.subr.mxu0 0.0
  %1416 = vmatpush1.msra.mxu0 0.0
  %1417 = vmatprep.subr.mxu0 0.0
  %1418 = vmatpush1.msra.mxu0 0.0
  %1419 = vmatprep.subr.mxu0 0.0
  %1420 = vmatpush1.msra.mxu0 0.0
  %1421 = vmatprep.subr.mxu0 0.0
  %1422 = vmatpush1.msra.mxu0 0.0
  %1423 = vmatprep.subr.mxu0 0.0
  %1424 = vmatpush1.msra.mxu0 0.0
  %1425 = vmatprep.subr.mxu0 0.0
  %1426 = vmatpush1.msra.mxu0 0.0
  %1427 = vmatprep.subr.mxu0 0.0
  %1428 = vmatpush1.msra.mxu0 0.0
  %1429 = vmatprep.subr.mxu0 0.0
  %1430 = vmatpush1.msra.mxu0 0.0
  %1431 = vmatprep.mubr.f32.mxu0 0.0
  %1432 = vmatmul.mubr.f32.gmra.mrb[0].mxu0 %v1365
  %v1433 = vpop.f32.mrb[0].mxu0
  %v1434 = vadd.f32 0.0, %v1433
  %v1435 = vpop.f32.mrb[0].mxu0
  %1436 = vdwg.mxu0
  %1437 = vrot.lane.b32.xlu0 %v406, 96
  %v1438 = vpop.permute.xlu0 %1437
  %1439 = vrot.lane.b32.xlu0 %v406, 32
  %v1440 = vpop.permute.xlu0 %1439
  %v1441 = vsel %vm414, %v1438, 0
  %v1443 = vsel %vm414, %v1440, 0
  %1445 = vmatprep.subr.mxu0 0.0
  %1446 = vmatpush1.xpose.msra.mxu0 %v1443
  %1447 = vmatprep.subr.mxu0 0.0
  %1448 = vmatpush1.xpose.msra.mxu0 0.0
  %1449 = vmatprep.subr.mxu0 0.0
  %1450 = vmatpush1.xpose.msra.mxu0 0.0
  %1451 = vmatprep.subr.mxu0 0.0
  %1452 = vmatpush1.xpose.msra.mxu0 0.0
  %1453 = vmatprep.subr.mxu0 0.0
  %1454 = vmatpush1.xpose.msra.mxu0 0.0
  %1455 = vmatprep.subr.mxu0 0.0
  %1456 = vmatpush1.xpose.msra.mxu0 0.0
  %1457 = vmatprep.subr.mxu0 0.0
  %1458 = vmatpush1.xpose.msra.mxu0 0.0
  %1459 = vmatprep.subr.mxu0 0.0
  %1460 = vmatpush1.xpose.msra.mxu0 0.0
  %1461 = vmatprep.subr.mxu0 0.0
  %1462 = vmatpush1.xpose.msra.mxu0 0.0
  %1463 = vmatprep.subr.mxu0 0.0
  %1464 = vmatpush1.xpose.msra.mxu0 0.0
  %1465 = vmatprep.subr.mxu0 0.0
  %1466 = vmatpush1.xpose.msra.mxu0 0.0
  %1467 = vmatprep.subr.mxu0 0.0
  %1468 = vmatpush1.xpose.msra.mxu0 0.0
  %1469 = vmatprep.subr.mxu0 0.0
  %1470 = vmatpush1.xpose.msra.mxu0 0.0
  %1471 = vmatprep.subr.mxu0 0.0
  %1472 = vmatpush1.xpose.msra.mxu0 0.0
  %1473 = vmatprep.subr.mxu0 0.0
  %1474 = vmatpush1.xpose.msra.mxu0 0.0
  %1475 = vmatprep.subr.mxu0 0.0
  %1476 = vmatpush1.xpose.msra.mxu0 0.0
  %1477 = vmatprep.subr.mxu0 0.0
  %1478 = vmatpush1.xpose.msra.mxu0 0.0
  %1479 = vmatprep.subr.mxu0 0.0
  %1480 = vmatpush1.xpose.msra.mxu0 0.0
  %1481 = vmatprep.subr.mxu0 0.0
  %1482 = vmatpush1.xpose.msra.mxu0 0.0
  %1483 = vmatprep.subr.mxu0 0.0
  %1484 = vmatpush1.xpose.msra.mxu0 0.0
  %1485 = vmatprep.subr.mxu0 0.0
  %1486 = vmatpush1.xpose.msra.mxu0 0.0
  %1487 = vmatprep.subr.mxu0 0.0
  %1488 = vmatpush1.xpose.msra.mxu0 0.0
  %1489 = vmatprep.subr.mxu0 0.0
  %1490 = vmatpush1.xpose.msra.mxu0 0.0
  %1491 = vmatprep.subr.mxu0 0.0
  %1492 = vmatpush1.xpose.msra.mxu0 0.0
  %1493 = vmatprep.subr.mxu0 0.0
  %1494 = vmatpush1.xpose.msra.mxu0 0.0
  %1495 = vmatprep.subr.mxu0 0.0
  %1496 = vmatpush1.xpose.msra.mxu0 0.0
  %1497 = vmatprep.subr.mxu0 0.0
  %1498 = vmatpush1.xpose.msra.mxu0 0.0
  %1499 = vmatprep.subr.mxu0 0.0
  %1500 = vmatpush1.xpose.msra.mxu0 0.0
  %1501 = vmatprep.subr.mxu0 0.0
  %1502 = vmatpush1.xpose.msra.mxu0 0.0
  %1503 = vmatprep.subr.mxu0 0.0
  %1504 = vmatpush1.xpose.msra.mxu0 0.0
  %1505 = vmatprep.subr.mxu0 0.0
  %1506 = vmatpush1.xpose.msra.mxu0 0.0
  %1507 = vmatprep.subr.mxu0 0.0
  %1508 = vmatpush1.xpose.msra.mxu0 0.0
  %1509 = vmatprep.mubr.f32.mxu0 0.0
  %1510 = vmatmul.mubr.f32.gmra.mrb[0].mxu0 %v1441
  %v1511 = vpop.f32.mrb[0].mxu0
  %v1512 = vadd.f32 0.0, %v1511
  %v1513 = vpop.f32.mrb[0].mxu0
  %1514 = vdwg.mxu0
  %v1515 = vmul.f32 %v1512, 0.25
  %v1516 = vsel %vm1183, %v1515, -1e+09
  %v1517 = vsel %vm497, %v1516, -inf
  %1518 = vmax.xlane.f32.xlu0 %v1517
  %v1519 = vpop.xlane.xlu0 %1518
  %v1520 = vsub.f32 %v1516, %v1519
  %v1521 = vmul.f32 %v1520, 1.442695
  %v1522 = vpow.pop %v1521
  %v1523 = vsel %vm497, %v1522, 0.0
  %1524 = vadd.xlane.f32.xlu0 %v1523
  %v1525 = vpop.xlane.xlu0 %1524
  %v1526 = vrcp.pop %v1525
  %v1527 = vmul.f32 %v1522, %v1526
  %1528 = vrot.lane.b32.xlu0 %v408, 96
  %v1529 = vpop.permute.xlu0 %1528
  %v1532 = vsel %vm497, %v1527, 0
  %1534 = vmatprep.subr.mxu0 0.0
  %1535 = vmatpush1.msra.mxu0 %v1529
  %1536 = vmatprep.subr.mxu0 0.0
  %1537 = vmatpush1.msra.mxu0 0.0
  %1538 = vmatprep.subr.mxu0 0.0
  %1539 = vmatpush1.msra.mxu0 0.0
  %1540 = vmatprep.subr.mxu0 0.0
  %1541 = vmatpush1.msra.mxu0 0.0
  %1542 = vmatprep.subr.mxu0 0.0
  %1543 = vmatpush1.msra.mxu0 0.0
  %1544 = vmatprep.subr.mxu0 0.0
  %1545 = vmatpush1.msra.mxu0 0.0
  %1546 = vmatprep.subr.mxu0 0.0
  %1547 = vmatpush1.msra.mxu0 0.0
  %1548 = vmatprep.subr.mxu0 0.0
  %1549 = vmatpush1.msra.mxu0 0.0
  %1550 = vmatprep.subr.mxu0 0.0
  %1551 = vmatpush1.msra.mxu0 0.0
  %1552 = vmatprep.subr.mxu0 0.0
  %1553 = vmatpush1.msra.mxu0 0.0
  %1554 = vmatprep.subr.mxu0 0.0
  %1555 = vmatpush1.msra.mxu0 0.0
  %1556 = vmatprep.subr.mxu0 0.0
  %1557 = vmatpush1.msra.mxu0 0.0
  %1558 = vmatprep.subr.mxu0 0.0
  %1559 = vmatpush1.msra.mxu0 0.0
  %1560 = vmatprep.subr.mxu0 0.0
  %1561 = vmatpush1.msra.mxu0 0.0
  %1562 = vmatprep.subr.mxu0 0.0
  %1563 = vmatpush1.msra.mxu0 0.0
  %1564 = vmatprep.subr.mxu0 0.0
  %1565 = vmatpush1.msra.mxu0 0.0
  %1566 = vmatprep.subr.mxu0 0.0
  %1567 = vmatpush1.msra.mxu0 0.0
  %1568 = vmatprep.subr.mxu0 0.0
  %1569 = vmatpush1.msra.mxu0 0.0
  %1570 = vmatprep.subr.mxu0 0.0
  %1571 = vmatpush1.msra.mxu0 0.0
  %1572 = vmatprep.subr.mxu0 0.0
  %1573 = vmatpush1.msra.mxu0 0.0
  %1574 = vmatprep.subr.mxu0 0.0
  %1575 = vmatpush1.msra.mxu0 0.0
  %1576 = vmatprep.subr.mxu0 0.0
  %1577 = vmatpush1.msra.mxu0 0.0
  %1578 = vmatprep.subr.mxu0 0.0
  %1579 = vmatpush1.msra.mxu0 0.0
  %1580 = vmatprep.subr.mxu0 0.0
  %1581 = vmatpush1.msra.mxu0 0.0
  %1582 = vmatprep.subr.mxu0 0.0
  %1583 = vmatpush1.msra.mxu0 0.0
  %1584 = vmatprep.subr.mxu0 0.0
  %1585 = vmatpush1.msra.mxu0 0.0
  %1586 = vmatprep.subr.mxu0 0.0
  %1587 = vmatpush1.msra.mxu0 0.0
  %1588 = vmatprep.subr.mxu0 0.0
  %1589 = vmatpush1.msra.mxu0 0.0
  %1590 = vmatprep.subr.mxu0 0.0
  %1591 = vmatpush1.msra.mxu0 0.0
  %1592 = vmatprep.subr.mxu0 0.0
  %1593 = vmatpush1.msra.mxu0 0.0
  %1594 = vmatprep.subr.mxu0 0.0
  %1595 = vmatpush1.msra.mxu0 0.0
  %1596 = vmatprep.subr.mxu0 0.0
  %1597 = vmatpush1.msra.mxu0 0.0
  %1598 = vmatprep.mubr.f32.mxu0 0.0
  %1599 = vmatmul.mubr.f32.gmra.mrb[0].mxu0 %v1532
  %v1600 = vpop.f32.mrb[0].mxu0
  %v1601 = vadd.f32 0.0, %v1600
  %v1602 = vpop.f32.mrb[0].mxu0
  %1603 = vdwg.mxu0
  %1604 = vrot.lane.b32.xlu0 %v406, 80
  %v1605 = vpop.permute.xlu0 %1604
  %1606 = vrot.lane.b32.xlu0 %v406, 16
  %v1607 = vpop.permute.xlu0 %1606
  %v1608 = vsel %vm414, %v1605, 0
  %v1610 = vsel %vm414, %v1607, 0
  %1612 = vmatprep.subr.mxu0 0.0
  %1613 = vmatpush1.xpose.msra.mxu0 %v1610
  %1614 = vmatprep.subr.mxu0 0.0
  %1615 = vmatpush1.xpose.msra.mxu0 0.0
  %1616 = vmatprep.subr.mxu0 0.0
  %1617 = vmatpush1.xpose.msra.mxu0 0.0
  %1618 = vmatprep.subr.mxu0 0.0
  %1619 = vmatpush1.xpose.msra.mxu0 0.0
  %1620 = vmatprep.subr.mxu0 0.0
  %1621 = vmatpush1.xpose.msra.mxu0 0.0
  %1622 = vmatprep.subr.mxu0 0.0
  %1623 = vmatpush1.xpose.msra.mxu0 0.0
  %1624 = vmatprep.subr.mxu0 0.0
  %1625 = vmatpush1.xpose.msra.mxu0 0.0
  %1626 = vmatprep.subr.mxu0 0.0
  %1627 = vmatpush1.xpose.msra.mxu0 0.0
  %1628 = vmatprep.subr.mxu0 0.0
  %1629 = vmatpush1.xpose.msra.mxu0 0.0
  %1630 = vmatprep.subr.mxu0 0.0
  %1631 = vmatpush1.xpose.msra.mxu0 0.0
  %1632 = vmatprep.subr.mxu0 0.0
  %1633 = vmatpush1.xpose.msra.mxu0 0.0
  %1634 = vmatprep.subr.mxu0 0.0
  %1635 = vmatpush1.xpose.msra.mxu0 0.0
  %1636 = vmatprep.subr.mxu0 0.0
  %1637 = vmatpush1.xpose.msra.mxu0 0.0
  %1638 = vmatprep.subr.mxu0 0.0
  %1639 = vmatpush1.xpose.msra.mxu0 0.0
  %1640 = vmatprep.subr.mxu0 0.0
  %1641 = vmatpush1.xpose.msra.mxu0 0.0
  %1642 = vmatprep.subr.mxu0 0.0
  %1643 = vmatpush1.xpose.msra.mxu0 0.0
  %1644 = vmatprep.subr.mxu0 0.0
  %1645 = vmatpush1.xpose.msra.mxu0 0.0
  %1646 = vmatprep.subr.mxu0 0.0
  %1647 = vmatpush1.xpose.msra.mxu0 0.0
  %1648 = vmatprep.subr.mxu0 0.0
  %1649 = vmatpush1.xpose.msra.mxu0 0.0
  %1650 = vmatprep.subr.mxu0 0.0
  %1651 = vmatpush1.xpose.msra.mxu0 0.0
  %1652 = vmatprep.subr.mxu0 0.0
  %1653 = vmatpush1.xpose.msra.mxu0 0.0
  %1654 = vmatprep.subr.mxu0 0.0
  %1655 = vmatpush1.xpose.msra.mxu0 0.0
  %1656 = vmatprep.subr.mxu0 0.0
  %1657 = vmatpush1.xpose.msra.mxu0 0.0
  %1658 = vmatprep.subr.mxu0 0.0
  %1659 = vmatpush1.xpose.msra.mxu0 0.0
  %1660 = vmatprep.subr.mxu0 0.0
  %1661 = vmatpush1.xpose.msra.mxu0 0.0
  %1662 = vmatprep.subr.mxu0 0.0
  %1663 = vmatpush1.xpose.msra.mxu0 0.0
  %1664 = vmatprep.subr.mxu0 0.0
  %1665 = vmatpush1.xpose.msra.mxu0 0.0
  %1666 = vmatprep.subr.mxu0 0.0
  %1667 = vmatpush1.xpose.msra.mxu0 0.0
  %1668 = vmatprep.subr.mxu0 0.0
  %1669 = vmatpush1.xpose.msra.mxu0 0.0
  %1670 = vmatprep.subr.mxu0 0.0
  %1671 = vmatpush1.xpose.msra.mxu0 0.0
  %1672 = vmatprep.subr.mxu0 0.0
  %1673 = vmatpush1.xpose.msra.mxu0 0.0
  %1674 = vmatprep.subr.mxu0 0.0
  %1675 = vmatpush1.xpose.msra.mxu0 0.0
  %1676 = vmatprep.mubr.f32.mxu0 0.0
  %1677 = vmatmul.mubr.f32.gmra.mrb[0].mxu0 %v1608
  %v1678 = vpop.f32.mrb[0].mxu0
  %v1679 = vadd.f32 0.0, %v1678
  %v1680 = vpop.f32.mrb[0].mxu0
  %1681 = vdwg.mxu0
  %v1682 = vmul.f32 %v1679, 0.25
  %v1683 = vsel %vm1183, %v1682, -1e+09
  %v1684 = vsel %vm497, %v1683, -inf
  %1685 = vmax.xlane.f32.xlu0 %v1684
  %v1686 = vpop.xlane.xlu0 %1685
  %v1687 = vsub.f32 %v1683, %v1686
  %v1688 = vmul.f32 %v1687, 1.442695
  %v1689 = vpow.pop %v1688
  %v1690 = vsel %vm497, %v1689, 0.0
  %1691 = vadd.xlane.f32.xlu0 %v1690
  %v1692 = vpop.xlane.xlu0 %1691
  %v1693 = vrcp.pop %v1692
  %v1694 = vmul.f32 %v1689, %v1693
  %1695 = vrot.lane.b32.xlu0 %v408, 80
  %v1696 = vpop.permute.xlu0 %1695
  %v1699 = vsel %vm497, %v1694, 0
  %1701 = vmatprep.subr.mxu0 0.0
  %1702 = vmatpush1.msra.mxu0 %v1696
  %1703 = vmatprep.subr.mxu0 0.0
  %1704 = vmatpush1.msra.mxu0 0.0
  %1705 = vmatprep.subr.mxu0 0.0
  %1706 = vmatpush1.msra.mxu0 0.0
  %1707 = vmatprep.subr.mxu0 0.0
  %1708 = vmatpush1.msra.mxu0 0.0
  %1709 = vmatprep.subr.mxu0 0.0
  %1710 = vmatpush1.msra.mxu0 0.0
  %1711 = vmatprep.subr.mxu0 0.0
  %1712 = vmatpush1.msra.mxu0 0.0
  %1713 = vmatprep.subr.mxu0 0.0
  %1714 = vmatpush1.msra.mxu0 0.0
  %1715 = vmatprep.subr.mxu0 0.0
  %1716 = vmatpush1.msra.mxu0 0.0
  %1717 = vmatprep.subr.mxu0 0.0
  %1718 = vmatpush1.msra.mxu0 0.0
  %1719 = vmatprep.subr.mxu0 0.0
  %1720 = vmatpush1.msra.mxu0 0.0
  %1721 = vmatprep.subr.mxu0 0.0
  %1722 = vmatpush1.msra.mxu0 0.0
  %1723 = vmatprep.subr.mxu0 0.0
  %1724 = vmatpush1.msra.mxu0 0.0
  %1725 = vmatprep.subr.mxu0 0.0
  %1726 = vmatpush1.msra.mxu0 0.0
  %1727 = vmatprep.subr.mxu0 0.0
  %1728 = vmatpush1.msra.mxu0 0.0
  %1729 = vmatprep.subr.mxu0 0.0
  %1730 = vmatpush1.msra.mxu0 0.0
  %1731 = vmatprep.subr.mxu0 0.0
  %1732 = vmatpush1.msra.mxu0 0.0
  %1733 = vmatprep.subr.mxu0 0.0
  %1734 = vmatpush1.msra.mxu0 0.0
  %1735 = vmatprep.subr.mxu0 0.0
  %1736 = vmatpush1.msra.mxu0 0.0
  %1737 = vmatprep.subr.mxu0 0.0
  %1738 = vmatpush1.msra.mxu0 0.0
  %1739 = vmatprep.subr.mxu0 0.0
  %1740 = vmatpush1.msra.mxu0 0.0
  %1741 = vmatprep.subr.mxu0 0.0
  %1742 = vmatpush1.msra.mxu0 0.0
  %1743 = vmatprep.subr.mxu0 0.0
  %1744 = vmatpush1.msra.mxu0 0.0
  %1745 = vmatprep.subr.mxu0 0.0
  %1746 = vmatpush1.msra.mxu0 0.0
  %1747 = vmatprep.subr.mxu0 0.0
  %1748 = vmatpush1.msra.mxu0 0.0
  %1749 = vmatprep.subr.mxu0 0.0
  %1750 = vmatpush1.msra.mxu0 0.0
  %1751 = vmatprep.subr.mxu0 0.0
  %1752 = vmatpush1.msra.mxu0 0.0
  %1753 = vmatprep.subr.mxu0 0.0
  %1754 = vmatpush1.msra.mxu0 0.0
  %1755 = vmatprep.subr.mxu0 0.0
  %1756 = vmatpush1.msra.mxu0 0.0
  %1757 = vmatprep.subr.mxu0 0.0
  %1758 = vmatpush1.msra.mxu0 0.0
  %1759 = vmatprep.subr.mxu0 0.0
  %1760 = vmatpush1.msra.mxu0 0.0
  %1761 = vmatprep.subr.mxu0 0.0
  %1762 = vmatpush1.msra.mxu0 0.0
  %1763 = vmatprep.subr.mxu0 0.0
  %1764 = vmatpush1.msra.mxu0 0.0
  %1765 = vmatprep.mubr.f32.mxu0 0.0
  %1766 = vmatmul.mubr.f32.gmra.mrb[0].mxu0 %v1699
  %v1767 = vpop.f32.mrb[0].mxu0
  %v1768 = vadd.f32 0.0, %v1767
  %v1769 = vpop.f32.mrb[0].mxu0
  %1770 = vdwg.mxu0
  %1772 = vrot.lane.b32.xlu0 %v1434, 16
  %v1773 = vpop.permute.xlu0 %1772
  %1776 = vrot.lane.b32.xlu0 %v1601, 32
  %v1777 = vpop.permute.xlu0 %1776
  %1780 = vrot.lane.b32.xlu0 %v1768, 48
  %v1781 = vpop.permute.xlu0 %1780
  %v1783 = vsel %vm414, %v1266, %v1773
  %v1784 = vsel %vm1097, %v1783, %v1777
  %v1785 = vsel %vm1099, %v1784, %v1781
  %v1786 = vld [vmem:[%s7] sm:$0xf]
  %v1787 = vld [vmem:[%s7 + $0x4] sm:$0xf]
  %v1788 = vld [vmem:[%s7 + $0x8] sm:$0xf]
  %v1789 = vld [vmem:[%s7 + $0xc] sm:$0xf]
  %v1790 = vld [vmem:[%s7 + $0x10] sm:$0xf]
  %v1791 = vld [vmem:[%s7 + $0x14] sm:$0xf]
  %v1792 = vld [vmem:[%s7 + $0x18] sm:$0xf]
  %v1793 = vld [vmem:[%s7 + $0x1c] sm:$0xf]
  %v1794 = vpack.c.bf16 %v1785, %v1100
  %v1795 = vld [vmem:[%s8] sm:$0x1]
  %v1797 = vlaneseq
  %v1798 = vshrl.u32 %v1797, 7
  %v1799 = vsub.s32 0, %v1798
  %v1800 = vrot.slane %v1795, %v1799
  %v1810 = vunpack.c.l.b16 %v1786
  %v1811 = vunpack.c.l.b16 %v1787
  %v1812 = vunpack.c.l.b16 %v1788
  %v1813 = vunpack.c.l.b16 %v1789
  %v1814 = vunpack.c.l.b16 %v1790
  %v1815 = vunpack.c.l.b16 %v1791
  %v1816 = vunpack.c.l.b16 %v1792
  %v1817 = vunpack.c.l.b16 %v1793
  %v1818 = vpack.c.b16 %v1811, %v1810
  %v1819 = vpack.c.b16 %v1813, %v1812
  %v1820 = vpack.c.b16 %v1815, %v1814
  %v1821 = vpack.c.b16 %v1817, %v1816
  %v1827 = vsel %vm153, %v1794, 0
  %1829 = vmatprep.subr.bf16.mxu0 0
  %1830 = vmatpush1.bf16.msra.mxu0 %v1818
  %1831 = vmatprep.subr.bf16.mxu0 0
  %1832 = vmatpush1.bf16.msra.mxu0 %v1819
  %1833 = vmatprep.subr.bf16.mxu0 0
  %1834 = vmatpush1.bf16.msra.mxu0 %v1820
  %1835 = vmatprep.subr.bf16.mxu0 0
  %1836 = vmatpush1.bf16.msra.mxu0 %v1821
  %1837 = vmatprep.subr.bf16.mxu0 0
  %1838 = vmatpush1.bf16.msra.mxu0 0
  %1839 = vmatprep.subr.bf16.mxu0 0
  %1840 = vmatpush1.bf16.msra.mxu0 0
  %1841 = vmatprep.subr.bf16.mxu0 0
  %1842 = vmatpush1.bf16.msra.mxu0 0
  %1843 = vmatprep.subr.bf16.mxu0 0
  %1844 = vmatpush1.bf16.msra.mxu0 0
  %1845 = vmatprep.subr.bf16.mxu0 0
  %1846 = vmatpush1.bf16.msra.mxu0 0
  %1847 = vmatprep.subr.bf16.mxu0 0
  %1848 = vmatpush1.bf16.msra.mxu0 0
  %1849 = vmatprep.subr.bf16.mxu0 0
  %1850 = vmatpush1.bf16.msra.mxu0 0
  %1851 = vmatprep.subr.bf16.mxu0 0
  %1852 = vmatpush1.bf16.msra.mxu0 0
  %1853 = vmatprep.subr.bf16.mxu0 0
  %1854 = vmatpush1.bf16.msra.mxu0 0
  %1855 = vmatprep.subr.bf16.mxu0 0
  %1856 = vmatpush1.bf16.msra.mxu0 0
  %1857 = vmatprep.subr.bf16.mxu0 0
  %1858 = vmatpush1.bf16.msra.mxu0 0
  %1859 = vmatprep.subr.bf16.mxu0 0
  %1860 = vmatpush1.bf16.msra.mxu0 0
  %1861 = vmatprep.mubr.bf16.mxu0 0
  %1862 = vmatmul.mubr.bf16.gmra.mrb[0].mxu0 %v1827
  %v1863 = vpop.f32.mrb[0].mxu0
  %v1864 = vadd.f32 %v1800, %v1863
  %v1865 = vpop.f32.mrb[0].mxu0
  %v1866 = vpop.f32.mrb[0].mxu0
  %v1867 = vadd.f32 %v1800, %v1866
  %v1868 = vpop.f32.mrb[0].mxu0
  %1869 = vdwg.mxu0
  %v1870 = vmul.f32 %v245, %v1864
  %v1871 = vmul.f32 %v257, %v1867
  %v1872 = vadd.f32 %v45, %v1870
  %v1873 = vadd.f32 %v46, %v1871
  %v1874 = vsel %vm153, %v1872, 0.0
  %1875 = vadd.xlane.f32.xlu0 %v1874
  %v1876 = vpop.xlane.xlu0 %1875
  %v1877 = vsel %vm153, %v1873, 0.0
  %1878 = vadd.xlane.f32.xlu0 %v1877
  %v1879 = vpop.xlane.xlu0 %1878
  %v1880 = vmul.f32 %v1876, %v268
  %v1881 = vmul.f32 %v1879, %v268
  %v1882 = vsub.f32 %v1872, %v1880
  %v1883 = vsub.f32 %v1873, %v1881
  %v1884 = vmul.f32 %v1882, %v1882
  %v1885 = vmul.f32 %v1883, %v1883
  %v1886 = vsel %vm153, %v1884, 0.0
  %1887 = vadd.xlane.f32.xlu0 %v1886
  %v1888 = vpop.xlane.xlu0 %1887
  %v1889 = vsel %vm153, %v1885, 0.0
  %1890 = vadd.xlane.f32.xlu0 %v1889
  %v1891 = vpop.xlane.xlu0 %1890
  %v1892 = vmul.f32 %v1888, %v268
  %v1893 = vmul.f32 %v1891, %v268
  %v1894 = vadd.f32 %v1892, 1e-06
  %v1895 = vadd.f32 %v1893, 1e-06
  %v1896 = vrsqrt.pop %v1894
  %v1897 = vrsqrt.pop %v1895
  %v1898 = vmul.f32 %v1882, %v1896
  %v1899 = vmul.f32 %v1883, %v1897
  %v1900 = vadd.f32 %v249, 1.0
  %v1901 = vadd.f32 %v261, 1.0
  %v1902 = vmul.f32 %v1898, %v1900
  %v1903 = vmul.f32 %v1899, %v1901
  %1906 = vrot.lane.b32.xlu0 %v245, 64
  %v1907 = vpop.permute.xlu0 %1906
  %1908 = vrot.lane.b32.xlu0 %v257, 64
  %v1909 = vpop.permute.xlu0 %1908
  %v1912 = vadd.f32 %v1902, %v1907
  %v1913 = vadd.f32 %v1903, %v1909
  %v1914 = vld [vmem:[%s9] sm:$0xf]
  %v1915 = vld [vmem:[%s9 + $0x4] sm:$0xf]
  %v1916 = vld [vmem:[%s9 + $0x8] sm:$0xf]
  %v1917 = vld [vmem:[%s9 + $0xc] sm:$0xf]
  %v1918 = vld [vmem:[%s9 + $0x10] sm:$0xf]
  %v1919 = vld [vmem:[%s9 + $0x14] sm:$0xf]
  %v1920 = vld [vmem:[%s9 + $0x18] sm:$0xf]
  %v1921 = vld [vmem:[%s9 + $0x1c] sm:$0xf]
  %v1922 = vpack.c.bf16 %v1913, %v1912
  %v1923 = vld [vmem:[%s10] sm:$0x1]
  %v1925 = vlaneseq
  %v1926 = vshrl.u32 %v1925, 7
  %v1927 = vsub.s32 0, %v1926
  %v1928 = vrot.slane %v1923, %v1927
  %v1938 = vunpack.c.l.b16 %v1914
  %v1939 = vunpack.c.l.b16 %v1915
  %v1940 = vunpack.c.l.b16 %v1916
  %v1941 = vunpack.c.l.b16 %v1917
  %v1942 = vunpack.c.l.b16 %v1918
  %v1943 = vunpack.c.l.b16 %v1919
  %v1944 = vunpack.c.l.b16 %v1920
  %v1945 = vunpack.c.l.b16 %v1921
  %v1946 = vpack.c.b16 %v1939, %v1938
  %v1947 = vpack.c.b16 %v1941, %v1940
  %v1948 = vpack.c.b16 %v1943, %v1942
  %v1949 = vpack.c.b16 %v1945, %v1944
  %v1955 = vsel %vm153, %v1922, 0
  %1957 = vmatprep.subr.bf16.mxu0 0
  %1958 = vmatpush1.bf16.msra.mxu0 %v1946
  %1959 = vmatprep.subr.bf16.mxu0 0
  %1960 = vmatpush1.bf16.msra.mxu0 %v1947
  %1961 = vmatprep.subr.bf16.mxu0 0
  %1962 = vmatpush1.bf16.msra.mxu0 %v1948
  %1963 = vmatprep.subr.bf16.mxu0 0
  %1964 = vmatpush1.bf16.msra.mxu0 %v1949
  %1965 = vmatprep.subr.bf16.mxu0 0
  %1966 = vmatpush1.bf16.msra.mxu0 0
  %1967 = vmatprep.subr.bf16.mxu0 0
  %1968 = vmatpush1.bf16.msra.mxu0 0
  %1969 = vmatprep.subr.bf16.mxu0 0
  %1970 = vmatpush1.bf16.msra.mxu0 0
  %1971 = vmatprep.subr.bf16.mxu0 0
  %1972 = vmatpush1.bf16.msra.mxu0 0
  %1973 = vmatprep.subr.bf16.mxu0 0
  %1974 = vmatpush1.bf16.msra.mxu0 0
  %1975 = vmatprep.subr.bf16.mxu0 0
  %1976 = vmatpush1.bf16.msra.mxu0 0
  %1977 = vmatprep.subr.bf16.mxu0 0
  %1978 = vmatpush1.bf16.msra.mxu0 0
  %1979 = vmatprep.subr.bf16.mxu0 0
  %1980 = vmatpush1.bf16.msra.mxu0 0
  %1981 = vmatprep.subr.bf16.mxu0 0
  %1982 = vmatpush1.bf16.msra.mxu0 0
  %1983 = vmatprep.subr.bf16.mxu0 0
  %1984 = vmatpush1.bf16.msra.mxu0 0
  %1985 = vmatprep.subr.bf16.mxu0 0
  %1986 = vmatpush1.bf16.msra.mxu0 0
  %1987 = vmatprep.subr.bf16.mxu0 0
  %1988 = vmatpush1.bf16.msra.mxu0 0
  %1989 = vmatprep.mubr.bf16.mxu0 0
  %1990 = vmatmul.mubr.bf16.gmra.mrb[0].mxu0 %v1955
  %v1991 = vpop.f32.mrb[0].mxu0
  %v1992 = vadd.f32 %v1928, %v1991
  %v1993 = vpop.f32.mrb[0].mxu0
  %v1994 = vpop.f32.mrb[0].mxu0
  %v1995 = vadd.f32 %v1928, %v1994
  %v1996 = vpop.f32.mrb[0].mxu0
  %1997 = vdwg.mxu0
  %v1998 = vmul.f32 %v1992, %v1992
  %v1999 = vmul.f32 %v1995, %v1995
  %v2000 = vmul.f32 %v1992, %v1998
  %v2001 = vmul.f32 %v1995, %v1999
  %v2002 = vmul.f32 %v2000, 0.044715
  %v2003 = vmul.f32 %v2001, 0.044715
  %v2004 = vadd.f32 %v1992, %v2002
  %v2005 = vadd.f32 %v1995, %v2003
  %v2006 = vmul.f32 %v2004, 0.7978846
  %v2007 = vmul.f32 %v2005, 0.7978846
  %v2008 = vtanh.pop %v2006
  %v2009 = vtanh.pop %v2007
  %v2010 = vadd.f32 %v2008, 1.0
  %v2011 = vadd.f32 %v2009, 1.0
  %v2012 = vmul.f32 %v2010, 0.5
  %v2013 = vmul.f32 %v2011, 0.5
  %v2014 = vmul.f32 %v1992, %v2012
  %v2015 = vmul.f32 %v1995, %v2013
  %v2016 = vld [vmem:[%s11] sm:$0xf]
  %v2017 = vld [vmem:[%s11 + $0x4] sm:$0xf]
  %v2018 = vld [vmem:[%s11 + $0x8] sm:$0xf]
  %v2019 = vld [vmem:[%s11 + $0xc] sm:$0xf]
  %v2020 = vld [vmem:[%s11 + $0x10] sm:$0xf]
  %v2021 = vld [vmem:[%s11 + $0x14] sm:$0xf]
  %v2022 = vld [vmem:[%s11 + $0x18] sm:$0xf]
  %v2023 = vld [vmem:[%s11 + $0x1c] sm:$0xf]
  %v2024 = vld [vmem:[%s11 + $0x20] sm:$0xf]
  %v2025 = vld [vmem:[%s11 + $0x24] sm:$0xf]
  %v2026 = vld [vmem:[%s11 + $0x28] sm:$0xf]
  %v2027 = vld [vmem:[%s11 + $0x2c] sm:$0xf]
  %v2028 = vld [vmem:[%s11 + $0x30] sm:$0xf]
  %v2029 = vld [vmem:[%s11 + $0x34] sm:$0xf]
  %v2030 = vld [vmem:[%s11 + $0x38] sm:$0xf]
  %v2031 = vld [vmem:[%s11 + $0x3c] sm:$0xf]
  %v2032 = vpack.c.bf16 %v2015, %v2014
  %v2033 = vld [vmem:[%s12] sm:$0x1]
  %v2035 = vlaneseq
  %v2036 = vshrl.u32 %v2035, 7
  %v2037 = vsub.s32 0, %v2036
  %v2038 = vrot.slane %v2033, %v2037
  %v2056 = vunpack.c.l.b16 %v2016
  %v2057 = vunpack.c.l.b16 %v2017
  %v2058 = vunpack.c.l.b16 %v2018
  %v2059 = vunpack.c.l.b16 %v2019
  %v2060 = vunpack.c.l.b16 %v2020
  %v2061 = vunpack.c.l.b16 %v2021
  %v2062 = vunpack.c.l.b16 %v2022
  %v2063 = vunpack.c.l.b16 %v2023
  %v2064 = vunpack.c.l.b16 %v2024
  %v2065 = vunpack.c.l.b16 %v2025
  %v2066 = vunpack.c.l.b16 %v2026
  %v2067 = vunpack.c.l.b16 %v2027
  %v2068 = vunpack.c.l.b16 %v2028
  %v2069 = vunpack.c.l.b16 %v2029
  %v2070 = vunpack.c.l.b16 %v2030
  %v2071 = vunpack.c.l.b16 %v2031
  %v2072 = vpack.c.b16 %v2057, %v2056
  %v2073 = vpack.c.b16 %v2059, %v2058
  %v2074 = vpack.c.b16 %v2061, %v2060
  %v2075 = vpack.c.b16 %v2063, %v2062
  %v2076 = vpack.c.b16 %v2065, %v2064
  %v2077 = vpack.c.b16 %v2067, %v2066
  %v2078 = vpack.c.b16 %v2069, %v2068
  %v2079 = vpack.c.b16 %v2071, %v2070
  %2088 = vmatprep.subr.bf16.mxu0 0
  %2089 = vmatpush1.bf16.msra.mxu0 %v2072
  %2090 = vmatprep.subr.bf16.mxu0 0
  %2091 = vmatpush1.bf16.msra.mxu0 %v2073
  %2092 = vmatprep.subr.bf16.mxu0 0
  %2093 = vmatpush1.bf16.msra.mxu0 %v2074
  %2094 = vmatprep.subr.bf16.mxu0 0
  %2095 = vmatpush1.bf16.msra.mxu0 %v2075
  %2096 = vmatprep.subr.bf16.mxu0 0
  %2097 = vmatpush1.bf16.msra.mxu0 %v2076
  %2098 = vmatprep.subr.bf16.mxu0 0
  %2099 = vmatpush1.bf16.msra.mxu0 %v2077
  %2100 = vmatprep.subr.bf16.mxu0 0
  %2101 = vmatpush1.bf16.msra.mxu0 %v2078
  %2102 = vmatprep.subr.bf16.mxu0 0
  %2103 = vmatpush1.bf16.msra.mxu0 %v2079
  %2104 = vmatprep.subr.bf16.mxu0 0
  %2105 = vmatpush1.bf16.msra.mxu0 0
  %2106 = vmatprep.subr.bf16.mxu0 0
  %2107 = vmatpush1.bf16.msra.mxu0 0
  %2108 = vmatprep.subr.bf16.mxu0 0
  %2109 = vmatpush1.bf16.msra.mxu0 0
  %2110 = vmatprep.subr.bf16.mxu0 0
  %2111 = vmatpush1.bf16.msra.mxu0 0
  %2112 = vmatprep.subr.bf16.mxu0 0
  %2113 = vmatpush1.bf16.msra.mxu0 0
  %2114 = vmatprep.subr.bf16.mxu0 0
  %2115 = vmatpush1.bf16.msra.mxu0 0
  %2116 = vmatprep.subr.bf16.mxu0 0
  %2117 = vmatpush1.bf16.msra.mxu0 0
  %2118 = vmatprep.subr.bf16.mxu0 0
  %2119 = vmatpush1.bf16.msra.mxu0 0
  %2120 = vmatprep.mubr.bf16.mxu0 0
  %2121 = vmatmul.mubr.bf16.gmra.mrb[0].mxu0 %v2032
  %v2122 = vpop.f32.mrb[0].mxu0
  %v2123 = vadd.f32 %v2038, %v2122
  %v2124 = vpop.f32.mrb[0].mxu0
  %v2125 = vpop.f32.mrb[0].mxu0
  %v2126 = vadd.f32 %v2038, %v2125
  %v2127 = vpop.f32.mrb[0].mxu0
  %2128 = vdwg.mxu0
  %2131 = vrot.lane.b32.xlu0 %v2123, 64
  %v2132 = vpop.permute.xlu0 %2131
  %2133 = vrot.lane.b32.xlu0 %v2126, 64
  %v2134 = vpop.permute.xlu0 %2133
  %v2137 = vmul.f32 %v249, %v2132
  %v2138 = vmul.f32 %v261, %v2134
  %2141 = vrot.lane.b32.xlu0 %v2137, 64
  %v2142 = vpop.permute.xlu0 %2141
  %2143 = vrot.lane.b32.xlu0 %v2138, 64
  %v2144 = vpop.permute.xlu0 %2143
  %v2147 = vadd.f32 %v1872, %v2142
  %v2148 = vadd.f32 %v1873, %v2144
  %2149 = vst.msk [vmem:[%s13] sm:$0xff] %vm153, %v2147
  %2150 = vst.msk [vmem:[%s13 + $0x8] sm:$0xff] %vm153, %v2148
  // Predicated region
  $region54: #{_lambda_.7} parent=0 // pred_check
    _
  $region55: #{_lambda_.7} parent=0 // pred_check_branch
    %2152 = sbr.rel (0) target = $region57
  $region56: #{_lambda_.7} parent=0 // pred_region
    _
  $region57: #{_lambda_.7} parent=0 // pred_fallthru
    _
  // Predicated region
  $region58: #{_lambda_.7} parent=0 // pred_check
    _
  $region59: #{_lambda_.7} parent=0 // pred_check_branch
    %2154 = sbr.rel (0) target = $region61
  $region60: #{_lambda_.7} parent=0 // pred_region
    _
  $region61: #{_lambda_.7} parent=0 // pred_fallthru
    _

</llo_original>
